<compile_context>
chip_gen: v7x
topology: tpu7x:2x2x1
jax: 0.10.0
libtpu: 0.0.40
codegen_flags: <defaults>
</compile_context>

<pallas_src>
import functools
import math

import jax
import jax.numpy as jnp
from jax import lax
from jax.experimental import pallas as pl
from jax.experimental.pallas import tpu as pltpu

EPS = 1e-5  # PyTorch InstanceNorm2d default eps


def _resblock_kernel(x_ref, w1_ref, w2_ref, o_ref, col_ref, *, H, W, Cp):
    """Full ResBlock forward for one batch sample.

    x_ref / o_ref : (H*W, Cp) f32   flat spatial rows (sublanes), channels (lanes)
    w*_ref        : (9*Cp, Cp) bf16 im2col weights, row index = (dy*3 + dx)*Cp + cin
    col_ref       : ((H+2)*W, 3*Cp) bf16 VMEM scratch — reflection-padded
                    activation; lanes = [dx=0 tap | dx=1 center | dx=2 tap],
                    padded image rows in sublane blocks of W (rows 0 and H+1
                    are the vertical-reflection halos).
    """
    HW = H * W
    inv_hw = 1.0 / float(HW)

    # j = column index within an image row, for the W-boundary reflection masks.
    col = lax.broadcasted_iota(jnp.int32, (HW, 1), 0) % W

    def build_col(a_bf16):
        """Write the reflection-padded horizontal im2col of `a` into col_ref."""
        # Center (dx=1) tap: padded rows 1..H.
        col_ref[pl.ds(W, HW), pl.ds(Cp, Cp)] = a_bf16
        # Shifted re-reads give the +-1 flat-row neighbours.  The single
        # out-of-image element at each end lands in a halo row (possibly stale)
        # and is discarded by the reflection select below (select, no arithmetic).
        up = col_ref[pl.ds(W - 1, HW), pl.ds(Cp, Cp)]   # up[r] = a[r-1]
        dn = col_ref[pl.ds(W + 1, HW), pl.ds(Cp, Cp)]   # dn[r] = a[r+1]
        # dx=0 tap: left neighbour; ReflectionPad(1) at j == 0   -> a[i, 1].
        col_ref[pl.ds(W, HW), pl.ds(0, Cp)] = jnp.where(col == 0, dn, up)
        # dx=2 tap: right neighbour; ReflectionPad(1) at j == W-1 -> a[i, W-2].
        col_ref[pl.ds(W, HW), pl.ds(2 * Cp, Cp)] = jnp.where(col == W - 1, up, dn)
        # Vertical reflection halos:
        #   padded row 0   = original row 1   (already stored as padded row 2)
        #   padded row H+1 = original row H-2 (already stored as padded row H-1)
        col_ref[pl.ds(0, W), :] = col_ref[pl.ds(2 * W, W), :]
        col_ref[pl.ds((H + 1) * W, W), :] = col_ref[pl.ds((H - 1) * W, W), :]

    def conv(w_ref):
        """3 accumulating MXU dots (one per dy), K = 3*Cp each, f32 accumulate.
        Conv bias omitted: it cancels exactly in the following InstanceNorm."""
        acc = jnp.dot(col_ref[pl.ds(0, HW), :],
                      w_ref[pl.ds(0, 3 * Cp), :],
                      preferred_element_type=jnp.float32)
        for dy in (1, 2):
            acc += jnp.dot(col_ref[pl.ds(dy * W, HW), :],
                           w_ref[pl.ds(dy * 3 * Cp, 3 * Cp), :],
                           preferred_element_type=jnp.float32)
        return acc

    def inorm(y):
        """Per-channel InstanceNorm over the spatial (sublane) axis, two-pass var."""
        mean = jnp.sum(y, axis=0, keepdims=True) * inv_hw
        centered = y - mean
        var = jnp.sum(centered * centered, axis=0, keepdims=True) * inv_hw
        return centered * lax.rsqrt(var + EPS)

    # --- conv1 -> InstanceNorm -> ReLU --------------------------------------
    build_col(x_ref[...].astype(jnp.bfloat16))
    h = jnp.maximum(inorm(conv(w1_ref)), 0.0)
    # Dropout(0.5): identity (eval mode) — see TODO at top of file.

    # --- conv2 -> InstanceNorm, residual add fused into the final store -----
    build_col(h.astype(jnp.bfloat16))
    o_ref[...] = x_ref[...] + inorm(conv(w2_ref))


@jax.jit
def resblock_hess_pallas(x_nchw, w1, b1, w2, b2):
    """x_nchw: (N, C, H, W) f32; w*: (C, C, 3, 3); b*: (C,). Returns NCHW f32.

    b1/b2 are accepted for parity with the PyTorch module but never reach the
    kernel: a per-channel conv bias is exactly cancelled by the (affine=False)
    InstanceNorm that immediately follows each conv.
    """
    del b1, b2
    N, C, H, W = x_nchw.shape
    assert H >= 2 and W >= 2, "ReflectionPad2d(1) needs H, W >= 2"
    Cp = ((C + 127) // 128) * 128          # lane-dense channel padding
    HW = H * W

    # NCHW -> (N, H*W, Cp): channels last (lanes), flat spatial rows (sublanes).
    x = jnp.transpose(x_nchw, (0, 2, 3, 1)).astype(jnp.float32).reshape(N, HW, C)
    x = jnp.pad(x, ((0, 0), (0, 0), (0, Cp - C)))

    def prep_w(w):
        # (Cout, Cin, kh, kw) -> (kh, kw, Cin, Cout), zero-pad channels to Cp,
        # flatten to the (9*Cp, Cp) im2col layout (row = (dy*3+dx)*Cp + cin),
        # cast to bf16 (f32 accumulation in-kernel via preferred_element_type).
        wt = jnp.transpose(w, (2, 3, 1, 0)).astype(jnp.float32)
        wt = jnp.pad(wt, ((0, 0), (0, 0), (0, Cp - C), (0, Cp - C)))
        return wt.reshape(9 * Cp, Cp).astype(jnp.bfloat16)

    # VMEM budget derived from actual residency (generation-agnostic):
    #   2x double-buffered x blocks + 2x out blocks, single-buffered weights,
    #   col scratch, ~6x HW*Cp f32 of in-body temporaries, + Mosaic headroom.
    xbytes = HW * Cp * 4
    wbytes = 9 * Cp * Cp * 2
    colbytes = (H + 2) * W * 3 * Cp * 2
    vmem_limit = min(4 * xbytes + 2 * wbytes + colbytes + 6 * xbytes + (8 << 20),
                     100 * 1024 * 1024)

    flops = N * 2 * (2 * HW * (9 * Cp) * Cp)            # two convs per sample
    bytes_accessed = 2 * N * HW * Cp * 4 + 2 * 9 * Cp * Cp * 2

    # Grid-invariant weights: constant index_map + single-buffered.
    weight_spec = pl.BlockSpec((9 * Cp, Cp), lambda n: (0, 0),
                               pipeline_mode=pl.Buffered(1))

    out = pl.pallas_call(
        functools.partial(_resblock_kernel, H=H, W=W, Cp=Cp),
        out_shape=jax.ShapeDtypeStruct((N, HW, Cp), jnp.float32),
        grid_spec=pltpu.PrefetchScalarGridSpec(
            num_scalar_prefetch=0,
            grid=(N,),
            in_specs=[
                pl.BlockSpec((None, HW, Cp), lambda n: (n, 0, 0)),
                weight_spec,
                weight_spec,
            ],
            out_specs=pl.BlockSpec((None, HW, Cp), lambda n: (n, 0, 0)),
            scratch_shapes=[pltpu.VMEM(((H + 2) * W, 3 * Cp), jnp.bfloat16)],
        ),
        compiler_params=pltpu.CompilerParams(
            dimension_semantics=("parallel",),
            vmem_limit_bytes=int(vmem_limit),
        ),
        cost_estimate=pl.CostEstimate(
            flops=flops, transcendentals=2 * N * Cp,
            bytes_accessed=bytes_accessed),
    )(x, prep_w(w1), prep_w(w2))

    out = out.reshape(N, H, W, Cp)[..., :C]
    return jnp.transpose(out, (0, 3, 1, 2))             # back to NCHW


def resblock_hess_ref(x, w1, b1, w2, b2):
    """Pure-JAX NCHW reference (eval mode).  Conv operands are cast to bf16 with
    f32 accumulation to mirror the kernel's MXU precision.  Biases ARE applied
    here — they cancel in the InstanceNorm, which the comparison verifies."""
    def conv(t, w, b):
        tp = jnp.pad(t, ((0, 0), (0, 0), (1, 1), (1, 1)), mode="reflect")
        y = lax.conv_general_dilated(
            tp.astype(jnp.bfloat16), w.astype(jnp.bfloat16),
            window_strides=(1, 1), padding="VALID",
            dimension_numbers=("NCHW", "OIHW", "NCHW"),
            preferred_element_type=jnp.float32)
        return y + b[None, :, None, None]

    def inorm(t):
        m = jnp.mean(t, axis=(2, 3), keepdims=True)
        v = jnp.mean((t - m) ** 2, axis=(2, 3), keepdims=True)
        return (t - m) / jnp.sqrt(v + EPS)

    h = jnp.maximum(inorm(conv(x, w1, b1)), 0.0)
    h = inorm(conv(h, w2, b2))
    return x + h


if __name__ == "__main__":
    N, C, H, W = 2, 4, 16, 16
    key = jax.random.PRNGKey(0)
    kx, kw1, kb1, kw2, kb2 = jax.random.split(key, 5)

    x = jax.random.normal(kx, (N, C, H, W), dtype=jnp.float32)
    # Deterministic "Conv2d-like" init (uniform in +-1/sqrt(fan_in), fan_in = C*3*3).
    bound = 1.0 / math.sqrt(C * 3 * 3)
    w1 = jax.random.uniform(kw1, (C, C, 3, 3), jnp.float32, -bound, bound)
    b1 = jax.random.uniform(kb1, (C,), jnp.float32, -bound, bound)
    w2 = jax.random.uniform(kw2, (C, C, 3, 3), jnp.float32, -bound, bound)
    b2 = jax.random.uniform(kb2, (C,), jnp.float32, -bound, bound)

    y = jax.block_until_ready(resblock_hess_pallas(x, w1, b1, w2, b2))
    y_ref = jax.block_until_ready(resblock_hess_ref(x, w1, b1, w2, b2))

    assert y.shape == (N, C, H, W) and y.dtype == jnp.float32
    max_err = float(jnp.max(jnp.abs(y - y_ref)))
    # Both sides use bf16 MXU operands + f32 accumulation -> tight agreement.
    assert max_err < 5e-3, f"max abs err {max_err}"
    print("KERNEL_OK")
</pallas_src>

<mosaic_0001>
module attributes {stable_mosaic.version = 11 : i64} {
  func.func @_resblock_kernel(%arg0: i32, %arg1: memref<1x256x128xf32, #tpu.memory_space<vmem>>, %arg2: memref<1152x128xbf16, #tpu.memory_space<vmem>>, %arg3: memref<1152x128xbf16, #tpu.memory_space<vmem>>, %arg4: memref<1x256x128xf32, #tpu.memory_space<vmem>>, %arg5: memref<288x384xbf16, #tpu.memory_space<vmem>>) attributes {dimension_semantics = [#tpu.dimension_semantics<parallel>], iteration_bounds = array<i64: 2>, scalar_prefetch = 0 : i64, scratch_operands = 1 : i64, tpu.core_type = #tpu.core_type<tc>, window_params = [{transform_indices = @transform_0, window_bounds = array<i64: 1, 256, 128>}, {pipeline_mode = #tpu.pipeline_mode<synchronous>, transform_indices = @transform_1, window_bounds = array<i64: 1152, 128>}, {pipeline_mode = #tpu.pipeline_mode<synchronous>, transform_indices = @transform_2, window_bounds = array<i64: 1152, 128>}, {transform_indices = @transform_3, window_bounds = array<i64: 1, 256, 128>}]} {
    %0 = tpu.iota {dimensions = array<i32: 0>} : vector<256x1xi32>
    %c16_i32 = arith.constant 16 : i32
    %c0_i32 = arith.constant 0 : i32
    %1 = arith.cmpi eq, %c16_i32, %c0_i32 : i32
    %c1_i32 = arith.constant 1 : i32
    %2 = arith.select %1, %c1_i32, %c16_i32 : i32
    %3 = vector.broadcast %2 : i32 to vector<256x1xi32>
    %4 = arith.remsi %0, %3 : vector<256x1xi32>
    %c0_i32_0 = arith.constant 0 : i32
    %5 = vector.broadcast %c0_i32_0 : i32 to vector<256x1xi32>
    %6 = arith.cmpi ne, %4, %5 : vector<256x1xi32>
    %c0_i32_1 = arith.constant 0 : i32
    %7 = vector.broadcast %c0_i32_1 : i32 to vector<256x1xi32>
    %8 = arith.cmpi slt, %4, %7 : vector<256x1xi32>
    %c0_i32_2 = arith.constant 0 : i32
    %9 = arith.cmpi slt, %2, %c0_i32_2 : i32
    %10 = vector.broadcast %9 : i1 to vector<256x1xi1>
    %11 = vector.broadcast %10 : vector<256x1xi1> to vector<256x1xi1>
    %12 = arith.xori %8, %11 : vector<256x1xi1>
    %13 = arith.andi %12, %6 : vector<256x1xi1>
    %14 = vector.broadcast %2 : i32 to vector<256x1xi32>
    %15 = arith.addi %4, %14 : vector<256x1xi32>
    %16 = arith.select %13, %15, %4 : vector<256x1xi1>, vector<256x1xi32>
    %c0 = arith.constant 0 : index
    %c0_3 = arith.constant 0 : index
    %c0_4 = arith.constant 0 : index
    %17 = vector.load %arg1[%c0, %c0_3, %c0_4] : memref<1x256x128xf32, #tpu.memory_space<vmem>>, vector<1x256x128xf32>
    %18 = vector.shape_cast %17 : vector<1x256x128xf32> to vector<256x128xf32>
    %19 = arith.truncf %18 : vector<256x128xf32> to vector<256x128xbf16>
    %c16 = arith.constant 16 : index
    %c128 = arith.constant 128 : index
    %20 = vector.load %arg5[%c16, %c128] : memref<288x384xbf16, #tpu.memory_space<vmem>>, vector<256x128xbf16>
    tpu.vector_store %arg5[%c16, %c128], %19 {strides = array<i32>} : memref<288x384xbf16, #tpu.memory_space<vmem>>, vector<256x128xbf16>,
    %c15 = arith.constant 15 : index
    %c128_5 = arith.constant 128 : index
    %21 = vector.load %arg5[%c15, %c128_5] : memref<288x384xbf16, #tpu.memory_space<vmem>>, vector<256x128xbf16>
    %c17 = arith.constant 17 : index
    %c128_6 = arith.constant 128 : index
    %22 = vector.load %arg5[%c17, %c128_6] : memref<288x384xbf16, #tpu.memory_space<vmem>>, vector<256x128xbf16>
    %c0_i32_7 = arith.constant 0 : i32
    %23 = vector.broadcast %c0_i32_7 : i32 to vector<256x1xi32>
    %24 = arith.cmpi eq, %16, %23 : vector<256x1xi32>
    %25 = vector.shape_cast %24 : vector<256x1xi1> to vector<256x1xi1>
    %26 = vector.broadcast %25 : vector<256x1xi1> to vector<256x128xi1>
    %27 = arith.select %26, %22, %21 : vector<256x128xi1>, vector<256x128xbf16>
    %c16_8 = arith.constant 16 : index
    %c0_9 = arith.constant 0 : index
    %28 = vector.load %arg5[%c16_8, %c0_9] : memref<288x384xbf16, #tpu.memory_space<vmem>>, vector<256x128xbf16>
    tpu.vector_store %arg5[%c16_8, %c0_9], %27 {strides = array<i32>} : memref<288x384xbf16, #tpu.memory_space<vmem>>, vector<256x128xbf16>,
    %c15_i32 = arith.constant 15 : i32
    %29 = vector.broadcast %c15_i32 : i32 to vector<256x1xi32>
    %30 = arith.cmpi eq, %16, %29 : vector<256x1xi32>
    %31 = vector.shape_cast %30 : vector<256x1xi1> to vector<256x1xi1>
    %32 = vector.broadcast %31 : vector<256x1xi1> to vector<256x128xi1>
    %33 = arith.select %32, %21, %22 : vector<256x128xi1>, vector<256x128xbf16>
    %c16_10 = arith.constant 16 : index
    %c256 = arith.constant 256 : index
    %34 = vector.load %arg5[%c16_10, %c256] : memref<288x384xbf16, #tpu.memory_space<vmem>>, vector<256x128xbf16>
    tpu.vector_store %arg5[%c16_10, %c256], %33 {strides = array<i32>} : memref<288x384xbf16, #tpu.memory_space<vmem>>, vector<256x128xbf16>,
    %c32 = arith.constant 32 : index
    %c0_11 = arith.constant 0 : index
    %35 = vector.load %arg5[%c32, %c0_11] : memref<288x384xbf16, #tpu.memory_space<vmem>>, vector<16x384xbf16>
    %c0_12 = arith.constant 0 : index
    %c0_13 = arith.constant 0 : index
    %36 = vector.load %arg5[%c0_12, %c0_13] : memref<288x384xbf16, #tpu.memory_space<vmem>>, vector<16x384xbf16>
    tpu.vector_store %arg5[%c0_12, %c0_13], %35 {strides = array<i32>} : memref<288x384xbf16, #tpu.memory_space<vmem>>, vector<16x384xbf16>,
    %c240 = arith.constant 240 : index
    %c0_14 = arith.constant 0 : index
    %37 = vector.load %arg5[%c240, %c0_14] : memref<288x384xbf16, #tpu.memory_space<vmem>>, vector<16x384xbf16>
    %c272 = arith.constant 272 : index
    %c0_15 = arith.constant 0 : index
    %38 = vector.load %arg5[%c272, %c0_15] : memref<288x384xbf16, #tpu.memory_space<vmem>>, vector<16x384xbf16>
    tpu.vector_store %arg5[%c272, %c0_15], %37 {strides = array<i32>} : memref<288x384xbf16, #tpu.memory_space<vmem>>, vector<16x384xbf16>,
    %c0_16 = arith.constant 0 : index
    %c0_17 = arith.constant 0 : index
    %39 = vector.load %arg5[%c0_16, %c0_17] : memref<288x384xbf16, #tpu.memory_space<vmem>>, vector<256x384xbf16>
    %c0_18 = arith.constant 0 : index
    %c0_19 = arith.constant 0 : index
    %40 = vector.load %arg2[%c0_18, %c0_19] : memref<1152x128xbf16, #tpu.memory_space<vmem>>, vector<384x128xbf16>
    %cst = arith.constant dense<0.000000e+00> : vector<256x128xf32>
    %41 = tpu.matmul %39, %40, %cst {dimension_numbers = #tpu.dot_dimension_numbers<[1], [0], [0], [1], [0, 0, 1, 1], [], []>} : vector<256x384xbf16>, vector<384x128xbf16>, vector<256x128xf32> -> vector<256x128xf32>
    %c16_20 = arith.constant 16 : index
    %c0_21 = arith.constant 0 : index
    %42 = vector.load %arg5[%c16_20, %c0_21] : memref<288x384xbf16, #tpu.memory_space<vmem>>, vector<256x384xbf16>
    %c384 = arith.constant 384 : index
    %c0_22 = arith.constant 0 : index
    %43 = vector.load %arg2[%c384, %c0_22] : memref<1152x128xbf16, #tpu.memory_space<vmem>>, vector<384x128xbf16>
    %cst_23 = arith.constant dense<0.000000e+00> : vector<256x128xf32>
    %44 = tpu.matmul %42, %43, %cst_23 {dimension_numbers = #tpu.dot_dimension_numbers<[1], [0], [0], [1], [0, 0, 1, 1], [], []>} : vector<256x384xbf16>, vector<384x128xbf16>, vector<256x128xf32> -> vector<256x128xf32>
    %45 = arith.addf %41, %44 : vector<256x128xf32>
    %c32_24 = arith.constant 32 : index
    %c0_25 = arith.constant 0 : index
    %46 = vector.load %arg5[%c32_24, %c0_25] : memref<288x384xbf16, #tpu.memory_space<vmem>>, vector<256x384xbf16>
    %c768 = arith.constant 768 : index
    %c0_26 = arith.constant 0 : index
    %47 = vector.load %arg2[%c768, %c0_26] : memref<1152x128xbf16, #tpu.memory_space<vmem>>, vector<384x128xbf16>
    %cst_27 = arith.constant dense<0.000000e+00> : vector<256x128xf32>
    %48 = tpu.matmul %46, %47, %cst_27 {dimension_numbers = #tpu.dot_dimension_numbers<[1], [0], [0], [1], [0, 0, 1, 1], [], []>} : vector<256x384xbf16>, vector<384x128xbf16>, vector<256x128xf32> -> vector<256x128xf32>
    %49 = arith.addf %45, %48 : vector<256x128xf32>
    %cst_28 = arith.constant dense<0.000000e+00> : vector<128xf32>
    %50 = vector.multi_reduction <add>, %49, %cst_28 [0] : vector<256x128xf32> to vector<128xf32>
    %51 = vector.shape_cast %50 : vector<128xf32> to vector<1x128xf32>
    %cst_29 = arith.constant 3.906250e-03 : f32
    %52 = vector.broadcast %cst_29 : f32 to vector<1x128xf32>
    %53 = arith.mulf %51, %52 : vector<1x128xf32>
    %54 = vector.broadcast %53 : vector<1x128xf32> to vector<256x128xf32>
    %55 = arith.subf %49, %54 : vector<256x128xf32>
    %56 = arith.mulf %55, %55 : vector<256x128xf32>
    %cst_30 = arith.constant dense<0.000000e+00> : vector<128xf32>
    %57 = vector.multi_reduction <add>, %56, %cst_30 [0] : vector<256x128xf32> to vector<128xf32>
    %58 = vector.shape_cast %57 : vector<128xf32> to vector<1x128xf32>
    %cst_31 = arith.constant 3.906250e-03 : f32
    %59 = vector.broadcast %cst_31 : f32 to vector<1x128xf32>
    %60 = arith.mulf %58, %59 : vector<1x128xf32>
    %cst_32 = arith.constant 9.99999974E-6 : f32
    %61 = vector.broadcast %cst_32 : f32 to vector<1x128xf32>
    %62 = arith.addf %60, %61 : vector<1x128xf32>
    %63 = math.rsqrt %62 : vector<1x128xf32>
    %64 = vector.broadcast %63 : vector<1x128xf32> to vector<256x128xf32>
    %65 = arith.mulf %55, %64 : vector<256x128xf32>
    %cst_33 = arith.constant 0.000000e+00 : f32
    %66 = vector.broadcast %cst_33 : f32 to vector<256x128xf32>
    %67 = arith.maximumf %65, %66 : vector<256x128xf32>
    %68 = arith.truncf %67 : vector<256x128xf32> to vector<256x128xbf16>
    %c16_34 = arith.constant 16 : index
    %c128_35 = arith.constant 128 : index
    %69 = vector.load %arg5[%c16_34, %c128_35] : memref<288x384xbf16, #tpu.memory_space<vmem>>, vector<256x128xbf16>
    tpu.vector_store %arg5[%c16_34, %c128_35], %68 {strides = array<i32>} : memref<288x384xbf16, #tpu.memory_space<vmem>>, vector<256x128xbf16>,
    %c15_36 = arith.constant 15 : index
    %c128_37 = arith.constant 128 : index
    %70 = vector.load %arg5[%c15_36, %c128_37] : memref<288x384xbf16, #tpu.memory_space<vmem>>, vector<256x128xbf16>
    %c17_38 = arith.constant 17 : index
    %c128_39 = arith.constant 128 : index
    %71 = vector.load %arg5[%c17_38, %c128_39] : memref<288x384xbf16, #tpu.memory_space<vmem>>, vector<256x128xbf16>
    %c0_i32_40 = arith.constant 0 : i32
    %72 = vector.broadcast %c0_i32_40 : i32 to vector<256x1xi32>
    %73 = arith.cmpi eq, %16, %72 : vector<256x1xi32>
    %74 = vector.shape_cast %73 : vector<256x1xi1> to vector<256x1xi1>
    %75 = vector.broadcast %74 : vector<256x1xi1> to vector<256x128xi1>
    %76 = arith.select %75, %71, %70 : vector<256x128xi1>, vector<256x128xbf16>
    %c16_41 = arith.constant 16 : index
    %c0_42 = arith.constant 0 : index
    %77 = vector.load %arg5[%c16_41, %c0_42] : memref<288x384xbf16, #tpu.memory_space<vmem>>, vector<256x128xbf16>
    tpu.vector_store %arg5[%c16_41, %c0_42], %76 {strides = array<i32>} : memref<288x384xbf16, #tpu.memory_space<vmem>>, vector<256x128xbf16>,
    %c15_i32_43 = arith.constant 15 : i32
    %78 = vector.broadcast %c15_i32_43 : i32 to vector<256x1xi32>
    %79 = arith.cmpi eq, %16, %78 : vector<256x1xi32>
    %80 = vector.shape_cast %79 : vector<256x1xi1> to vector<256x1xi1>
    %81 = vector.broadcast %80 : vector<256x1xi1> to vector<256x128xi1>
    %82 = arith.select %81, %70, %71 : vector<256x128xi1>, vector<256x128xbf16>
    %c16_44 = arith.constant 16 : index
    %c256_45 = arith.constant 256 : index
    %83 = vector.load %arg5[%c16_44, %c256_45] : memref<288x384xbf16, #tpu.memory_space<vmem>>, vector<256x128xbf16>
    tpu.vector_store %arg5[%c16_44, %c256_45], %82 {strides = array<i32>} : memref<288x384xbf16, #tpu.memory_space<vmem>>, vector<256x128xbf16>,
    %c32_46 = arith.constant 32 : index
    %c0_47 = arith.constant 0 : index
    %84 = vector.load %arg5[%c32_46, %c0_47] : memref<288x384xbf16, #tpu.memory_space<vmem>>, vector<16x384xbf16>
    %c0_48 = arith.constant 0 : index
    %c0_49 = arith.constant 0 : index
    %85 = vector.load %arg5[%c0_48, %c0_49] : memref<288x384xbf16, #tpu.memory_space<vmem>>, vector<16x384xbf16>
    tpu.vector_store %arg5[%c0_48, %c0_49], %84 {strides = array<i32>} : memref<288x384xbf16, #tpu.memory_space<vmem>>, vector<16x384xbf16>,
    %c240_50 = arith.constant 240 : index
    %c0_51 = arith.constant 0 : index
    %86 = vector.load %arg5[%c240_50, %c0_51] : memref<288x384xbf16, #tpu.memory_space<vmem>>, vector<16x384xbf16>
    %c272_52 = arith.constant 272 : index
    %c0_53 = arith.constant 0 : index
    %87 = vector.load %arg5[%c272_52, %c0_53] : memref<288x384xbf16, #tpu.memory_space<vmem>>, vector<16x384xbf16>
    tpu.vector_store %arg5[%c272_52, %c0_53], %86 {strides = array<i32>} : memref<288x384xbf16, #tpu.memory_space<vmem>>, vector<16x384xbf16>,
    %c0_54 = arith.constant 0 : index
    %c0_55 = arith.constant 0 : index
    %c0_56 = arith.constant 0 : index
    %88 = vector.load %arg1[%c0_54, %c0_55, %c0_56] : memref<1x256x128xf32, #tpu.memory_space<vmem>>, vector<1x256x128xf32>
    %89 = vector.shape_cast %88 : vector<1x256x128xf32> to vector<256x128xf32>
    %c0_57 = arith.constant 0 : index
    %c0_58 = arith.constant 0 : index
    %90 = vector.load %arg5[%c0_57, %c0_58] : memref<288x384xbf16, #tpu.memory_space<vmem>>, vector<256x384xbf16>
    %c0_59 = arith.constant 0 : index
    %c0_60 = arith.constant 0 : index
    %91 = vector.load %arg3[%c0_59, %c0_60] : memref<1152x128xbf16, #tpu.memory_space<vmem>>, vector<384x128xbf16>
    %cst_61 = arith.constant dense<0.000000e+00> : vector<256x128xf32>
    %92 = tpu.matmul %90, %91, %cst_61 {dimension_numbers = #tpu.dot_dimension_numbers<[1], [0], [0], [1], [0, 0, 1, 1], [], []>} : vector<256x384xbf16>, vector<384x128xbf16>, vector<256x128xf32> -> vector<256x128xf32>
    %c16_62 = arith.constant 16 : index
    %c0_63 = arith.constant 0 : index
    %93 = vector.load %arg5[%c16_62, %c0_63] : memref<288x384xbf16, #tpu.memory_space<vmem>>, vector<256x384xbf16>
    %c384_64 = arith.constant 384 : index
    %c0_65 = arith.constant 0 : index
    %94 = vector.load %arg3[%c384_64, %c0_65] : memref<1152x128xbf16, #tpu.memory_space<vmem>>, vector<384x128xbf16>
    %cst_66 = arith.constant dense<0.000000e+00> : vector<256x128xf32>
    %95 = tpu.matmul %93, %94, %cst_66 {dimension_numbers = #tpu.dot_dimension_numbers<[1], [0], [0], [1], [0, 0, 1, 1], [], []>} : vector<256x384xbf16>, vector<384x128xbf16>, vector<256x128xf32> -> vector<256x128xf32>
    %96 = arith.addf %92, %95 : vector<256x128xf32>
    %c32_67 = arith.constant 32 : index
    %c0_68 = arith.constant 0 : index
    %97 = vector.load %arg5[%c32_67, %c0_68] : memref<288x384xbf16, #tpu.memory_space<vmem>>, vector<256x384xbf16>
    %c768_69 = arith.constant 768 : index
    %c0_70 = arith.constant 0 : index
    %98 = vector.load %arg3[%c768_69, %c0_70] : memref<1152x128xbf16, #tpu.memory_space<vmem>>, vector<384x128xbf16>
    %cst_71 = arith.constant dense<0.000000e+00> : vector<256x128xf32>
    %99 = tpu.matmul %97, %98, %cst_71 {dimension_numbers = #tpu.dot_dimension_numbers<[1], [0], [0], [1], [0, 0, 1, 1], [], []>} : vector<256x384xbf16>, vector<384x128xbf16>, vector<256x128xf32> -> vector<256x128xf32>
    %100 = arith.addf %96, %99 : vector<256x128xf32>
    %cst_72 = arith.constant dense<0.000000e+00> : vector<128xf32>
    %101 = vector.multi_reduction <add>, %100, %cst_72 [0] : vector<256x128xf32> to vector<128xf32>
    %102 = vector.shape_cast %101 : vector<128xf32> to vector<1x128xf32>
    %cst_73 = arith.constant 3.906250e-03 : f32
    %103 = vector.broadcast %cst_73 : f32 to vector<1x128xf32>
    %104 = arith.mulf %102, %103 : vector<1x128xf32>
    %105 = vector.broadcast %104 : vector<1x128xf32> to vector<256x128xf32>
    %106 = arith.subf %100, %105 : vector<256x128xf32>
    %107 = arith.mulf %106, %106 : vector<256x128xf32>
    %cst_74 = arith.constant dense<0.000000e+00> : vector<128xf32>
    %108 = vector.multi_reduction <add>, %107, %cst_74 [0] : vector<256x128xf32> to vector<128xf32>
    %109 = vector.shape_cast %108 : vector<128xf32> to vector<1x128xf32>
    %cst_75 = arith.constant 3.906250e-03 : f32
    %110 = vector.broadcast %cst_75 : f32 to vector<1x128xf32>
    %111 = arith.mulf %109, %110 : vector<1x128xf32>
    %cst_76 = arith.constant 9.99999974E-6 : f32
    %112 = vector.broadcast %cst_76 : f32 to vector<1x128xf32>
    %113 = arith.addf %111, %112 : vector<1x128xf32>
    %114 = math.rsqrt %113 : vector<1x128xf32>
    %115 = vector.broadcast %114 : vector<1x128xf32> to vector<256x128xf32>
    %116 = arith.mulf %106, %115 : vector<256x128xf32>
    %117 = arith.addf %89, %116 : vector<256x128xf32>
    %c0_77 = arith.constant 0 : index
    %c0_78 = arith.constant 0 : index
    %c0_79 = arith.constant 0 : index
    %118 = vector.load %arg4[%c0_77, %c0_78, %c0_79] : memref<1x256x128xf32, #tpu.memory_space<vmem>>, vector<1x256x128xf32>
    %119 = vector.shape_cast %118 : vector<1x256x128xf32> to vector<256x128xf32>
    %120 = vector.shape_cast %117 : vector<256x128xf32> to vector<1x256x128xf32>
    tpu.vector_store %arg4[%c0_77, %c0_78, %c0_79], %120 {strides = array<i32>} : memref<1x256x128xf32, #tpu.memory_space<vmem>>, vector<1x256x128xf32>,
    return
  }
  func.func @transform_0(%arg0: i32) -> (i32, i32, i32) {
    %c0_i32 = arith.constant 0 : i32
    %c0_i32_0 = arith.constant 0 : i32
    %c0_i32_1 = arith.constant 0 : i32
    return %arg0, %c0_i32, %c0_i32_0 : i32, i32, i32
  }
  func.func @transform_1(%arg0: i32) -> (i32, i32) {
    %c0_i32 = arith.constant 0 : i32
    %c0_i32_0 = arith.constant 0 : i32
    %c0_i32_1 = arith.constant 0 : i32
    return %c0_i32, %c0_i32_0 : i32, i32
  }
  func.func @transform_2(%arg0: i32) -> (i32, i32) {
    %c0_i32 = arith.constant 0 : i32
    %c0_i32_0 = arith.constant 0 : i32
    %c0_i32_1 = arith.constant 0 : i32
    return %c0_i32, %c0_i32_0 : i32, i32
  }
  func.func @transform_3(%arg0: i32) -> (i32, i32, i32) {
    %c0_i32 = arith.constant 0 : i32
    %c0_i32_0 = arith.constant 0 : i32
    %c0_i32_1 = arith.constant 0 : i32
    return %arg0, %c0_i32, %c0_i32_0 : i32, i32, i32
  }
}

</mosaic_0001>

<llo_original>
// kernel: resblock_hess_pallas.1
$region0: #{resblock_hess_pallas.1}
  #allocation0 [shape = 'u32[]', space=smem, size = 0x4, offset = 0x4, fixed_abs, tag = 'smem constant byte address 0x4 - core index']
  #allocation1 [shape = 'u32[144,128]{1,0:T(1,128)}', space=vmem, size = 0x12000, scoped, tag = 'internal scratch']
  #allocation2 [shape = 'bf16[288,384]{1,0:T(16,128)(2,1)}', space=vmem, size = 0x36000, scoped, tag = 'scratch operand']
  %s0 = inlined_call_operand.vmem [shape: f32[2,256,128], index: 0, kind: input, shape index: {}]
  %s1 = inlined_call_operand.vmem [shape: bf16[1152,128], index: 1, kind: input, shape index: {}]
  %s2 = inlined_call_operand.vmem [shape: bf16[1152,128], index: 2, kind: input, shape index: {}]
  %s3 = inlined_call_operand.vmem [shape: f32[2,256,128], index: 3, kind: output, shape index: {}]
  %s4 = sld [smem:[#allocation0]]
  $region45: #{resblock_hess_pallas.1} parent=0
    _
  %s6 = ssub.s32 1, %s4
  %s7 = scalar_select 0, %s6, %s4
  loop: start=0, step=1, limit=4
  $region2: #{resblock_hess_pallas.1} parent=0 // loop_pre_header
    _
  $region3: #{resblock_hess_pallas.1} parent=0 // loop_header
    %s9 = sphi 0, %s13
    %p10 = scmp.ge.s32.totalorder %s9, 4
    %s19 = sphi 0, %s21
    %s22 = sphi 0, %s19
    %s23 = sphi 0, %s22
    %s39 = sphi 0, %s23
    %s43 = sphi 0, %s43
    %s45 = sphi 0, %s43
    %s46 = sphi 0, %s45
    %s60 = sphi 0, %s46
    %s64 = sphi 0, %s64
    %s66 = sphi 0, %s64
    %s67 = sphi 0, %s66
    %s81 = sphi 0, %s67
    %s87 = sphi 0, %s89
    %s90 = sphi 0, %s87
    %s91 = sphi 0, %s90
    %s107 = sphi 0, %s91
  $region4: #{resblock_hess_pallas.1} parent=0 // loop_header_branch
    %12 = sbr.rel (%p10) target = $region8
  $region5: #{resblock_hess_pallas.1} parent=0 // loop_body
    %s14 = ssub.s32 %s9, 1
    %s15 = ssub.s32 %s9, 2
    %s16 = sadd.s32 %s9, 1
    %s17 = ssub.s32 %s9, %s16
    %p18 = scmp.eq.s32.totalorder %s17, 0
    %s20 = sadd.s32 %s19, 1
    %s21 = scalar_select %p18, %s19, %s20
    %p24 = pneg %p18
    %p25 = scmp.eq.s32.totalorder %s9, 1
    %p26 = por %p24, %p25
    %p27 = scmp.ne.s32.totalorder %s19, %s22
    %p28 = scmp.eq.s32.totalorder %s9, 0
    %p29 = por %p27, %p28
    %p30 = scmp.ne.s32.totalorder %s19, %s22
    %p31 = scmp.eq.s32.totalorder %s14, 1
    %p32 = por %p30, %p31
    %p33 = scmp.ne.s32.totalorder %s22, %s23
    %p34 = scmp.eq.s32.totalorder %s14, 0
    %p35 = por %p33, %p34
    %p36 = scmp.ne.s32.totalorder %s22, %s23
    %p37 = scmp.eq.s32.totalorder %s15, 1
    %p38 = por %p36, %p37
    %p40 = scmp.ne.s32.totalorder %s23, %s39
    %p41 = scmp.eq.s32.totalorder %s15, 0
    %p42 = por %p40, %p41
    %s44 = sadd.s32 %s43, 1
    %p47 = scmp.eq.s32.totalorder %s9, 1
    %p48 = scmp.ne.s32.totalorder %s43, %s45
    %p49 = scmp.eq.s32.totalorder %s9, 0
    %p50 = por %p48, %p49
    %p51 = scmp.ne.s32.totalorder %s43, %s45
    %p52 = scmp.eq.s32.totalorder %s14, 1
    %p53 = por %p51, %p52
    %p54 = scmp.ne.s32.totalorder %s45, %s46
    %p55 = scmp.eq.s32.totalorder %s14, 0
    %p56 = por %p54, %p55
    %p57 = scmp.ne.s32.totalorder %s45, %s46
    %p58 = scmp.eq.s32.totalorder %s15, 1
    %p59 = por %p57, %p58
    %p61 = scmp.ne.s32.totalorder %s46, %s60
    %p62 = scmp.eq.s32.totalorder %s15, 0
    %p63 = por %p61, %p62
    %s65 = sadd.s32 %s64, 1
    %p68 = scmp.eq.s32.totalorder %s9, 1
    %p69 = scmp.ne.s32.totalorder %s64, %s66
    %p70 = scmp.eq.s32.totalorder %s9, 0
    %p71 = por %p69, %p70
    %p72 = scmp.ne.s32.totalorder %s64, %s66
    %p73 = scmp.eq.s32.totalorder %s14, 1
    %p74 = por %p72, %p73
    %p75 = scmp.ne.s32.totalorder %s66, %s67
    %p76 = scmp.eq.s32.totalorder %s14, 0
    %p77 = por %p75, %p76
    %p78 = scmp.ne.s32.totalorder %s66, %s67
    %p79 = scmp.eq.s32.totalorder %s15, 1
    %p80 = por %p78, %p79
    %p82 = scmp.ne.s32.totalorder %s67, %s81
    %p83 = scmp.eq.s32.totalorder %s15, 0
    %p84 = por %p82, %p83
    %s85 = ssub.s32 %s9, %s16
    %p86 = scmp.eq.s32.totalorder %s85, 0
    %s88 = sadd.s32 %s87, 1
    %s89 = scalar_select %p86, %s87, %s88
    %p92 = pneg %p86
    %p93 = scmp.eq.s32.totalorder %s9, 1
    %p94 = por %p92, %p93
    %p95 = scmp.ne.s32.totalorder %s87, %s90
    %p96 = scmp.eq.s32.totalorder %s9, 0
    %p97 = por %p95, %p96
    %p98 = scmp.ne.s32.totalorder %s87, %s90
    %p99 = scmp.eq.s32.totalorder %s14, 1
    %p100 = por %p98, %p99
    %p101 = scmp.ne.s32.totalorder %s90, %s91
    %p102 = scmp.eq.s32.totalorder %s14, 0
    %p103 = por %p101, %p102
    %p104 = scmp.ne.s32.totalorder %s90, %s91
    %p105 = scmp.eq.s32.totalorder %s15, 1
    %p106 = por %p104, %p105
    %p108 = scmp.ne.s32.totalorder %s91, %s107
    %p109 = scmp.eq.s32.totalorder %s15, 0
    %p110 = por %p108, %p109
    %p111 = scmp.le.s32.totalorder 1, %s9
    %p112 = scmp.lt.s32.totalorder %s9, 3
    %p113 = pnand %p111, %p112
    %p114 = pneg %p113
    // Predicated region
    $region9: #{resblock_hess_pallas.1} parent=5 // pred_check
      _
    $region10: #{resblock_hess_pallas.1} parent=5 // pred_check_branch
      %116 = sbr.rel (%p113) target = $region12
    $region11: #{resblock_hess_pallas.1} parent=5 // pred_region
      %s117 = ssub.s32 %s9, 1
      // Predicated region
      $region13: #{resblock_hess_pallas.1} parent=11 // pred_check
        %p118 = pneg %p56
      $region14: #{resblock_hess_pallas.1} parent=11 // pred_check_branch
        %120 = sbr.rel (%p118) target = $region16
      $region15: #{resblock_hess_pallas.1} parent=11 // pred_region
        _
      $region16: #{resblock_hess_pallas.1} parent=11 // pred_fallthru
        _
      // Predicated region
      $region17: #{resblock_hess_pallas.1} parent=11 // pred_check
        %p121 = pneg %p77
      $region18: #{resblock_hess_pallas.1} parent=11 // pred_check_branch
        %123 = sbr.rel (%p121) target = $region20
      $region19: #{resblock_hess_pallas.1} parent=11 // pred_region
        _
      $region20: #{resblock_hess_pallas.1} parent=11 // pred_fallthru
        _
    $region12: #{resblock_hess_pallas.1} parent=5 // pred_fallthru
      _
    %p124 = scmp.lt.s32.totalorder %s9, 2
    // Predicated region
    $region21: #{resblock_hess_pallas.1} parent=5 // pred_check
      %p125 = pneg %p124
    $region22: #{resblock_hess_pallas.1} parent=5 // pred_check_branch
      %127 = sbr.rel (%p125) target = $region24
    $region23: #{resblock_hess_pallas.1} parent=5 // pred_region
      // Predicated region
      $region25: #{resblock_hess_pallas.1} parent=23 // pred_check
        %p128 = pneg %p29
      $region26: #{resblock_hess_pallas.1} parent=23 // pred_check_branch
        %130 = sbr.rel (%p128) target = $region28
      $region27: #{resblock_hess_pallas.1} parent=23 // pred_region
        %p131 = scmp.lt.s32.totalorder %s9, 1
        %s132 = scalar_select %p131, %s9, 1
        %s133 = smul.addr %s132, 32
        %s134 = smul.addr %s133, 8
        %s135 = scalar_lea.vmem %s0, %s134
      $region28: #{resblock_hess_pallas.1} parent=23 // pred_fallthru
        _
    $region24: #{resblock_hess_pallas.1} parent=5 // pred_fallthru
      _
    %p136 = scmp.le.s32.totalorder 1, %s9
    %p137 = scmp.lt.s32.totalorder %s9, 3
    %p138 = pnand %p136, %p137
    %p139 = pneg %p138
    // Predicated region
    $region29: #{resblock_hess_pallas.1} parent=5 // pred_check
      _
    $region30: #{resblock_hess_pallas.1} parent=5 // pred_check_branch
      %141 = sbr.rel (%p138) target = $region32
    $region31: #{resblock_hess_pallas.1} parent=5 // pred_region
      %s142 = ssub.s32 %s9, 1
      %p143 = scmp.lt.s32.totalorder %s14, 1
      %s144 = scalar_select %p143, %s14, 1
      %s145 = smul.addr %s144, 32
      %s146 = smul.addr %s145, 8
      %s147 = scalar_lea.vmem %s0, %s146
      %p148 = pneg %p35
      %p149 = pneg %p32
      %p150 = pneg %p56
      %p151 = pneg %p53
      %p152 = pneg %p77
      %p153 = pneg %p74
      %p154 = pneg %p103
      %p155 = pneg %p100
      %p156 = scmp.lt.s32.totalorder %s14, 1
      %s157 = scalar_select %p156, %s14, 1
      %s158 = smul.addr %s157, 32
      %s159 = smul.addr %s158, 8
      %s160 = scalar_lea.vmem %s3, %s159
      %p161 = scmp.lt.s32.totalorder %s14, 1
      %s162 = scalar_select %p161, %s14, 1
      %s163 = smul.addr %s162, 32
      %s164 = smul.addr %s163, 8
      %s165 = scalar_lea.vmem %s0, %s164
      %p166 = scmp.lt.s32.totalorder %s14, 1
      %s167 = scalar_select %p166, %s14, 1
      %s168 = smul.addr %s167, 32
      %s169 = smul.addr %s168, 8
      %s170 = scalar_lea.vmem %s3, %s169
      %v174 = vlaneseq
      %v175 = vshrl.u32 %v174, 7
      %v176 = vadd.s32 %v175, 8
      %v177 = vadd.s32 %v175, 16
      %v178 = vadd.s32 %v175, 24
      %v179 = vadd.s32 %v175, 32
      %v180 = vadd.s32 %v175, 40
      %v181 = vadd.s32 %v175, 48
      %v182 = vadd.s32 %v175, 56
      %v183 = vadd.s32 %v175, 64
      %v184 = vadd.s32 %v175, 72
      %v185 = vadd.s32 %v175, 80
      %v186 = vadd.s32 %v175, 88
      %v187 = vadd.s32 %v175, 96
      %v188 = vadd.s32 %v175, 104
      %v189 = vadd.s32 %v175, 112
      %v190 = vadd.s32 %v175, 120
      %v191 = vadd.s32 %v175, 128
      %v192 = vadd.s32 %v175, 136
      %v193 = vadd.s32 %v175, 144
      %v194 = vadd.s32 %v175, 152
      %v195 = vadd.s32 %v175, 160
      %v196 = vadd.s32 %v175, 168
      %v197 = vadd.s32 %v175, 176
      %v198 = vadd.s32 %v175, 184
      %v199 = vadd.s32 %v175, 192
      %v200 = vadd.s32 %v175, 200
      %v201 = vadd.s32 %v175, 208
      %v202 = vadd.s32 %v175, 216
      %v203 = vadd.s32 %v175, 224
      %v204 = vadd.s32 %v175, 232
      %v205 = vadd.s32 %v175, 240
      %v206 = vadd.s32 %v175, 248
      %vm207 = vcmp.lt.s32.totalorder %v175, 0
      %v208 = vsub.s32 0, %v175
      %v209 = vsel %vm207, %v208, %v175
      %v210 = vshrl.u32 %v209, 4
      %v211 = vand.u32 %v209, 15
      %v212 = vsub.s32 0, %v211
      %v213 = vsel %vm207, %v212, %v211
      %vm214 = vcmp.lt.s32.totalorder %v176, 0
      %v215 = vsub.s32 0, %v176
      %v216 = vsel %vm214, %v215, %v176
      %v217 = vshrl.u32 %v216, 4
      %v218 = vand.u32 %v216, 15
      %v219 = vsub.s32 0, %v218
      %v220 = vsel %vm214, %v219, %v218
      %vm221 = vcmp.lt.s32.totalorder %v177, 0
      %v222 = vsub.s32 0, %v177
      %v223 = vsel %vm221, %v222, %v177
      %v224 = vshrl.u32 %v223, 4
      %v225 = vand.u32 %v223, 15
      %v226 = vsub.s32 0, %v225
      %v227 = vsel %vm221, %v226, %v225
      %vm228 = vcmp.lt.s32.totalorder %v178, 0
      %v229 = vsub.s32 0, %v178
      %v230 = vsel %vm228, %v229, %v178
      %v231 = vshrl.u32 %v230, 4
      %v232 = vand.u32 %v230, 15
      %v233 = vsub.s32 0, %v232
      %v234 = vsel %vm228, %v233, %v232
      %vm235 = vcmp.lt.s32.totalorder %v179, 0
      %v236 = vsub.s32 0, %v179
      %v237 = vsel %vm235, %v236, %v179
      %v238 = vshrl.u32 %v237, 4
      %v239 = vand.u32 %v237, 15
      %v240 = vsub.s32 0, %v239
      %v241 = vsel %vm235, %v240, %v239
      %vm242 = vcmp.lt.s32.totalorder %v180, 0
      %v243 = vsub.s32 0, %v180
      %v244 = vsel %vm242, %v243, %v180
      %v245 = vshrl.u32 %v244, 4
      %v246 = vand.u32 %v244, 15
      %v247 = vsub.s32 0, %v246
      %v248 = vsel %vm242, %v247, %v246
      %vm249 = vcmp.lt.s32.totalorder %v181, 0
      %v250 = vsub.s32 0, %v181
      %v251 = vsel %vm249, %v250, %v181
      %v252 = vshrl.u32 %v251, 4
      %v253 = vand.u32 %v251, 15
      %v254 = vsub.s32 0, %v253
      %v255 = vsel %vm249, %v254, %v253
      %vm256 = vcmp.lt.s32.totalorder %v182, 0
      %v257 = vsub.s32 0, %v182
      %v258 = vsel %vm256, %v257, %v182
      %v259 = vshrl.u32 %v258, 4
      %v260 = vand.u32 %v258, 15
      %v261 = vsub.s32 0, %v260
      %v262 = vsel %vm256, %v261, %v260
      %vm263 = vcmp.lt.s32.totalorder %v183, 0
      %v264 = vsub.s32 0, %v183
      %v265 = vsel %vm263, %v264, %v183
      %v266 = vshrl.u32 %v265, 4
      %v267 = vand.u32 %v265, 15
      %v268 = vsub.s32 0, %v267
      %v269 = vsel %vm263, %v268, %v267
      %vm270 = vcmp.lt.s32.totalorder %v184, 0
      %v271 = vsub.s32 0, %v184
      %v272 = vsel %vm270, %v271, %v184
      %v273 = vshrl.u32 %v272, 4
      %v274 = vand.u32 %v272, 15
      %v275 = vsub.s32 0, %v274
      %v276 = vsel %vm270, %v275, %v274
      %vm277 = vcmp.lt.s32.totalorder %v185, 0
      %v278 = vsub.s32 0, %v185
      %v279 = vsel %vm277, %v278, %v185
      %v280 = vshrl.u32 %v279, 4
      %v281 = vand.u32 %v279, 15
      %v282 = vsub.s32 0, %v281
      %v283 = vsel %vm277, %v282, %v281
      %vm284 = vcmp.lt.s32.totalorder %v186, 0
      %v285 = vsub.s32 0, %v186
      %v286 = vsel %vm284, %v285, %v186
      %v287 = vshrl.u32 %v286, 4
      %v288 = vand.u32 %v286, 15
      %v289 = vsub.s32 0, %v288
      %v290 = vsel %vm284, %v289, %v288
      %vm291 = vcmp.lt.s32.totalorder %v187, 0
      %v292 = vsub.s32 0, %v187
      %v293 = vsel %vm291, %v292, %v187
      %v294 = vshrl.u32 %v293, 4
      %v295 = vand.u32 %v293, 15
      %v296 = vsub.s32 0, %v295
      %v297 = vsel %vm291, %v296, %v295
      %vm298 = vcmp.lt.s32.totalorder %v188, 0
      %v299 = vsub.s32 0, %v188
      %v300 = vsel %vm298, %v299, %v188
      %v301 = vshrl.u32 %v300, 4
      %v302 = vand.u32 %v300, 15
      %v303 = vsub.s32 0, %v302
      %v304 = vsel %vm298, %v303, %v302
      %vm305 = vcmp.lt.s32.totalorder %v189, 0
      %v306 = vsub.s32 0, %v189
      %v307 = vsel %vm305, %v306, %v189
      %v308 = vshrl.u32 %v307, 4
      %v309 = vand.u32 %v307, 15
      %v310 = vsub.s32 0, %v309
      %v311 = vsel %vm305, %v310, %v309
      %vm312 = vcmp.lt.s32.totalorder %v190, 0
      %v313 = vsub.s32 0, %v190
      %v314 = vsel %vm312, %v313, %v190
      %v315 = vshrl.u32 %v314, 4
      %v316 = vand.u32 %v314, 15
      %v317 = vsub.s32 0, %v316
      %v318 = vsel %vm312, %v317, %v316
      %vm319 = vcmp.lt.s32.totalorder %v191, 0
      %v320 = vsub.s32 0, %v191
      %v321 = vsel %vm319, %v320, %v191
      %v322 = vshrl.u32 %v321, 4
      %v323 = vand.u32 %v321, 15
      %v324 = vsub.s32 0, %v323
      %v325 = vsel %vm319, %v324, %v323
      %vm326 = vcmp.lt.s32.totalorder %v192, 0
      %v327 = vsub.s32 0, %v192
      %v328 = vsel %vm326, %v327, %v192
      %v329 = vshrl.u32 %v328, 4
      %v330 = vand.u32 %v328, 15
      %v331 = vsub.s32 0, %v330
      %v332 = vsel %vm326, %v331, %v330
      %vm333 = vcmp.lt.s32.totalorder %v193, 0
      %v334 = vsub.s32 0, %v193
      %v335 = vsel %vm333, %v334, %v193
      %v336 = vshrl.u32 %v335, 4
      %v337 = vand.u32 %v335, 15
      %v338 = vsub.s32 0, %v337
      %v339 = vsel %vm333, %v338, %v337
      %vm340 = vcmp.lt.s32.totalorder %v194, 0
      %v341 = vsub.s32 0, %v194
      %v342 = vsel %vm340, %v341, %v194
      %v343 = vshrl.u32 %v342, 4
      %v344 = vand.u32 %v342, 15
      %v345 = vsub.s32 0, %v344
      %v346 = vsel %vm340, %v345, %v344
      %vm347 = vcmp.lt.s32.totalorder %v195, 0
      %v348 = vsub.s32 0, %v195
      %v349 = vsel %vm347, %v348, %v195
      %v350 = vshrl.u32 %v349, 4
      %v351 = vand.u32 %v349, 15
      %v352 = vsub.s32 0, %v351
      %v353 = vsel %vm347, %v352, %v351
      %vm354 = vcmp.lt.s32.totalorder %v196, 0
      %v355 = vsub.s32 0, %v196
      %v356 = vsel %vm354, %v355, %v196
      %v357 = vshrl.u32 %v356, 4
      %v358 = vand.u32 %v356, 15
      %v359 = vsub.s32 0, %v358
      %v360 = vsel %vm354, %v359, %v358
      %vm361 = vcmp.lt.s32.totalorder %v197, 0
      %v362 = vsub.s32 0, %v197
      %v363 = vsel %vm361, %v362, %v197
      %v364 = vshrl.u32 %v363, 4
      %v365 = vand.u32 %v363, 15
      %v366 = vsub.s32 0, %v365
      %v367 = vsel %vm361, %v366, %v365
      %vm368 = vcmp.lt.s32.totalorder %v198, 0
      %v369 = vsub.s32 0, %v198
      %v370 = vsel %vm368, %v369, %v198
      %v371 = vshrl.u32 %v370, 4
      %v372 = vand.u32 %v370, 15
      %v373 = vsub.s32 0, %v372
      %v374 = vsel %vm368, %v373, %v372
      %vm375 = vcmp.lt.s32.totalorder %v199, 0
      %v376 = vsub.s32 0, %v199
      %v377 = vsel %vm375, %v376, %v199
      %v378 = vshrl.u32 %v377, 4
      %v379 = vand.u32 %v377, 15
      %v380 = vsub.s32 0, %v379
      %v381 = vsel %vm375, %v380, %v379
      %vm382 = vcmp.lt.s32.totalorder %v200, 0
      %v383 = vsub.s32 0, %v200
      %v384 = vsel %vm382, %v383, %v200
      %v385 = vshrl.u32 %v384, 4
      %v386 = vand.u32 %v384, 15
      %v387 = vsub.s32 0, %v386
      %v388 = vsel %vm382, %v387, %v386
      %vm389 = vcmp.lt.s32.totalorder %v201, 0
      %v390 = vsub.s32 0, %v201
      %v391 = vsel %vm389, %v390, %v201
      %v392 = vshrl.u32 %v391, 4
      %v393 = vand.u32 %v391, 15
      %v394 = vsub.s32 0, %v393
      %v395 = vsel %vm389, %v394, %v393
      %vm396 = vcmp.lt.s32.totalorder %v202, 0
      %v397 = vsub.s32 0, %v202
      %v398 = vsel %vm396, %v397, %v202
      %v399 = vshrl.u32 %v398, 4
      %v400 = vand.u32 %v398, 15
      %v401 = vsub.s32 0, %v400
      %v402 = vsel %vm396, %v401, %v400
      %vm403 = vcmp.lt.s32.totalorder %v203, 0
      %v404 = vsub.s32 0, %v203
      %v405 = vsel %vm403, %v404, %v203
      %v406 = vshrl.u32 %v405, 4
      %v407 = vand.u32 %v405, 15
      %v408 = vsub.s32 0, %v407
      %v409 = vsel %vm403, %v408, %v407
      %vm410 = vcmp.lt.s32.totalorder %v204, 0
      %v411 = vsub.s32 0, %v204
      %v412 = vsel %vm410, %v411, %v204
      %v413 = vshrl.u32 %v412, 4
      %v414 = vand.u32 %v412, 15
      %v415 = vsub.s32 0, %v414
      %v416 = vsel %vm410, %v415, %v414
      %vm417 = vcmp.lt.s32.totalorder %v205, 0
      %v418 = vsub.s32 0, %v205
      %v419 = vsel %vm417, %v418, %v205
      %v420 = vshrl.u32 %v419, 4
      %v421 = vand.u32 %v419, 15
      %v422 = vsub.s32 0, %v421
      %v423 = vsel %vm417, %v422, %v421
      %vm424 = vcmp.lt.s32.totalorder %v206, 0
      %v425 = vsub.s32 0, %v206
      %v426 = vsel %vm424, %v425, %v206
      %v427 = vshrl.u32 %v426, 4
      %v428 = vand.u32 %v426, 15
      %v429 = vsub.s32 0, %v428
      %v430 = vsel %vm424, %v429, %v428
      %vm431 = vcmp.ne.s32.totalorder %v213, 0
      %vm432 = vcmp.ne.s32.totalorder %v220, 0
      %vm433 = vcmp.ne.s32.totalorder %v227, 0
      %vm434 = vcmp.ne.s32.totalorder %v234, 0
      %vm435 = vcmp.ne.s32.totalorder %v241, 0
      %vm436 = vcmp.ne.s32.totalorder %v248, 0
      %vm437 = vcmp.ne.s32.totalorder %v255, 0
      %vm438 = vcmp.ne.s32.totalorder %v262, 0
      %vm439 = vcmp.ne.s32.totalorder %v269, 0
      %vm440 = vcmp.ne.s32.totalorder %v276, 0
      %vm441 = vcmp.ne.s32.totalorder %v283, 0
      %vm442 = vcmp.ne.s32.totalorder %v290, 0
      %vm443 = vcmp.ne.s32.totalorder %v297, 0
      %vm444 = vcmp.ne.s32.totalorder %v304, 0
      %vm445 = vcmp.ne.s32.totalorder %v311, 0
      %vm446 = vcmp.ne.s32.totalorder %v318, 0
      %vm447 = vcmp.ne.s32.totalorder %v325, 0
      %vm448 = vcmp.ne.s32.totalorder %v332, 0
      %vm449 = vcmp.ne.s32.totalorder %v339, 0
      %vm450 = vcmp.ne.s32.totalorder %v346, 0
      %vm451 = vcmp.ne.s32.totalorder %v353, 0
      %vm452 = vcmp.ne.s32.totalorder %v360, 0
      %vm453 = vcmp.ne.s32.totalorder %v367, 0
      %vm454 = vcmp.ne.s32.totalorder %v374, 0
      %vm455 = vcmp.ne.s32.totalorder %v381, 0
      %vm456 = vcmp.ne.s32.totalorder %v388, 0
      %vm457 = vcmp.ne.s32.totalorder %v395, 0
      %vm458 = vcmp.ne.s32.totalorder %v402, 0
      %vm459 = vcmp.ne.s32.totalorder %v409, 0
      %vm460 = vcmp.ne.s32.totalorder %v416, 0
      %vm461 = vcmp.ne.s32.totalorder %v423, 0
      %vm462 = vcmp.ne.s32.totalorder %v430, 0
      %vm463 = vcmp.lt.s32.totalorder %v213, 0
      %vm464 = vcmp.lt.s32.totalorder %v220, 0
      %vm465 = vcmp.lt.s32.totalorder %v227, 0
      %vm466 = vcmp.lt.s32.totalorder %v234, 0
      %vm467 = vcmp.lt.s32.totalorder %v241, 0
      %vm468 = vcmp.lt.s32.totalorder %v248, 0
      %vm469 = vcmp.lt.s32.totalorder %v255, 0
      %vm470 = vcmp.lt.s32.totalorder %v262, 0
      %vm471 = vcmp.lt.s32.totalorder %v269, 0
      %vm472 = vcmp.lt.s32.totalorder %v276, 0
      %vm473 = vcmp.lt.s32.totalorder %v283, 0
      %vm474 = vcmp.lt.s32.totalorder %v290, 0
      %vm475 = vcmp.lt.s32.totalorder %v297, 0
      %vm476 = vcmp.lt.s32.totalorder %v304, 0
      %vm477 = vcmp.lt.s32.totalorder %v311, 0
      %vm478 = vcmp.lt.s32.totalorder %v318, 0
      %vm479 = vcmp.lt.s32.totalorder %v325, 0
      %vm480 = vcmp.lt.s32.totalorder %v332, 0
      %vm481 = vcmp.lt.s32.totalorder %v339, 0
      %vm482 = vcmp.lt.s32.totalorder %v346, 0
      %vm483 = vcmp.lt.s32.totalorder %v353, 0
      %vm484 = vcmp.lt.s32.totalorder %v360, 0
      %vm485 = vcmp.lt.s32.totalorder %v367, 0
      %vm486 = vcmp.lt.s32.totalorder %v374, 0
      %vm487 = vcmp.lt.s32.totalorder %v381, 0
      %vm488 = vcmp.lt.s32.totalorder %v388, 0
      %vm489 = vcmp.lt.s32.totalorder %v395, 0
      %vm490 = vcmp.lt.s32.totalorder %v402, 0
      %vm491 = vcmp.lt.s32.totalorder %v409, 0
      %vm492 = vcmp.lt.s32.totalorder %v416, 0
      %vm493 = vcmp.lt.s32.totalorder %v423, 0
      %vm494 = vcmp.lt.s32.totalorder %v430, 0
      %vm495 = vmand %vm463, %vm431
      %vm496 = vmand %vm464, %vm432
      %vm497 = vmand %vm465, %vm433
      %vm498 = vmand %vm466, %vm434
      %vm499 = vmand %vm467, %vm435
      %vm500 = vmand %vm468, %vm436
      %vm501 = vmand %vm469, %vm437
      %vm502 = vmand %vm470, %vm438
      %vm503 = vmand %vm471, %vm439
      %vm504 = vmand %vm472, %vm440
      %vm505 = vmand %vm473, %vm441
      %vm506 = vmand %vm474, %vm442
      %vm507 = vmand %vm475, %vm443
      %vm508 = vmand %vm476, %vm444
      %vm509 = vmand %vm477, %vm445
      %vm510 = vmand %vm478, %vm446
      %vm511 = vmand %vm479, %vm447
      %vm512 = vmand %vm480, %vm448
      %vm513 = vmand %vm481, %vm449
      %vm514 = vmand %vm482, %vm450
      %vm515 = vmand %vm483, %vm451
      %vm516 = vmand %vm484, %vm452
      %vm517 = vmand %vm485, %vm453
      %vm518 = vmand %vm486, %vm454
      %vm519 = vmand %vm487, %vm455
      %vm520 = vmand %vm488, %vm456
      %vm521 = vmand %vm489, %vm457
      %vm522 = vmand %vm490, %vm458
      %vm523 = vmand %vm491, %vm459
      %vm524 = vmand %vm492, %vm460
      %vm525 = vmand %vm493, %vm461
      %vm526 = vmand %vm494, %vm462
      %v527 = vadd.s32 %v213, 16
      %v528 = vadd.s32 %v220, 16
      %v529 = vadd.s32 %v227, 16
      %v530 = vadd.s32 %v234, 16
      %v531 = vadd.s32 %v241, 16
      %v532 = vadd.s32 %v248, 16
      %v533 = vadd.s32 %v255, 16
      %v534 = vadd.s32 %v262, 16
      %v535 = vadd.s32 %v269, 16
      %v536 = vadd.s32 %v276, 16
      %v537 = vadd.s32 %v283, 16
      %v538 = vadd.s32 %v290, 16
      %v539 = vadd.s32 %v297, 16
      %v540 = vadd.s32 %v304, 16
      %v541 = vadd.s32 %v311, 16
      %v542 = vadd.s32 %v318, 16
      %v543 = vadd.s32 %v325, 16
      %v544 = vadd.s32 %v332, 16
      %v545 = vadd.s32 %v339, 16
      %v546 = vadd.s32 %v346, 16
      %v547 = vadd.s32 %v353, 16
      %v548 = vadd.s32 %v360, 16
      %v549 = vadd.s32 %v367, 16
      %v550 = vadd.s32 %v374, 16
      %v551 = vadd.s32 %v381, 16
      %v552 = vadd.s32 %v388, 16
      %v553 = vadd.s32 %v395, 16
      %v554 = vadd.s32 %v402, 16
      %v555 = vadd.s32 %v409, 16
      %v556 = vadd.s32 %v416, 16
      %v557 = vadd.s32 %v423, 16
      %v558 = vadd.s32 %v430, 16
      %v559 = vsel %vm495, %v527, %v213
      %v560 = vsel %vm496, %v528, %v220
      %v561 = vsel %vm497, %v529, %v227
      %v562 = vsel %vm498, %v530, %v234
      %v563 = vsel %vm499, %v531, %v241
      %v564 = vsel %vm500, %v532, %v248
      %v565 = vsel %vm501, %v533, %v255
      %v566 = vsel %vm502, %v534, %v262
      %v567 = vsel %vm503, %v535, %v269
      %v568 = vsel %vm504, %v536, %v276
      %v569 = vsel %vm505, %v537, %v283
      %v570 = vsel %vm506, %v538, %v290
      %v571 = vsel %vm507, %v539, %v297
      %v572 = vsel %vm508, %v540, %v304
      %v573 = vsel %vm509, %v541, %v311
      %v574 = vsel %vm510, %v542, %v318
      %v575 = vsel %vm511, %v543, %v325
      %v576 = vsel %vm512, %v544, %v332
      %v577 = vsel %vm513, %v545, %v339
      %v578 = vsel %vm514, %v546, %v346
      %v579 = vsel %vm515, %v547, %v353
      %v580 = vsel %vm516, %v548, %v360
      %v581 = vsel %vm517, %v549, %v367
      %v582 = vsel %vm518, %v550, %v374
      %v583 = vsel %vm519, %v551, %v381
      %v584 = vsel %vm520, %v552, %v388
      %v585 = vsel %vm521, %v553, %v395
      %v586 = vsel %vm522, %v554, %v402
      %v587 = vsel %vm523, %v555, %v409
      %v588 = vsel %vm524, %v556, %v416
      %v589 = vsel %vm525, %v557, %v423
      %v590 = vsel %vm526, %v558, %v430
      %v591 = vld [vmem:[%s165] sm:$0xff]
      %v592 = vld [vmem:[%s165 + $0x8] sm:$0xff]
      %v593 = vld [vmem:[%s165 + $0x10] sm:$0xff]
      %v594 = vld [vmem:[%s165 + $0x18] sm:$0xff]
      %v595 = vld [vmem:[%s165 + $0x20] sm:$0xff]
      %v596 = vld [vmem:[%s165 + $0x28] sm:$0xff]
      %v597 = vld [vmem:[%s165 + $0x30] sm:$0xff]
      %v598 = vld [vmem:[%s165 + $0x38] sm:$0xff]
      %v599 = vld [vmem:[%s165 + $0x40] sm:$0xff]
      %v600 = vld [vmem:[%s165 + $0x48] sm:$0xff]
      %v601 = vld [vmem:[%s165 + $0x50] sm:$0xff]
      %v602 = vld [vmem:[%s165 + $0x58] sm:$0xff]
      %v603 = vld [vmem:[%s165 + $0x60] sm:$0xff]
      %v604 = vld [vmem:[%s165 + $0x68] sm:$0xff]
      %v605 = vld [vmem:[%s165 + $0x70] sm:$0xff]
      %v606 = vld [vmem:[%s165 + $0x78] sm:$0xff]
      %v607 = vld [vmem:[%s165 + $0x80] sm:$0xff]
      %v608 = vld [vmem:[%s165 + $0x88] sm:$0xff]
      %v609 = vld [vmem:[%s165 + $0x90] sm:$0xff]
      %v610 = vld [vmem:[%s165 + $0x98] sm:$0xff]
      %v611 = vld [vmem:[%s165 + $0xa0] sm:$0xff]
      %v612 = vld [vmem:[%s165 + $0xa8] sm:$0xff]
      %v613 = vld [vmem:[%s165 + $0xb0] sm:$0xff]
      %v614 = vld [vmem:[%s165 + $0xb8] sm:$0xff]
      %v615 = vld [vmem:[%s165 + $0xc0] sm:$0xff]
      %v616 = vld [vmem:[%s165 + $0xc8] sm:$0xff]
      %v617 = vld [vmem:[%s165 + $0xd0] sm:$0xff]
      %v618 = vld [vmem:[%s165 + $0xd8] sm:$0xff]
      %v619 = vld [vmem:[%s165 + $0xe0] sm:$0xff]
      %v620 = vld [vmem:[%s165 + $0xe8] sm:$0xff]
      %v621 = vld [vmem:[%s165 + $0xf0] sm:$0xff]
      %v622 = vld [vmem:[%s165 + $0xf8] sm:$0xff]
      %v623 = vpack.c.bf16 %v592, %v591
      %v624 = vpack.c.bf16 %v594, %v593
      %v625 = vpack.c.bf16 %v596, %v595
      %v626 = vpack.c.bf16 %v598, %v597
      %v627 = vpack.c.bf16 %v600, %v599
      %v628 = vpack.c.bf16 %v602, %v601
      %v629 = vpack.c.bf16 %v604, %v603
      %v630 = vpack.c.bf16 %v606, %v605
      %v631 = vpack.c.bf16 %v608, %v607
      %v632 = vpack.c.bf16 %v610, %v609
      %v633 = vpack.c.bf16 %v612, %v611
      %v634 = vpack.c.bf16 %v614, %v613
      %v635 = vpack.c.bf16 %v616, %v615
      %v636 = vpack.c.bf16 %v618, %v617
      %v637 = vpack.c.bf16 %v620, %v619
      %v638 = vpack.c.bf16 %v622, %v621
      %639 = vst [vmem:[#allocation2 + $0x20] sm:$0xff] %v623
      %640 = vst [vmem:[#allocation2 + $0x38] sm:$0xff] %v624
      %641 = vst [vmem:[#allocation2 + $0x50] sm:$0xff] %v625
      %642 = vst [vmem:[#allocation2 + $0x68] sm:$0xff] %v626
      %643 = vst [vmem:[#allocation2 + $0x80] sm:$0xff] %v627
      %644 = vst [vmem:[#allocation2 + $0x98] sm:$0xff] %v628
      %645 = vst [vmem:[#allocation2 + $0xb0] sm:$0xff] %v629
      %646 = vst [vmem:[#allocation2 + $0xc8] sm:$0xff] %v630
      %647 = vst [vmem:[#allocation2 + $0xe0] sm:$0xff] %v631
      %648 = vst [vmem:[#allocation2 + $0xf8] sm:$0xff] %v632
      %649 = vst [vmem:[#allocation2 + $0x110] sm:$0xff] %v633
      %650 = vst [vmem:[#allocation2 + $0x128] sm:$0xff] %v634
      %651 = vst [vmem:[#allocation2 + $0x140] sm:$0xff] %v635
      %652 = vst [vmem:[#allocation2 + $0x158] sm:$0xff] %v636
      %653 = vst [vmem:[#allocation2 + $0x170] sm:$0xff] %v637
      %654 = vst [vmem:[#allocation2 + $0x188] sm:$0xff] %v638
      %v655 = vld [vmem:[#allocation2 + $0x8] sm:$0x80]
      %v656 = vld [vmem:[#allocation2 + $0x20] sm:$0xff]
      %v657 = vld [vmem:[#allocation2 + $0x38] sm:$0xff]
      %v658 = vld [vmem:[#allocation2 + $0x50] sm:$0xff]
      %v659 = vld [vmem:[#allocation2 + $0x68] sm:$0xff]
      %v660 = vld [vmem:[#allocation2 + $0x80] sm:$0xff]
      %v661 = vld [vmem:[#allocation2 + $0x98] sm:$0xff]
      %v662 = vld [vmem:[#allocation2 + $0xb0] sm:$0xff]
      %v663 = vld [vmem:[#allocation2 + $0xc8] sm:$0xff]
      %v664 = vld [vmem:[#allocation2 + $0xe0] sm:$0xff]
      %v665 = vld [vmem:[#allocation2 + $0xf8] sm:$0xff]
      %v666 = vld [vmem:[#allocation2 + $0x110] sm:$0xff]
      %v667 = vld [vmem:[#allocation2 + $0x128] sm:$0xff]
      %v668 = vld [vmem:[#allocation2 + $0x140] sm:$0xff]
      %v669 = vld [vmem:[#allocation2 + $0x158] sm:$0xff]
      %v670 = vld [vmem:[#allocation2 + $0x170] sm:$0xff]
      %v671 = vld [vmem:[#allocation2 + $0x188] sm:$0xff]
      %v672 = vld [vmem:[#allocation2 + $0x1a0] sm:$0x1]
      %vm673 = vcmp.eq.s32.totalorder %v559, 0
      %vm674 = vcmp.eq.s32.totalorder %v560, 0
      %vm675 = vcmp.eq.s32.totalorder %v561, 0
      %vm676 = vcmp.eq.s32.totalorder %v562, 0
      %vm677 = vcmp.eq.s32.totalorder %v563, 0
      %vm678 = vcmp.eq.s32.totalorder %v564, 0
      %vm679 = vcmp.eq.s32.totalorder %v565, 0
      %vm680 = vcmp.eq.s32.totalorder %v566, 0
      %vm681 = vcmp.eq.s32.totalorder %v567, 0
      %vm682 = vcmp.eq.s32.totalorder %v568, 0
      %vm683 = vcmp.eq.s32.totalorder %v569, 0
      %vm684 = vcmp.eq.s32.totalorder %v570, 0
      %vm685 = vcmp.eq.s32.totalorder %v571, 0
      %vm686 = vcmp.eq.s32.totalorder %v572, 0
      %vm687 = vcmp.eq.s32.totalorder %v573, 0
      %vm688 = vcmp.eq.s32.totalorder %v574, 0
      %vm689 = vcmp.eq.s32.totalorder %v575, 0
      %vm690 = vcmp.eq.s32.totalorder %v576, 0
      %vm691 = vcmp.eq.s32.totalorder %v577, 0
      %vm692 = vcmp.eq.s32.totalorder %v578, 0
      %vm693 = vcmp.eq.s32.totalorder %v579, 0
      %vm694 = vcmp.eq.s32.totalorder %v580, 0
      %vm695 = vcmp.eq.s32.totalorder %v581, 0
      %vm696 = vcmp.eq.s32.totalorder %v582, 0
      %vm697 = vcmp.eq.s32.totalorder %v583, 0
      %vm698 = vcmp.eq.s32.totalorder %v584, 0
      %vm699 = vcmp.eq.s32.totalorder %v585, 0
      %vm700 = vcmp.eq.s32.totalorder %v586, 0
      %vm701 = vcmp.eq.s32.totalorder %v587, 0
      %vm702 = vcmp.eq.s32.totalorder %v588, 0
      %vm703 = vcmp.eq.s32.totalorder %v589, 0
      %vm704 = vcmp.eq.s32.totalorder %v590, 0
      %v705 = vsel %vm673, 1, 0
      %v706 = vsel %vm674, 1, 0
      %v707 = vsel %vm675, 1, 0
      %v708 = vsel %vm676, 1, 0
      %v709 = vsel %vm677, 1, 0
      %v710 = vsel %vm678, 1, 0
      %v711 = vsel %vm679, 1, 0
      %v712 = vsel %vm680, 1, 0
      %v713 = vsel %vm681, 1, 0
      %v714 = vsel %vm682, 1, 0
      %v715 = vsel %vm683, 1, 0
      %v716 = vsel %vm684, 1, 0
      %v717 = vsel %vm685, 1, 0
      %v718 = vsel %vm686, 1, 0
      %v719 = vsel %vm687, 1, 0
      %v720 = vsel %vm688, 1, 0
      %v721 = vsel %vm689, 1, 0
      %v722 = vsel %vm690, 1, 0
      %v723 = vsel %vm691, 1, 0
      %v724 = vsel %vm692, 1, 0
      %v725 = vsel %vm693, 1, 0
      %v726 = vsel %vm694, 1, 0
      %v727 = vsel %vm695, 1, 0
      %v728 = vsel %vm696, 1, 0
      %v729 = vsel %vm697, 1, 0
      %v730 = vsel %vm698, 1, 0
      %v731 = vsel %vm699, 1, 0
      %v732 = vsel %vm700, 1, 0
      %v733 = vsel %vm701, 1, 0
      %v734 = vsel %vm702, 1, 0
      %v735 = vsel %vm703, 1, 0
      %v736 = vsel %vm704, 1, 0
      %vm737 = vcmp.eq.s32.totalorder %v705, 1
      %vm738 = vcmp.eq.s32.totalorder %v706, 1
      %vm739 = vcmp.eq.s32.totalorder %v707, 1
      %vm740 = vcmp.eq.s32.totalorder %v708, 1
      %vm741 = vcmp.eq.s32.totalorder %v709, 1
      %vm742 = vcmp.eq.s32.totalorder %v710, 1
      %vm743 = vcmp.eq.s32.totalorder %v711, 1
      %vm744 = vcmp.eq.s32.totalorder %v712, 1
      %vm745 = vcmp.eq.s32.totalorder %v713, 1
      %vm746 = vcmp.eq.s32.totalorder %v714, 1
      %vm747 = vcmp.eq.s32.totalorder %v715, 1
      %vm748 = vcmp.eq.s32.totalorder %v716, 1
      %vm749 = vcmp.eq.s32.totalorder %v717, 1
      %vm750 = vcmp.eq.s32.totalorder %v718, 1
      %vm751 = vcmp.eq.s32.totalorder %v719, 1
      %vm752 = vcmp.eq.s32.totalorder %v720, 1
      %vm753 = vcmp.eq.s32.totalorder %v721, 1
      %vm754 = vcmp.eq.s32.totalorder %v722, 1
      %vm755 = vcmp.eq.s32.totalorder %v723, 1
      %vm756 = vcmp.eq.s32.totalorder %v724, 1
      %vm757 = vcmp.eq.s32.totalorder %v725, 1
      %vm758 = vcmp.eq.s32.totalorder %v726, 1
      %vm759 = vcmp.eq.s32.totalorder %v727, 1
      %vm760 = vcmp.eq.s32.totalorder %v728, 1
      %vm761 = vcmp.eq.s32.totalorder %v729, 1
      %vm762 = vcmp.eq.s32.totalorder %v730, 1
      %vm763 = vcmp.eq.s32.totalorder %v731, 1
      %vm764 = vcmp.eq.s32.totalorder %v732, 1
      %vm765 = vcmp.eq.s32.totalorder %v733, 1
      %vm766 = vcmp.eq.s32.totalorder %v734, 1
      %vm767 = vcmp.eq.s32.totalorder %v735, 1
      %vm768 = vcmp.eq.s32.totalorder %v736, 1
      %vm769 = vmpackc.low %vm737, %vm737
      %vm770 = vmpackc.low %vm738, %vm738
      %vm771 = vmpackc.low %vm739, %vm739
      %vm772 = vmpackc.low %vm740, %vm740
      %vm773 = vmpackc.low %vm741, %vm741
      %vm774 = vmpackc.low %vm742, %vm742
      %vm775 = vmpackc.low %vm743, %vm743
      %vm776 = vmpackc.low %vm744, %vm744
      %vm777 = vmpackc.low %vm745, %vm745
      %vm778 = vmpackc.low %vm746, %vm746
      %vm779 = vmpackc.low %vm747, %vm747
      %vm780 = vmpackc.low %vm748, %vm748
      %vm781 = vmpackc.low %vm749, %vm749
      %vm782 = vmpackc.low %vm750, %vm750
      %vm783 = vmpackc.low %vm751, %vm751
      %vm784 = vmpackc.low %vm752, %vm752
      %vm785 = vmpackc.low %vm753, %vm753
      %vm786 = vmpackc.low %vm754, %vm754
      %vm787 = vmpackc.low %vm755, %vm755
      %vm788 = vmpackc.low %vm756, %vm756
      %vm789 = vmpackc.low %vm757, %vm757
      %vm790 = vmpackc.low %vm758, %vm758
      %vm791 = vmpackc.low %vm759, %vm759
      %vm792 = vmpackc.low %vm760, %vm760
      %vm793 = vmpackc.low %vm761, %vm761
      %vm794 = vmpackc.low %vm762, %vm762
      %vm795 = vmpackc.low %vm763, %vm763
      %vm796 = vmpackc.low %vm764, %vm764
      %vm797 = vmpackc.low %vm765, %vm765
      %vm798 = vmpackc.low %vm766, %vm766
      %vm799 = vmpackc.low %vm767, %vm767
      %vm800 = vmpackc.low %vm768, %vm768
      %v801 = vsel %vm769, 65537, 0
      %v802 = vsel %vm770, 65537, 0
      %v803 = vsel %vm771, 65537, 0
      %v804 = vsel %vm772, 65537, 0
      %v805 = vsel %vm773, 65537, 0
      %v806 = vsel %vm774, 65537, 0
      %v807 = vsel %vm775, 65537, 0
      %v808 = vsel %vm776, 65537, 0
      %v809 = vsel %vm777, 65537, 0
      %v810 = vsel %vm778, 65537, 0
      %v811 = vsel %vm779, 65537, 0
      %v812 = vsel %vm780, 65537, 0
      %v813 = vsel %vm781, 65537, 0
      %v814 = vsel %vm782, 65537, 0
      %v815 = vsel %vm783, 65537, 0
      %v816 = vsel %vm784, 65537, 0
      %v817 = vsel %vm785, 65537, 0
      %v818 = vsel %vm786, 65537, 0
      %v819 = vsel %vm787, 65537, 0
      %v820 = vsel %vm788, 65537, 0
      %v821 = vsel %vm789, 65537, 0
      %v822 = vsel %vm790, 65537, 0
      %v823 = vsel %vm791, 65537, 0
      %v824 = vsel %vm792, 65537, 0
      %v825 = vsel %vm793, 65537, 0
      %v826 = vsel %vm794, 65537, 0
      %v827 = vsel %vm795, 65537, 0
      %v828 = vsel %vm796, 65537, 0
      %v829 = vsel %vm797, 65537, 0
      %v830 = vsel %vm798, 65537, 0
      %v831 = vsel %vm799, 65537, 0
      %v832 = vsel %vm800, 65537, 0
      %v833 = vunpack.c.l.b16 %v801
      %v834 = vunpack.c.l.b16 %v802
      %v835 = vunpack.c.l.b16 %v803
      %v836 = vunpack.c.l.b16 %v804
      %v837 = vunpack.c.l.b16 %v805
      %v838 = vunpack.c.l.b16 %v806
      %v839 = vunpack.c.l.b16 %v807
      %v840 = vunpack.c.l.b16 %v808
      %v841 = vunpack.c.l.b16 %v809
      %v842 = vunpack.c.l.b16 %v810
      %v843 = vunpack.c.l.b16 %v811
      %v844 = vunpack.c.l.b16 %v812
      %v845 = vunpack.c.l.b16 %v813
      %v846 = vunpack.c.l.b16 %v814
      %v847 = vunpack.c.l.b16 %v815
      %v848 = vunpack.c.l.b16 %v816
      %v849 = vunpack.c.l.b16 %v817
      %v850 = vunpack.c.l.b16 %v818
      %v851 = vunpack.c.l.b16 %v819
      %v852 = vunpack.c.l.b16 %v820
      %v853 = vunpack.c.l.b16 %v821
      %v854 = vunpack.c.l.b16 %v822
      %v855 = vunpack.c.l.b16 %v823
      %v856 = vunpack.c.l.b16 %v824
      %v857 = vunpack.c.l.b16 %v825
      %v858 = vunpack.c.l.b16 %v826
      %v859 = vunpack.c.l.b16 %v827
      %v860 = vunpack.c.l.b16 %v828
      %v861 = vunpack.c.l.b16 %v829
      %v862 = vunpack.c.l.b16 %v830
      %v863 = vunpack.c.l.b16 %v831
      %v864 = vunpack.c.l.b16 %v832
      %v865 = vpack.c.b16 %v834, %v833
      %v866 = vpack.c.b16 %v836, %v835
      %v867 = vpack.c.b16 %v838, %v837
      %v868 = vpack.c.b16 %v840, %v839
      %v869 = vpack.c.b16 %v842, %v841
      %v870 = vpack.c.b16 %v844, %v843
      %v871 = vpack.c.b16 %v846, %v845
      %v872 = vpack.c.b16 %v848, %v847
      %v873 = vpack.c.b16 %v850, %v849
      %v874 = vpack.c.b16 %v852, %v851
      %v875 = vpack.c.b16 %v854, %v853
      %v876 = vpack.c.b16 %v856, %v855
      %v877 = vpack.c.b16 %v858, %v857
      %v878 = vpack.c.b16 %v860, %v859
      %v879 = vpack.c.b16 %v862, %v861
      %v880 = vpack.c.b16 %v864, %v863
      %vm881 = vsmask.f32 256
      %v883 = vshrl.u32 %v865, 16
      %v885 = vrot.slane %v883, 7
      %v886 = vshll.u32 %v865, 16
      %v888 = vor.u32 %v885, %v886
      %v890 = vshrl.u32 %v866, 16
      %v892 = vrot.slane %v890, 7
      %v893 = vshll.u32 %v866, 16
      %v895 = vor.u32 %v892, %v893
      %v896 = vsel %vm881, %v885, %v895
      %v898 = vshrl.u32 %v867, 16
      %v900 = vrot.slane %v898, 7
      %v901 = vshll.u32 %v867, 16
      %v903 = vor.u32 %v900, %v901
      %v904 = vsel %vm881, %v892, %v903
      %v906 = vshrl.u32 %v868, 16
      %v908 = vrot.slane %v906, 7
      %v909 = vshll.u32 %v868, 16
      %v911 = vor.u32 %v908, %v909
      %v912 = vsel %vm881, %v900, %v911
      %v914 = vshrl.u32 %v869, 16
      %v916 = vrot.slane %v914, 7
      %v917 = vshll.u32 %v869, 16
      %v919 = vor.u32 %v916, %v917
      %v920 = vsel %vm881, %v908, %v919
      %v922 = vshrl.u32 %v870, 16
      %v924 = vrot.slane %v922, 7
      %v925 = vshll.u32 %v870, 16
      %v927 = vor.u32 %v924, %v925
      %v928 = vsel %vm881, %v916, %v927
      %v930 = vshrl.u32 %v871, 16
      %v932 = vrot.slane %v930, 7
      %v933 = vshll.u32 %v871, 16
      %v935 = vor.u32 %v932, %v933
      %v936 = vsel %vm881, %v924, %v935
      %v938 = vshrl.u32 %v872, 16
      %v940 = vrot.slane %v938, 7
      %v941 = vshll.u32 %v872, 16
      %v943 = vor.u32 %v940, %v941
      %v944 = vsel %vm881, %v932, %v943
      %v946 = vshrl.u32 %v873, 16
      %v948 = vrot.slane %v946, 7
      %v949 = vshll.u32 %v873, 16
      %v951 = vor.u32 %v948, %v949
      %v952 = vsel %vm881, %v940, %v951
      %v954 = vshrl.u32 %v874, 16
      %v956 = vrot.slane %v954, 7
      %v957 = vshll.u32 %v874, 16
      %v959 = vor.u32 %v956, %v957
      %v960 = vsel %vm881, %v948, %v959
      %v962 = vshrl.u32 %v875, 16
      %v964 = vrot.slane %v962, 7
      %v965 = vshll.u32 %v875, 16
      %v967 = vor.u32 %v964, %v965
      %v968 = vsel %vm881, %v956, %v967
      %v970 = vshrl.u32 %v876, 16
      %v972 = vrot.slane %v970, 7
      %v973 = vshll.u32 %v876, 16
      %v975 = vor.u32 %v972, %v973
      %v976 = vsel %vm881, %v964, %v975
      %v978 = vshrl.u32 %v877, 16
      %v980 = vrot.slane %v978, 7
      %v981 = vshll.u32 %v877, 16
      %v983 = vor.u32 %v980, %v981
      %v984 = vsel %vm881, %v972, %v983
      %v986 = vshrl.u32 %v878, 16
      %v988 = vrot.slane %v986, 7
      %v989 = vshll.u32 %v878, 16
      %v991 = vor.u32 %v988, %v989
      %v992 = vsel %vm881, %v980, %v991
      %v994 = vshrl.u32 %v879, 16
      %v996 = vrot.slane %v994, 7
      %v997 = vshll.u32 %v879, 16
      %v999 = vor.u32 %v996, %v997
      %v1000 = vsel %vm881, %v988, %v999
      %v1002 = vshrl.u32 %v880, 16
      %v1004 = vrot.slane %v1002, 7
      %v1005 = vshll.u32 %v880, 16
      %v1007 = vor.u32 %v1004, %v1005
      %v1008 = vsel %vm881, %v996, %v1007
      %vm1009 = vcmp.ne.s16.totalorder %v888, 0
      %vm1010 = vcmp.ne.s16.totalorder %v896, 0
      %vm1011 = vcmp.ne.s16.totalorder %v904, 0
      %vm1012 = vcmp.ne.s16.totalorder %v912, 0
      %vm1013 = vcmp.ne.s16.totalorder %v920, 0
      %vm1014 = vcmp.ne.s16.totalorder %v928, 0
      %vm1015 = vcmp.ne.s16.totalorder %v936, 0
      %vm1016 = vcmp.ne.s16.totalorder %v944, 0
      %vm1017 = vcmp.ne.s16.totalorder %v952, 0
      %vm1018 = vcmp.ne.s16.totalorder %v960, 0
      %vm1019 = vcmp.ne.s16.totalorder %v968, 0
      %vm1020 = vcmp.ne.s16.totalorder %v976, 0
      %vm1021 = vcmp.ne.s16.totalorder %v984, 0
      %vm1022 = vcmp.ne.s16.totalorder %v992, 0
      %vm1023 = vcmp.ne.s16.totalorder %v1000, 0
      %vm1024 = vcmp.ne.s16.totalorder %v1008, 0
      %vm1025 = vcmp.ne.s16.totalorder %v1004, 0
      %vm1043 = vcmask 1040384
      %v1044 = vrot.slane %v655, 7
      %v1045 = vrot.slane %v656, 7
      %v1046 = vsel %vm1043, %v1044, %v1045
      %v1047 = vrot.slane %v657, 7
      %v1048 = vsel %vm1043, %v1045, %v1047
      %v1049 = vrot.slane %v658, 7
      %v1050 = vsel %vm1043, %v1047, %v1049
      %v1051 = vrot.slane %v659, 7
      %v1052 = vsel %vm1043, %v1049, %v1051
      %v1053 = vrot.slane %v660, 7
      %v1054 = vsel %vm1043, %v1051, %v1053
      %v1055 = vrot.slane %v661, 7
      %v1056 = vsel %vm1043, %v1053, %v1055
      %v1057 = vrot.slane %v662, 7
      %v1058 = vsel %vm1043, %v1055, %v1057
      %v1059 = vrot.slane %v663, 7
      %v1060 = vsel %vm1043, %v1057, %v1059
      %v1061 = vrot.slane %v664, 7
      %v1062 = vsel %vm1043, %v1059, %v1061
      %v1063 = vrot.slane %v665, 7
      %v1064 = vsel %vm1043, %v1061, %v1063
      %v1065 = vrot.slane %v666, 7
      %v1066 = vsel %vm1043, %v1063, %v1065
      %v1067 = vrot.slane %v667, 7
      %v1068 = vsel %vm1043, %v1065, %v1067
      %v1069 = vrot.slane %v668, 7
      %v1070 = vsel %vm1043, %v1067, %v1069
      %v1071 = vrot.slane %v669, 7
      %v1072 = vsel %vm1043, %v1069, %v1071
      %v1073 = vrot.slane %v670, 7
      %v1074 = vsel %vm1043, %v1071, %v1073
      %v1075 = vrot.slane %v671, 7
      %v1076 = vsel %vm1043, %v1073, %v1075
      %v1094 = vsel %vm1009, %v656, %v1046
      %v1095 = vsel %vm1010, %v657, %v1048
      %v1096 = vsel %vm1011, %v658, %v1050
      %v1097 = vsel %vm1012, %v659, %v1052
      %v1098 = vsel %vm1013, %v660, %v1054
      %v1099 = vsel %vm1014, %v661, %v1056
      %v1100 = vsel %vm1015, %v662, %v1058
      %v1101 = vsel %vm1016, %v663, %v1060
      %v1102 = vsel %vm1017, %v664, %v1062
      %v1103 = vsel %vm1018, %v665, %v1064
      %v1104 = vsel %vm1019, %v666, %v1066
      %v1105 = vsel %vm1020, %v667, %v1068
      %v1106 = vsel %vm1021, %v668, %v1070
      %v1107 = vsel %vm1022, %v669, %v1072
      %v1108 = vsel %vm1023, %v670, %v1074
      %v1109 = vsel %vm1024, %v671, %v1076
      %v1110 = vsel %vm1025, %v672, %v1075
      %vm1111 = vsmask.f32 7424
      %v1113 = vshrl.u32 %v1094, 16
      %v1115 = vshll.u32 %v1094, 16
      %v1117 = vrot.slane %v1115, 1
      %v1118 = vor.u32 %v1113, %v1117
      %v1120 = vshll.u32 %v1095, 16
      %v1122 = vrot.slane %v1120, 1
      %v1123 = vsel %vm1111, %v1118, %v1122
      %v1124 = vshrl.u32 %v1095, 16
      %v1126 = vor.u32 %v1124, %v1122
      %v1128 = vshll.u32 %v1096, 16
      %v1130 = vrot.slane %v1128, 1
      %v1131 = vsel %vm1111, %v1126, %v1130
      %v1132 = vshrl.u32 %v1096, 16
      %v1134 = vor.u32 %v1132, %v1130
      %v1136 = vshll.u32 %v1097, 16
      %v1138 = vrot.slane %v1136, 1
      %v1139 = vsel %vm1111, %v1134, %v1138
      %v1140 = vshrl.u32 %v1097, 16
      %v1142 = vor.u32 %v1140, %v1138
      %v1144 = vshll.u32 %v1098, 16
      %v1146 = vrot.slane %v1144, 1
      %v1147 = vsel %vm1111, %v1142, %v1146
      %v1148 = vshrl.u32 %v1098, 16
      %v1150 = vor.u32 %v1148, %v1146
      %v1152 = vshll.u32 %v1099, 16
      %v1154 = vrot.slane %v1152, 1
      %v1155 = vsel %vm1111, %v1150, %v1154
      %v1156 = vshrl.u32 %v1099, 16
      %v1158 = vor.u32 %v1156, %v1154
      %v1160 = vshll.u32 %v1100, 16
      %v1162 = vrot.slane %v1160, 1
      %v1163 = vsel %vm1111, %v1158, %v1162
      %v1164 = vshrl.u32 %v1100, 16
      %v1166 = vor.u32 %v1164, %v1162
      %v1168 = vshll.u32 %v1101, 16
      %v1170 = vrot.slane %v1168, 1
      %v1171 = vsel %vm1111, %v1166, %v1170
      %v1172 = vshrl.u32 %v1101, 16
      %v1174 = vor.u32 %v1172, %v1170
      %v1176 = vshll.u32 %v1102, 16
      %v1178 = vrot.slane %v1176, 1
      %v1179 = vsel %vm1111, %v1174, %v1178
      %v1180 = vshrl.u32 %v1102, 16
      %v1182 = vor.u32 %v1180, %v1178
      %v1184 = vshll.u32 %v1103, 16
      %v1186 = vrot.slane %v1184, 1
      %v1187 = vsel %vm1111, %v1182, %v1186
      %v1188 = vshrl.u32 %v1103, 16
      %v1190 = vor.u32 %v1188, %v1186
      %v1192 = vshll.u32 %v1104, 16
      %v1194 = vrot.slane %v1192, 1
      %v1195 = vsel %vm1111, %v1190, %v1194
      %v1196 = vshrl.u32 %v1104, 16
      %v1198 = vor.u32 %v1196, %v1194
      %v1200 = vshll.u32 %v1105, 16
      %v1202 = vrot.slane %v1200, 1
      %v1203 = vsel %vm1111, %v1198, %v1202
      %v1204 = vshrl.u32 %v1105, 16
      %v1206 = vor.u32 %v1204, %v1202
      %v1208 = vshll.u32 %v1106, 16
      %v1210 = vrot.slane %v1208, 1
      %v1211 = vsel %vm1111, %v1206, %v1210
      %v1212 = vshrl.u32 %v1106, 16
      %v1214 = vor.u32 %v1212, %v1210
      %v1216 = vshll.u32 %v1107, 16
      %v1218 = vrot.slane %v1216, 1
      %v1219 = vsel %vm1111, %v1214, %v1218
      %v1220 = vshrl.u32 %v1107, 16
      %v1222 = vor.u32 %v1220, %v1218
      %v1224 = vshll.u32 %v1108, 16
      %v1226 = vrot.slane %v1224, 1
      %v1227 = vsel %vm1111, %v1222, %v1226
      %v1228 = vshrl.u32 %v1108, 16
      %v1230 = vor.u32 %v1228, %v1226
      %v1232 = vshll.u32 %v1109, 16
      %v1234 = vrot.slane %v1232, 1
      %v1235 = vsel %vm1111, %v1230, %v1234
      %v1236 = vshrl.u32 %v1109, 16
      %v1238 = vor.u32 %v1236, %v1234
      %v1240 = vshll.u32 %v1110, 16
      %v1242 = vrot.slane %v1240, 1
      %v1243 = vsel %vm1111, %v1238, %v1242
      %1260 = vst [vmem:[#allocation2 + $0x18] sm:$0xff] %v1123
      %1261 = vst [vmem:[#allocation2 + $0x30] sm:$0xff] %v1131
      %1262 = vst [vmem:[#allocation2 + $0x48] sm:$0xff] %v1139
      %1263 = vst [vmem:[#allocation2 + $0x60] sm:$0xff] %v1147
      %1264 = vst [vmem:[#allocation2 + $0x78] sm:$0xff] %v1155
      %1265 = vst [vmem:[#allocation2 + $0x90] sm:$0xff] %v1163
      %1266 = vst [vmem:[#allocation2 + $0xa8] sm:$0xff] %v1171
      %1267 = vst [vmem:[#allocation2 + $0xc0] sm:$0xff] %v1179
      %1268 = vst [vmem:[#allocation2 + $0xd8] sm:$0xff] %v1187
      %1269 = vst [vmem:[#allocation2 + $0xf0] sm:$0xff] %v1195
      %1270 = vst [vmem:[#allocation2 + $0x108] sm:$0xff] %v1203
      %1271 = vst [vmem:[#allocation2 + $0x120] sm:$0xff] %v1211
      %1272 = vst [vmem:[#allocation2 + $0x138] sm:$0xff] %v1219
      %1273 = vst [vmem:[#allocation2 + $0x150] sm:$0xff] %v1227
      %1274 = vst [vmem:[#allocation2 + $0x168] sm:$0xff] %v1235
      %1275 = vst [vmem:[#allocation2 + $0x180] sm:$0xff] %v1243
      %vm1276 = vcmp.eq.s32.totalorder %v559, 15
      %vm1277 = vcmp.eq.s32.totalorder %v560, 15
      %vm1278 = vcmp.eq.s32.totalorder %v561, 15
      %vm1279 = vcmp.eq.s32.totalorder %v562, 15
      %vm1280 = vcmp.eq.s32.totalorder %v563, 15
      %vm1281 = vcmp.eq.s32.totalorder %v564, 15
      %vm1282 = vcmp.eq.s32.totalorder %v565, 15
      %vm1283 = vcmp.eq.s32.totalorder %v566, 15
      %vm1284 = vcmp.eq.s32.totalorder %v567, 15
      %vm1285 = vcmp.eq.s32.totalorder %v568, 15
      %vm1286 = vcmp.eq.s32.totalorder %v569, 15
      %vm1287 = vcmp.eq.s32.totalorder %v570, 15
      %vm1288 = vcmp.eq.s32.totalorder %v571, 15
      %vm1289 = vcmp.eq.s32.totalorder %v572, 15
      %vm1290 = vcmp.eq.s32.totalorder %v573, 15
      %vm1291 = vcmp.eq.s32.totalorder %v574, 15
      %vm1292 = vcmp.eq.s32.totalorder %v575, 15
      %vm1293 = vcmp.eq.s32.totalorder %v576, 15
      %vm1294 = vcmp.eq.s32.totalorder %v577, 15
      %vm1295 = vcmp.eq.s32.totalorder %v578, 15
      %vm1296 = vcmp.eq.s32.totalorder %v579, 15
      %vm1297 = vcmp.eq.s32.totalorder %v580, 15
      %vm1298 = vcmp.eq.s32.totalorder %v581, 15
      %vm1299 = vcmp.eq.s32.totalorder %v582, 15
      %vm1300 = vcmp.eq.s32.totalorder %v583, 15
      %vm1301 = vcmp.eq.s32.totalorder %v584, 15
      %vm1302 = vcmp.eq.s32.totalorder %v585, 15
      %vm1303 = vcmp.eq.s32.totalorder %v586, 15
      %vm1304 = vcmp.eq.s32.totalorder %v587, 15
      %vm1305 = vcmp.eq.s32.totalorder %v588, 15
      %vm1306 = vcmp.eq.s32.totalorder %v589, 15
      %vm1307 = vcmp.eq.s32.totalorder %v590, 15
      %v1308 = vsel %vm1276, 1, 0
      %v1309 = vsel %vm1277, 1, 0
      %v1310 = vsel %vm1278, 1, 0
      %v1311 = vsel %vm1279, 1, 0
      %v1312 = vsel %vm1280, 1, 0
      %v1313 = vsel %vm1281, 1, 0
      %v1314 = vsel %vm1282, 1, 0
      %v1315 = vsel %vm1283, 1, 0
      %v1316 = vsel %vm1284, 1, 0
      %v1317 = vsel %vm1285, 1, 0
      %v1318 = vsel %vm1286, 1, 0
      %v1319 = vsel %vm1287, 1, 0
      %v1320 = vsel %vm1288, 1, 0
      %v1321 = vsel %vm1289, 1, 0
      %v1322 = vsel %vm1290, 1, 0
      %v1323 = vsel %vm1291, 1, 0
      %v1324 = vsel %vm1292, 1, 0
      %v1325 = vsel %vm1293, 1, 0
      %v1326 = vsel %vm1294, 1, 0
      %v1327 = vsel %vm1295, 1, 0
      %v1328 = vsel %vm1296, 1, 0
      %v1329 = vsel %vm1297, 1, 0
      %v1330 = vsel %vm1298, 1, 0
      %v1331 = vsel %vm1299, 1, 0
      %v1332 = vsel %vm1300, 1, 0
      %v1333 = vsel %vm1301, 1, 0
      %v1334 = vsel %vm1302, 1, 0
      %v1335 = vsel %vm1303, 1, 0
      %v1336 = vsel %vm1304, 1, 0
      %v1337 = vsel %vm1305, 1, 0
      %v1338 = vsel %vm1306, 1, 0
      %v1339 = vsel %vm1307, 1, 0
      %vm1340 = vcmp.eq.s32.totalorder %v1308, 1
      %vm1341 = vcmp.eq.s32.totalorder %v1309, 1
      %vm1342 = vcmp.eq.s32.totalorder %v1310, 1
      %vm1343 = vcmp.eq.s32.totalorder %v1311, 1
      %vm1344 = vcmp.eq.s32.totalorder %v1312, 1
      %vm1345 = vcmp.eq.s32.totalorder %v1313, 1
      %vm1346 = vcmp.eq.s32.totalorder %v1314, 1
      %vm1347 = vcmp.eq.s32.totalorder %v1315, 1
      %vm1348 = vcmp.eq.s32.totalorder %v1316, 1
      %vm1349 = vcmp.eq.s32.totalorder %v1317, 1
      %vm1350 = vcmp.eq.s32.totalorder %v1318, 1
      %vm1351 = vcmp.eq.s32.totalorder %v1319, 1
      %vm1352 = vcmp.eq.s32.totalorder %v1320, 1
      %vm1353 = vcmp.eq.s32.totalorder %v1321, 1
      %vm1354 = vcmp.eq.s32.totalorder %v1322, 1
      %vm1355 = vcmp.eq.s32.totalorder %v1323, 1
      %vm1356 = vcmp.eq.s32.totalorder %v1324, 1
      %vm1357 = vcmp.eq.s32.totalorder %v1325, 1
      %vm1358 = vcmp.eq.s32.totalorder %v1326, 1
      %vm1359 = vcmp.eq.s32.totalorder %v1327, 1
      %vm1360 = vcmp.eq.s32.totalorder %v1328, 1
      %vm1361 = vcmp.eq.s32.totalorder %v1329, 1
      %vm1362 = vcmp.eq.s32.totalorder %v1330, 1
      %vm1363 = vcmp.eq.s32.totalorder %v1331, 1
      %vm1364 = vcmp.eq.s32.totalorder %v1332, 1
      %vm1365 = vcmp.eq.s32.totalorder %v1333, 1
      %vm1366 = vcmp.eq.s32.totalorder %v1334, 1
      %vm1367 = vcmp.eq.s32.totalorder %v1335, 1
      %vm1368 = vcmp.eq.s32.totalorder %v1336, 1
      %vm1369 = vcmp.eq.s32.totalorder %v1337, 1
      %vm1370 = vcmp.eq.s32.totalorder %v1338, 1
      %vm1371 = vcmp.eq.s32.totalorder %v1339, 1
      %vm1372 = vmpackc.low %vm1340, %vm1340
      %vm1373 = vmpackc.low %vm1341, %vm1341
      %vm1374 = vmpackc.low %vm1342, %vm1342
      %vm1375 = vmpackc.low %vm1343, %vm1343
      %vm1376 = vmpackc.low %vm1344, %vm1344
      %vm1377 = vmpackc.low %vm1345, %vm1345
      %vm1378 = vmpackc.low %vm1346, %vm1346
      %vm1379 = vmpackc.low %vm1347, %vm1347
      %vm1380 = vmpackc.low %vm1348, %vm1348
      %vm1381 = vmpackc.low %vm1349, %vm1349
      %vm1382 = vmpackc.low %vm1350, %vm1350
      %vm1383 = vmpackc.low %vm1351, %vm1351
      %vm1384 = vmpackc.low %vm1352, %vm1352
      %vm1385 = vmpackc.low %vm1353, %vm1353
      %vm1386 = vmpackc.low %vm1354, %vm1354
      %vm1387 = vmpackc.low %vm1355, %vm1355
      %vm1388 = vmpackc.low %vm1356, %vm1356
      %vm1389 = vmpackc.low %vm1357, %vm1357
      %vm1390 = vmpackc.low %vm1358, %vm1358
      %vm1391 = vmpackc.low %vm1359, %vm1359
      %vm1392 = vmpackc.low %vm1360, %vm1360
      %vm1393 = vmpackc.low %vm1361, %vm1361
      %vm1394 = vmpackc.low %vm1362, %vm1362
      %vm1395 = vmpackc.low %vm1363, %vm1363
      %vm1396 = vmpackc.low %vm1364, %vm1364
      %vm1397 = vmpackc.low %vm1365, %vm1365
      %vm1398 = vmpackc.low %vm1366, %vm1366
      %vm1399 = vmpackc.low %vm1367, %vm1367
      %vm1400 = vmpackc.low %vm1368, %vm1368
      %vm1401 = vmpackc.low %vm1369, %vm1369
      %vm1402 = vmpackc.low %vm1370, %vm1370
      %vm1403 = vmpackc.low %vm1371, %vm1371
      %v1404 = vsel %vm1372, 65537, 0
      %v1405 = vsel %vm1373, 65537, 0
      %v1406 = vsel %vm1374, 65537, 0
      %v1407 = vsel %vm1375, 65537, 0
      %v1408 = vsel %vm1376, 65537, 0
      %v1409 = vsel %vm1377, 65537, 0
      %v1410 = vsel %vm1378, 65537, 0
      %v1411 = vsel %vm1379, 65537, 0
      %v1412 = vsel %vm1380, 65537, 0
      %v1413 = vsel %vm1381, 65537, 0
      %v1414 = vsel %vm1382, 65537, 0
      %v1415 = vsel %vm1383, 65537, 0
      %v1416 = vsel %vm1384, 65537, 0
      %v1417 = vsel %vm1385, 65537, 0
      %v1418 = vsel %vm1386, 65537, 0
      %v1419 = vsel %vm1387, 65537, 0
      %v1420 = vsel %vm1388, 65537, 0
      %v1421 = vsel %vm1389, 65537, 0
      %v1422 = vsel %vm1390, 65537, 0
      %v1423 = vsel %vm1391, 65537, 0
      %v1424 = vsel %vm1392, 65537, 0
      %v1425 = vsel %vm1393, 65537, 0
      %v1426 = vsel %vm1394, 65537, 0
      %v1427 = vsel %vm1395, 65537, 0
      %v1428 = vsel %vm1396, 65537, 0
      %v1429 = vsel %vm1397, 65537, 0
      %v1430 = vsel %vm1398, 65537, 0
      %v1431 = vsel %vm1399, 65537, 0
      %v1432 = vsel %vm1400, 65537, 0
      %v1433 = vsel %vm1401, 65537, 0
      %v1434 = vsel %vm1402, 65537, 0
      %v1435 = vsel %vm1403, 65537, 0
      %v1436 = vunpack.c.l.b16 %v1404
      %v1437 = vunpack.c.l.b16 %v1405
      %v1438 = vunpack.c.l.b16 %v1406
      %v1439 = vunpack.c.l.b16 %v1407
      %v1440 = vunpack.c.l.b16 %v1408
      %v1441 = vunpack.c.l.b16 %v1409
      %v1442 = vunpack.c.l.b16 %v1410
      %v1443 = vunpack.c.l.b16 %v1411
      %v1444 = vunpack.c.l.b16 %v1412
      %v1445 = vunpack.c.l.b16 %v1413
      %v1446 = vunpack.c.l.b16 %v1414
      %v1447 = vunpack.c.l.b16 %v1415
      %v1448 = vunpack.c.l.b16 %v1416
      %v1449 = vunpack.c.l.b16 %v1417
      %v1450 = vunpack.c.l.b16 %v1418
      %v1451 = vunpack.c.l.b16 %v1419
      %v1452 = vunpack.c.l.b16 %v1420
      %v1453 = vunpack.c.l.b16 %v1421
      %v1454 = vunpack.c.l.b16 %v1422
      %v1455 = vunpack.c.l.b16 %v1423
      %v1456 = vunpack.c.l.b16 %v1424
      %v1457 = vunpack.c.l.b16 %v1425
      %v1458 = vunpack.c.l.b16 %v1426
      %v1459 = vunpack.c.l.b16 %v1427
      %v1460 = vunpack.c.l.b16 %v1428
      %v1461 = vunpack.c.l.b16 %v1429
      %v1462 = vunpack.c.l.b16 %v1430
      %v1463 = vunpack.c.l.b16 %v1431
      %v1464 = vunpack.c.l.b16 %v1432
      %v1465 = vunpack.c.l.b16 %v1433
      %v1466 = vunpack.c.l.b16 %v1434
      %v1467 = vunpack.c.l.b16 %v1435
      %v1468 = vpack.c.b16 %v1437, %v1436
      %v1469 = vpack.c.b16 %v1439, %v1438
      %v1470 = vpack.c.b16 %v1441, %v1440
      %v1471 = vpack.c.b16 %v1443, %v1442
      %v1472 = vpack.c.b16 %v1445, %v1444
      %v1473 = vpack.c.b16 %v1447, %v1446
      %v1474 = vpack.c.b16 %v1449, %v1448
      %v1475 = vpack.c.b16 %v1451, %v1450
      %v1476 = vpack.c.b16 %v1453, %v1452
      %v1477 = vpack.c.b16 %v1455, %v1454
      %v1478 = vpack.c.b16 %v1457, %v1456
      %v1479 = vpack.c.b16 %v1459, %v1458
      %v1480 = vpack.c.b16 %v1461, %v1460
      %v1481 = vpack.c.b16 %v1463, %v1462
      %v1482 = vpack.c.b16 %v1465, %v1464
      %v1483 = vpack.c.b16 %v1467, %v1466
      %v1485 = vshll.u32 %v1468, 16
      %v1487 = vrot.slane %v1485, 1
      %v1488 = vshrl.u32 %v1468, 16
      %v1490 = vor.u32 %v1488, %v1487
      %v1492 = vshll.u32 %v1469, 16
      %v1494 = vrot.slane %v1492, 1
      %v1495 = vsel %vm1111, %v1490, %v1494
      %v1496 = vshrl.u32 %v1469, 16
      %v1498 = vor.u32 %v1496, %v1494
      %v1500 = vshll.u32 %v1470, 16
      %v1502 = vrot.slane %v1500, 1
      %v1503 = vsel %vm1111, %v1498, %v1502
      %v1504 = vshrl.u32 %v1470, 16
      %v1506 = vor.u32 %v1504, %v1502
      %v1508 = vshll.u32 %v1471, 16
      %v1510 = vrot.slane %v1508, 1
      %v1511 = vsel %vm1111, %v1506, %v1510
      %v1512 = vshrl.u32 %v1471, 16
      %v1514 = vor.u32 %v1512, %v1510
      %v1516 = vshll.u32 %v1472, 16
      %v1518 = vrot.slane %v1516, 1
      %v1519 = vsel %vm1111, %v1514, %v1518
      %v1520 = vshrl.u32 %v1472, 16
      %v1522 = vor.u32 %v1520, %v1518
      %v1524 = vshll.u32 %v1473, 16
      %v1526 = vrot.slane %v1524, 1
      %v1527 = vsel %vm1111, %v1522, %v1526
      %v1528 = vshrl.u32 %v1473, 16
      %v1530 = vor.u32 %v1528, %v1526
      %v1532 = vshll.u32 %v1474, 16
      %v1534 = vrot.slane %v1532, 1
      %v1535 = vsel %vm1111, %v1530, %v1534
      %v1536 = vshrl.u32 %v1474, 16
      %v1538 = vor.u32 %v1536, %v1534
      %v1540 = vshll.u32 %v1475, 16
      %v1542 = vrot.slane %v1540, 1
      %v1543 = vsel %vm1111, %v1538, %v1542
      %v1544 = vshrl.u32 %v1475, 16
      %v1546 = vor.u32 %v1544, %v1542
      %v1548 = vshll.u32 %v1476, 16
      %v1550 = vrot.slane %v1548, 1
      %v1551 = vsel %vm1111, %v1546, %v1550
      %v1552 = vshrl.u32 %v1476, 16
      %v1554 = vor.u32 %v1552, %v1550
      %v1556 = vshll.u32 %v1477, 16
      %v1558 = vrot.slane %v1556, 1
      %v1559 = vsel %vm1111, %v1554, %v1558
      %v1560 = vshrl.u32 %v1477, 16
      %v1562 = vor.u32 %v1560, %v1558
      %v1564 = vshll.u32 %v1478, 16
      %v1566 = vrot.slane %v1564, 1
      %v1567 = vsel %vm1111, %v1562, %v1566
      %v1568 = vshrl.u32 %v1478, 16
      %v1570 = vor.u32 %v1568, %v1566
      %v1572 = vshll.u32 %v1479, 16
      %v1574 = vrot.slane %v1572, 1
      %v1575 = vsel %vm1111, %v1570, %v1574
      %v1576 = vshrl.u32 %v1479, 16
      %v1578 = vor.u32 %v1576, %v1574
      %v1580 = vshll.u32 %v1480, 16
      %v1582 = vrot.slane %v1580, 1
      %v1583 = vsel %vm1111, %v1578, %v1582
      %v1584 = vshrl.u32 %v1480, 16
      %v1586 = vor.u32 %v1584, %v1582
      %v1588 = vshll.u32 %v1481, 16
      %v1590 = vrot.slane %v1588, 1
      %v1591 = vsel %vm1111, %v1586, %v1590
      %v1592 = vshrl.u32 %v1481, 16
      %v1594 = vor.u32 %v1592, %v1590
      %v1596 = vshll.u32 %v1482, 16
      %v1598 = vrot.slane %v1596, 1
      %v1599 = vsel %vm1111, %v1594, %v1598
      %v1600 = vshrl.u32 %v1482, 16
      %v1602 = vor.u32 %v1600, %v1598
      %v1604 = vshll.u32 %v1483, 16
      %v1606 = vrot.slane %v1604, 1
      %v1607 = vsel %vm1111, %v1602, %v1606
      %v1608 = vshrl.u32 %v1483, 16
      %v1610 = vor.u32 %v1608, %v1606
      %vm1611 = vcmp.ne.s16.totalorder %v1487, 0
      %vm1612 = vcmp.ne.s16.totalorder %v1495, 0
      %vm1613 = vcmp.ne.s16.totalorder %v1503, 0
      %vm1614 = vcmp.ne.s16.totalorder %v1511, 0
      %vm1615 = vcmp.ne.s16.totalorder %v1519, 0
      %vm1616 = vcmp.ne.s16.totalorder %v1527, 0
      %vm1617 = vcmp.ne.s16.totalorder %v1535, 0
      %vm1618 = vcmp.ne.s16.totalorder %v1543, 0
      %vm1619 = vcmp.ne.s16.totalorder %v1551, 0
      %vm1620 = vcmp.ne.s16.totalorder %v1559, 0
      %vm1621 = vcmp.ne.s16.totalorder %v1567, 0
      %vm1622 = vcmp.ne.s16.totalorder %v1575, 0
      %vm1623 = vcmp.ne.s16.totalorder %v1583, 0
      %vm1624 = vcmp.ne.s16.totalorder %v1591, 0
      %vm1625 = vcmp.ne.s16.totalorder %v1599, 0
      %vm1626 = vcmp.ne.s16.totalorder %v1607, 0
      %vm1627 = vcmp.ne.s16.totalorder %v1610, 0
      %vm1629 = vcmask 1046528
      %v1630 = vrot.slane %v656, 1
      %v1631 = vrot.slane %v657, 1
      %v1632 = vsel %vm1629, %v1630, %v1631
      %v1633 = vrot.slane %v658, 1
      %v1634 = vsel %vm1629, %v1631, %v1633
      %v1635 = vrot.slane %v659, 1
      %v1636 = vsel %vm1629, %v1633, %v1635
      %v1637 = vrot.slane %v660, 1
      %v1638 = vsel %vm1629, %v1635, %v1637
      %v1639 = vrot.slane %v661, 1
      %v1640 = vsel %vm1629, %v1637, %v1639
      %v1641 = vrot.slane %v662, 1
      %v1642 = vsel %vm1629, %v1639, %v1641
      %v1643 = vrot.slane %v663, 1
      %v1644 = vsel %vm1629, %v1641, %v1643
      %v1645 = vrot.slane %v664, 1
      %v1646 = vsel %vm1629, %v1643, %v1645
      %v1647 = vrot.slane %v665, 1
      %v1648 = vsel %vm1629, %v1645, %v1647
      %v1649 = vrot.slane %v666, 1
      %v1650 = vsel %vm1629, %v1647, %v1649
      %v1651 = vrot.slane %v667, 1
      %v1652 = vsel %vm1629, %v1649, %v1651
      %v1653 = vrot.slane %v668, 1
      %v1654 = vsel %vm1629, %v1651, %v1653
      %v1655 = vrot.slane %v669, 1
      %v1656 = vsel %vm1629, %v1653, %v1655
      %v1657 = vrot.slane %v670, 1
      %v1658 = vsel %vm1629, %v1655, %v1657
      %v1659 = vrot.slane %v671, 1
      %v1660 = vsel %vm1629, %v1657, %v1659
      %v1661 = vrot.slane %v672, 1
      %v1662 = vsel %vm1629, %v1659, %v1661
      %v1680 = vsel %vm1611, %v655, %v1630
      %v1681 = vsel %vm1612, %v656, %v1632
      %v1682 = vsel %vm1613, %v657, %v1634
      %v1683 = vsel %vm1614, %v658, %v1636
      %v1684 = vsel %vm1615, %v659, %v1638
      %v1685 = vsel %vm1616, %v660, %v1640
      %v1686 = vsel %vm1617, %v661, %v1642
      %v1687 = vsel %vm1618, %v662, %v1644
      %v1688 = vsel %vm1619, %v663, %v1646
      %v1689 = vsel %vm1620, %v664, %v1648
      %v1690 = vsel %vm1621, %v665, %v1650
      %v1691 = vsel %vm1622, %v666, %v1652
      %v1692 = vsel %vm1623, %v667, %v1654
      %v1693 = vsel %vm1624, %v668, %v1656
      %v1694 = vsel %vm1625, %v669, %v1658
      %v1695 = vsel %vm1626, %v670, %v1660
      %v1696 = vsel %vm1627, %v671, %v1662
      %v1698 = vshrl.u32 %v1680, 16
      %v1700 = vrot.slane %v1698, 7
      %v1702 = vshrl.u32 %v1681, 16
      %v1704 = vrot.slane %v1702, 7
      %v1705 = vshll.u32 %v1681, 16
      %v1707 = vor.u32 %v1704, %v1705
      %v1708 = vsel %vm881, %v1700, %v1707
      %v1710 = vshrl.u32 %v1682, 16
      %v1712 = vrot.slane %v1710, 7
      %v1713 = vshll.u32 %v1682, 16
      %v1715 = vor.u32 %v1712, %v1713
      %v1716 = vsel %vm881, %v1704, %v1715
      %v1718 = vshrl.u32 %v1683, 16
      %v1720 = vrot.slane %v1718, 7
      %v1721 = vshll.u32 %v1683, 16
      %v1723 = vor.u32 %v1720, %v1721
      %v1724 = vsel %vm881, %v1712, %v1723
      %v1726 = vshrl.u32 %v1684, 16
      %v1728 = vrot.slane %v1726, 7
      %v1729 = vshll.u32 %v1684, 16
      %v1731 = vor.u32 %v1728, %v1729
      %v1732 = vsel %vm881, %v1720, %v1731
      %v1734 = vshrl.u32 %v1685, 16
      %v1736 = vrot.slane %v1734, 7
      %v1737 = vshll.u32 %v1685, 16
      %v1739 = vor.u32 %v1736, %v1737
      %v1740 = vsel %vm881, %v1728, %v1739
      %v1742 = vshrl.u32 %v1686, 16
      %v1744 = vrot.slane %v1742, 7
      %v1745 = vshll.u32 %v1686, 16
      %v1747 = vor.u32 %v1744, %v1745
      %v1748 = vsel %vm881, %v1736, %v1747
      %v1750 = vshrl.u32 %v1687, 16
      %v1752 = vrot.slane %v1750, 7
      %v1753 = vshll.u32 %v1687, 16
      %v1755 = vor.u32 %v1752, %v1753
      %v1756 = vsel %vm881, %v1744, %v1755
      %v1758 = vshrl.u32 %v1688, 16
      %v1760 = vrot.slane %v1758, 7
      %v1761 = vshll.u32 %v1688, 16
      %v1763 = vor.u32 %v1760, %v1761
      %v1764 = vsel %vm881, %v1752, %v1763
      %v1766 = vshrl.u32 %v1689, 16
      %v1768 = vrot.slane %v1766, 7
      %v1769 = vshll.u32 %v1689, 16
      %v1771 = vor.u32 %v1768, %v1769
      %v1772 = vsel %vm881, %v1760, %v1771
      %v1774 = vshrl.u32 %v1690, 16
      %v1776 = vrot.slane %v1774, 7
      %v1777 = vshll.u32 %v1690, 16
      %v1779 = vor.u32 %v1776, %v1777
      %v1780 = vsel %vm881, %v1768, %v1779
      %v1782 = vshrl.u32 %v1691, 16
      %v1784 = vrot.slane %v1782, 7
      %v1785 = vshll.u32 %v1691, 16
      %v1787 = vor.u32 %v1784, %v1785
      %v1788 = vsel %vm881, %v1776, %v1787
      %v1790 = vshrl.u32 %v1692, 16
      %v1792 = vrot.slane %v1790, 7
      %v1793 = vshll.u32 %v1692, 16
      %v1795 = vor.u32 %v1792, %v1793
      %v1796 = vsel %vm881, %v1784, %v1795
      %v1798 = vshrl.u32 %v1693, 16
      %v1800 = vrot.slane %v1798, 7
      %v1801 = vshll.u32 %v1693, 16
      %v1803 = vor.u32 %v1800, %v1801
      %v1804 = vsel %vm881, %v1792, %v1803
      %v1806 = vshrl.u32 %v1694, 16
      %v1808 = vrot.slane %v1806, 7
      %v1809 = vshll.u32 %v1694, 16
      %v1811 = vor.u32 %v1808, %v1809
      %v1812 = vsel %vm881, %v1800, %v1811
      %v1814 = vshrl.u32 %v1695, 16
      %v1816 = vrot.slane %v1814, 7
      %v1817 = vshll.u32 %v1695, 16
      %v1819 = vor.u32 %v1816, %v1817
      %v1820 = vsel %vm881, %v1808, %v1819
      %v1822 = vshrl.u32 %v1696, 16
      %v1824 = vrot.slane %v1822, 7
      %v1825 = vshll.u32 %v1696, 16
      %v1827 = vor.u32 %v1824, %v1825
      %v1828 = vsel %vm881, %v1816, %v1827
      %1845 = vst [vmem:[#allocation2 + $0x28] sm:$0xff] %v1708
      %1846 = vst [vmem:[#allocation2 + $0x40] sm:$0xff] %v1716
      %1847 = vst [vmem:[#allocation2 + $0x58] sm:$0xff] %v1724
      %1848 = vst [vmem:[#allocation2 + $0x70] sm:$0xff] %v1732
      %1849 = vst [vmem:[#allocation2 + $0x88] sm:$0xff] %v1740
      %1850 = vst [vmem:[#allocation2 + $0xa0] sm:$0xff] %v1748
      %1851 = vst [vmem:[#allocation2 + $0xb8] sm:$0xff] %v1756
      %1852 = vst [vmem:[#allocation2 + $0xd0] sm:$0xff] %v1764
      %1853 = vst [vmem:[#allocation2 + $0xe8] sm:$0xff] %v1772
      %1854 = vst [vmem:[#allocation2 + $0x100] sm:$0xff] %v1780
      %1855 = vst [vmem:[#allocation2 + $0x118] sm:$0xff] %v1788
      %1856 = vst [vmem:[#allocation2 + $0x130] sm:$0xff] %v1796
      %1857 = vst [vmem:[#allocation2 + $0x148] sm:$0xff] %v1804
      %1858 = vst [vmem:[#allocation2 + $0x160] sm:$0xff] %v1812
      %1859 = vst [vmem:[#allocation2 + $0x178] sm:$0xff] %v1820
      %1860 = vst [vmem:[#allocation2 + $0x190] sm:$0xff] %v1828
      %v1861 = vld [vmem:[#allocation2 + $0x30] sm:$0xff]
      %v1862 = vld [vmem:[#allocation2 + $0x38] sm:$0xff]
      %v1863 = vld [vmem:[#allocation2 + $0x40] sm:$0xff]
      %1864 = vst [vmem:[#allocation2] sm:$0xff] %v1861
      %1865 = vst [vmem:[#allocation2 + $0x8] sm:$0xff] %v1862
      %1866 = vst [vmem:[#allocation2 + $0x10] sm:$0xff] %v1863
      %v1867 = vld [vmem:[#allocation2 + $0x168] sm:$0xff]
      %v1868 = vld [vmem:[#allocation2 + $0x170] sm:$0xff]
      %v1869 = vld [vmem:[#allocation2 + $0x178] sm:$0xff]
      %1870 = vst [vmem:[#allocation2 + $0x198] sm:$0xff] %v1867
      %1871 = vst [vmem:[#allocation2 + $0x1a0] sm:$0xff] %v1868
      %1872 = vst [vmem:[#allocation2 + $0x1a8] sm:$0xff] %v1869
      %v1873 = vld [vmem:[#allocation2] sm:$0xff]
      %v1874 = vld [vmem:[#allocation2 + $0x8] sm:$0xff]
      %v1875 = vld [vmem:[#allocation2 + $0x10] sm:$0xff]
      %v1876 = vld [vmem:[#allocation2 + $0x18] sm:$0xff]
      %v1877 = vld [vmem:[#allocation2 + $0x20] sm:$0xff]
      %v1878 = vld [vmem:[#allocation2 + $0x28] sm:$0xff]
      %v1879 = vld [vmem:[#allocation2 + $0x30] sm:$0xff]
      %v1880 = vld [vmem:[#allocation2 + $0x38] sm:$0xff]
      %v1881 = vld [vmem:[#allocation2 + $0x40] sm:$0xff]
      %v1882 = vld [vmem:[#allocation2 + $0x48] sm:$0xff]
      %v1883 = vld [vmem:[#allocation2 + $0x50] sm:$0xff]
      %v1884 = vld [vmem:[#allocation2 + $0x58] sm:$0xff]
      %v1885 = vld [vmem:[#allocation2 + $0x60] sm:$0xff]
      %v1886 = vld [vmem:[#allocation2 + $0x68] sm:$0xff]
      %v1887 = vld [vmem:[#allocation2 + $0x70] sm:$0xff]
      %v1888 = vld [vmem:[#allocation2 + $0x78] sm:$0xff]
      %v1889 = vld [vmem:[#allocation2 + $0x80] sm:$0xff]
      %v1890 = vld [vmem:[#allocation2 + $0x88] sm:$0xff]
      %v1891 = vld [vmem:[#allocation2 + $0x90] sm:$0xff]
      %v1892 = vld [vmem:[#allocation2 + $0x98] sm:$0xff]
      %v1893 = vld [vmem:[#allocation2 + $0xa0] sm:$0xff]
      %v1894 = vld [vmem:[#allocation2 + $0xa8] sm:$0xff]
      %v1895 = vld [vmem:[#allocation2 + $0xb0] sm:$0xff]
      %v1896 = vld [vmem:[#allocation2 + $0xb8] sm:$0xff]
      %v1897 = vld [vmem:[#allocation2 + $0xc0] sm:$0xff]
      %v1898 = vld [vmem:[#allocation2 + $0xc8] sm:$0xff]
      %v1899 = vld [vmem:[#allocation2 + $0xd0] sm:$0xff]
      %v1900 = vld [vmem:[#allocation2 + $0xd8] sm:$0xff]
      %v1901 = vld [vmem:[#allocation2 + $0xe0] sm:$0xff]
      %v1902 = vld [vmem:[#allocation2 + $0xe8] sm:$0xff]
      %v1903 = vld [vmem:[#allocation2 + $0xf0] sm:$0xff]
      %v1904 = vld [vmem:[#allocation2 + $0xf8] sm:$0xff]
      %v1905 = vld [vmem:[#allocation2 + $0x100] sm:$0xff]
      %v1906 = vld [vmem:[#allocation2 + $0x108] sm:$0xff]
      %v1907 = vld [vmem:[#allocation2 + $0x110] sm:$0xff]
      %v1908 = vld [vmem:[#allocation2 + $0x118] sm:$0xff]
      %v1909 = vld [vmem:[#allocation2 + $0x120] sm:$0xff]
      %v1910 = vld [vmem:[#allocation2 + $0x128] sm:$0xff]
      %v1911 = vld [vmem:[#allocation2 + $0x130] sm:$0xff]
      %v1912 = vld [vmem:[#allocation2 + $0x138] sm:$0xff]
      %v1913 = vld [vmem:[#allocation2 + $0x140] sm:$0xff]
      %v1914 = vld [vmem:[#allocation2 + $0x148] sm:$0xff]
      %v1915 = vld [vmem:[#allocation2 + $0x150] sm:$0xff]
      %v1916 = vld [vmem:[#allocation2 + $0x158] sm:$0xff]
      %v1917 = vld [vmem:[#allocation2 + $0x160] sm:$0xff]
      %v1918 = vld [vmem:[#allocation2 + $0x168] sm:$0xff]
      %v1919 = vld [vmem:[#allocation2 + $0x170] sm:$0xff]
      %v1920 = vld [vmem:[#allocation2 + $0x178] sm:$0xff]
      %v1921 = vld [vmem:[%s1] sm:$0xf]
      %v1922 = vld [vmem:[%s1 + $0x4] sm:$0xf]
      %v1923 = vld [vmem:[%s1 + $0x8] sm:$0xf]
      %v1924 = vld [vmem:[%s1 + $0xc] sm:$0xf]
      %v1925 = vld [vmem:[%s1 + $0x10] sm:$0xf]
      %v1926 = vld [vmem:[%s1 + $0x14] sm:$0xf]
      %v1927 = vld [vmem:[%s1 + $0x18] sm:$0xf]
      %v1928 = vld [vmem:[%s1 + $0x1c] sm:$0xf]
      %v1929 = vld [vmem:[%s1 + $0x20] sm:$0xf]
      %v1930 = vld [vmem:[%s1 + $0x24] sm:$0xf]
      %v1931 = vld [vmem:[%s1 + $0x28] sm:$0xf]
      %v1932 = vld [vmem:[%s1 + $0x2c] sm:$0xf]
      %v1933 = vld [vmem:[%s1 + $0x30] sm:$0xf]
      %v1934 = vld [vmem:[%s1 + $0x34] sm:$0xf]
      %v1935 = vld [vmem:[%s1 + $0x38] sm:$0xf]
      %v1936 = vld [vmem:[%s1 + $0x3c] sm:$0xf]
      %v1937 = vld [vmem:[%s1 + $0x40] sm:$0xf]
      %v1938 = vld [vmem:[%s1 + $0x44] sm:$0xf]
      %v1939 = vld [vmem:[%s1 + $0x48] sm:$0xf]
      %v1940 = vld [vmem:[%s1 + $0x4c] sm:$0xf]
      %v1941 = vld [vmem:[%s1 + $0x50] sm:$0xf]
      %v1942 = vld [vmem:[%s1 + $0x54] sm:$0xf]
      %v1943 = vld [vmem:[%s1 + $0x58] sm:$0xf]
      %v1944 = vld [vmem:[%s1 + $0x5c] sm:$0xf]
      %v1945 = vld [vmem:[%s1 + $0x60] sm:$0xf]
      %v1946 = vld [vmem:[%s1 + $0x64] sm:$0xf]
      %v1947 = vld [vmem:[%s1 + $0x68] sm:$0xf]
      %v1948 = vld [vmem:[%s1 + $0x6c] sm:$0xf]
      %v1949 = vld [vmem:[%s1 + $0x70] sm:$0xf]
      %v1950 = vld [vmem:[%s1 + $0x74] sm:$0xf]
      %v1951 = vld [vmem:[%s1 + $0x78] sm:$0xf]
      %v1952 = vld [vmem:[%s1 + $0x7c] sm:$0xf]
      %v1953 = vld [vmem:[%s1 + $0x80] sm:$0xf]
      %v1954 = vld [vmem:[%s1 + $0x84] sm:$0xf]
      %v1955 = vld [vmem:[%s1 + $0x88] sm:$0xf]
      %v1956 = vld [vmem:[%s1 + $0x8c] sm:$0xf]
      %v1957 = vld [vmem:[%s1 + $0x90] sm:$0xf]
      %v1958 = vld [vmem:[%s1 + $0x94] sm:$0xf]
      %v1959 = vld [vmem:[%s1 + $0x98] sm:$0xf]
      %v1960 = vld [vmem:[%s1 + $0x9c] sm:$0xf]
      %v1961 = vld [vmem:[%s1 + $0xa0] sm:$0xf]
      %v1962 = vld [vmem:[%s1 + $0xa4] sm:$0xf]
      %v1963 = vld [vmem:[%s1 + $0xa8] sm:$0xf]
      %v1964 = vld [vmem:[%s1 + $0xac] sm:$0xf]
      %v1965 = vld [vmem:[%s1 + $0xb0] sm:$0xf]
      %v1966 = vld [vmem:[%s1 + $0xb4] sm:$0xf]
      %v1967 = vld [vmem:[%s1 + $0xb8] sm:$0xf]
      %v1968 = vld [vmem:[%s1 + $0xbc] sm:$0xf]
      %v1969 = vld [vmem:[#allocation2 + $0x180] sm:$0xff]
      %v1970 = vld [vmem:[#allocation2 + $0x188] sm:$0xff]
      %v1971 = vld [vmem:[#allocation2 + $0x190] sm:$0xff]
      %v1972 = vld [vmem:[%s1 + $0xc0] sm:$0xf]
      %v1973 = vld [vmem:[%s1 + $0xc4] sm:$0xf]
      %v1974 = vld [vmem:[%s1 + $0xc8] sm:$0xf]
      %v1975 = vld [vmem:[%s1 + $0xcc] sm:$0xf]
      %v1976 = vld [vmem:[%s1 + $0xd0] sm:$0xf]
      %v1977 = vld [vmem:[%s1 + $0xd4] sm:$0xf]
      %v1978 = vld [vmem:[%s1 + $0xd8] sm:$0xf]
      %v1979 = vld [vmem:[%s1 + $0xdc] sm:$0xf]
      %v1980 = vld [vmem:[%s1 + $0xe0] sm:$0xf]
      %v1981 = vld [vmem:[%s1 + $0xe4] sm:$0xf]
      %v1982 = vld [vmem:[%s1 + $0xe8] sm:$0xf]
      %v1983 = vld [vmem:[%s1 + $0xec] sm:$0xf]
      %v1984 = vld [vmem:[%s1 + $0xf0] sm:$0xf]
      %v1985 = vld [vmem:[%s1 + $0xf4] sm:$0xf]
      %v1986 = vld [vmem:[%s1 + $0xf8] sm:$0xf]
      %v1987 = vld [vmem:[%s1 + $0xfc] sm:$0xf]
      %v1988 = vld [vmem:[%s1 + $0x100] sm:$0xf]
      %v1989 = vld [vmem:[%s1 + $0x104] sm:$0xf]
      %v1990 = vld [vmem:[%s1 + $0x108] sm:$0xf]
      %v1991 = vld [vmem:[%s1 + $0x10c] sm:$0xf]
      %v1992 = vld [vmem:[%s1 + $0x110] sm:$0xf]
      %v1993 = vld [vmem:[%s1 + $0x114] sm:$0xf]
      %v1994 = vld [vmem:[%s1 + $0x118] sm:$0xf]
      %v1995 = vld [vmem:[%s1 + $0x11c] sm:$0xf]
      %v1996 = vld [vmem:[%s1 + $0x120] sm:$0xf]
      %v1997 = vld [vmem:[%s1 + $0x124] sm:$0xf]
      %v1998 = vld [vmem:[%s1 + $0x128] sm:$0xf]
      %v1999 = vld [vmem:[%s1 + $0x12c] sm:$0xf]
      %v2000 = vld [vmem:[%s1 + $0x130] sm:$0xf]
      %v2001 = vld [vmem:[%s1 + $0x134] sm:$0xf]
      %v2002 = vld [vmem:[%s1 + $0x138] sm:$0xf]
      %v2003 = vld [vmem:[%s1 + $0x13c] sm:$0xf]
      %v2004 = vld [vmem:[%s1 + $0x140] sm:$0xf]
      %v2005 = vld [vmem:[%s1 + $0x144] sm:$0xf]
      %v2006 = vld [vmem:[%s1 + $0x148] sm:$0xf]
      %v2007 = vld [vmem:[%s1 + $0x14c] sm:$0xf]
      %v2008 = vld [vmem:[%s1 + $0x150] sm:$0xf]
      %v2009 = vld [vmem:[%s1 + $0x154] sm:$0xf]
      %v2010 = vld [vmem:[%s1 + $0x158] sm:$0xf]
      %v2011 = vld [vmem:[%s1 + $0x15c] sm:$0xf]
      %v2012 = vld [vmem:[%s1 + $0x160] sm:$0xf]
      %v2013 = vld [vmem:[%s1 + $0x164] sm:$0xf]
      %v2014 = vld [vmem:[%s1 + $0x168] sm:$0xf]
      %v2015 = vld [vmem:[%s1 + $0x16c] sm:$0xf]
      %v2016 = vld [vmem:[%s1 + $0x170] sm:$0xf]
      %v2017 = vld [vmem:[%s1 + $0x174] sm:$0xf]
      %v2018 = vld [vmem:[%s1 + $0x178] sm:$0xf]
      %v2019 = vld [vmem:[%s1 + $0x17c] sm:$0xf]
      %v2068 = vunpack.c.l.b16 %v1972
      %v2069 = vunpack.c.l.b16 %v1973
      %v2070 = vunpack.c.l.b16 %v1974
      %v2071 = vunpack.c.l.b16 %v1975
      %v2072 = vunpack.c.l.b16 %v1976
      %v2073 = vunpack.c.l.b16 %v1977
      %v2074 = vunpack.c.l.b16 %v1978
      %v2075 = vunpack.c.l.b16 %v1979
      %v2076 = vunpack.c.l.b16 %v1980
      %v2077 = vunpack.c.l.b16 %v1981
      %v2078 = vunpack.c.l.b16 %v1982
      %v2079 = vunpack.c.l.b16 %v1983
      %v2080 = vunpack.c.l.b16 %v1984
      %v2081 = vunpack.c.l.b16 %v1985
      %v2082 = vunpack.c.l.b16 %v1986
      %v2083 = vunpack.c.l.b16 %v1987
      %v2084 = vunpack.c.l.b16 %v1988
      %v2085 = vunpack.c.l.b16 %v1989
      %v2086 = vunpack.c.l.b16 %v1990
      %v2087 = vunpack.c.l.b16 %v1991
      %v2088 = vunpack.c.l.b16 %v1992
      %v2089 = vunpack.c.l.b16 %v1993
      %v2090 = vunpack.c.l.b16 %v1994
      %v2091 = vunpack.c.l.b16 %v1995
      %v2092 = vunpack.c.l.b16 %v1996
      %v2093 = vunpack.c.l.b16 %v1997
      %v2094 = vunpack.c.l.b16 %v1998
      %v2095 = vunpack.c.l.b16 %v1999
      %v2096 = vunpack.c.l.b16 %v2000
      %v2097 = vunpack.c.l.b16 %v2001
      %v2098 = vunpack.c.l.b16 %v2002
      %v2099 = vunpack.c.l.b16 %v2003
      %v2100 = vunpack.c.l.b16 %v2004
      %v2101 = vunpack.c.l.b16 %v2005
      %v2102 = vunpack.c.l.b16 %v2006
      %v2103 = vunpack.c.l.b16 %v2007
      %v2104 = vunpack.c.l.b16 %v2008
      %v2105 = vunpack.c.l.b16 %v2009
      %v2106 = vunpack.c.l.b16 %v2010
      %v2107 = vunpack.c.l.b16 %v2011
      %v2108 = vunpack.c.l.b16 %v2012
      %v2109 = vunpack.c.l.b16 %v2013
      %v2110 = vunpack.c.l.b16 %v2014
      %v2111 = vunpack.c.l.b16 %v2015
      %v2112 = vunpack.c.l.b16 %v2016
      %v2113 = vunpack.c.l.b16 %v2017
      %v2114 = vunpack.c.l.b16 %v2018
      %v2115 = vunpack.c.l.b16 %v2019
      %v2116 = vpack.c.b16 %v2069, %v2068
      %v2117 = vpack.c.b16 %v2071, %v2070
      %v2118 = vpack.c.b16 %v2073, %v2072
      %v2119 = vpack.c.b16 %v2075, %v2074
      %v2120 = vpack.c.b16 %v2077, %v2076
      %v2121 = vpack.c.b16 %v2079, %v2078
      %v2122 = vpack.c.b16 %v2081, %v2080
      %v2123 = vpack.c.b16 %v2083, %v2082
      %v2124 = vpack.c.b16 %v2085, %v2084
      %v2125 = vpack.c.b16 %v2087, %v2086
      %v2126 = vpack.c.b16 %v2089, %v2088
      %v2127 = vpack.c.b16 %v2091, %v2090
      %v2128 = vpack.c.b16 %v2093, %v2092
      %v2129 = vpack.c.b16 %v2095, %v2094
      %v2130 = vpack.c.b16 %v2097, %v2096
      %v2131 = vpack.c.b16 %v2099, %v2098
      %v2132 = vpack.c.b16 %v2101, %v2100
      %v2133 = vpack.c.b16 %v2103, %v2102
      %v2134 = vpack.c.b16 %v2105, %v2104
      %v2135 = vpack.c.b16 %v2107, %v2106
      %v2136 = vpack.c.b16 %v2109, %v2108
      %v2137 = vpack.c.b16 %v2111, %v2110
      %v2138 = vpack.c.b16 %v2113, %v2112
      %v2139 = vpack.c.b16 %v2115, %v2114
      %2164 = vmatprep.subr.bf16.mxu0 0
      %2165 = vmatpush1.bf16.msra.mxu0 %v2116
      %2166 = vmatprep.subr.bf16.mxu0 0
      %2167 = vmatpush1.bf16.msra.mxu0 %v2117
      %2168 = vmatprep.subr.bf16.mxu0 0
      %2169 = vmatpush1.bf16.msra.mxu0 %v2118
      %2170 = vmatprep.subr.bf16.mxu0 0
      %2171 = vmatpush1.bf16.msra.mxu0 %v2119
      %2172 = vmatprep.subr.bf16.mxu0 0
      %2173 = vmatpush1.bf16.msra.mxu0 %v2120
      %2174 = vmatprep.subr.bf16.mxu0 0
      %2175 = vmatpush1.bf16.msra.mxu0 %v2121
      %2176 = vmatprep.subr.bf16.mxu0 0
      %2177 = vmatpush1.bf16.msra.mxu0 %v2122
      %2178 = vmatprep.subr.bf16.mxu0 0
      %2179 = vmatpush1.bf16.msra.mxu0 %v2123
      %2180 = vmatprep.subr.bf16.mxu0 0
      %2181 = vmatpush1.bf16.msra.mxu0 %v2124
      %2182 = vmatprep.subr.bf16.mxu0 0
      %2183 = vmatpush1.bf16.msra.mxu0 %v2125
      %2184 = vmatprep.subr.bf16.mxu0 0
      %2185 = vmatpush1.bf16.msra.mxu0 %v2126
      %2186 = vmatprep.subr.bf16.mxu0 0
      %2187 = vmatpush1.bf16.msra.mxu0 %v2127
      %2188 = vmatprep.subr.bf16.mxu0 0
      %2189 = vmatpush1.bf16.msra.mxu0 %v2128
      %2190 = vmatprep.subr.bf16.mxu0 0
      %2191 = vmatpush1.bf16.msra.mxu0 %v2129
      %2192 = vmatprep.subr.bf16.mxu0 0
      %2193 = vmatpush1.bf16.msra.mxu0 %v2130
      %2194 = vmatprep.subr.bf16.mxu0 0
      %2195 = vmatpush1.bf16.msra.mxu0 %v2131
      %2196 = vmatprep.mubr.bf16.mxu0 %v1877
      %2197 = vmatmul.mubr.bf16.gmra.mrb[0].mxu0 %v1876
      %v2198 = vpop.f32.mrb[0].mxu0
      %v2199 = vadd.f32 0.0, %v2198
      %v2200 = vpop.f32.mrb[0].mxu0
      %v2201 = vpop.f32.mrb[0].mxu0
      %v2202 = vadd.f32 0.0, %v2201
      %v2203 = vpop.f32.mrb[0].mxu0
      %2204 = vmatprep.mubr.bf16.mxu0 %v1880
      %2205 = vmatmul.mubr.bf16.gmra.mrb[0].mxu0 %v1879
      %v2206 = vpop.f32.mrb[0].mxu0
      %v2207 = vadd.f32 0.0, %v2206
      %v2208 = vpop.f32.mrb[0].mxu0
      %v2209 = vpop.f32.mrb[0].mxu0
      %v2210 = vadd.f32 0.0, %v2209
      %v2211 = vpop.f32.mrb[0].mxu0
      %2212 = vmatprep.mubr.bf16.mxu0 %v1883
      %2213 = vmatmul.mubr.bf16.gmra.mrb[0].mxu0 %v1882
      %v2214 = vpop.f32.mrb[0].mxu0
      %v2215 = vadd.f32 0.0, %v2214
      %v2216 = vpop.f32.mrb[0].mxu0
      %v2217 = vpop.f32.mrb[0].mxu0
      %v2218 = vadd.f32 0.0, %v2217
      %v2219 = vpop.f32.mrb[0].mxu0
      %2220 = vmatprep.mubr.bf16.mxu0 %v1886
      %2221 = vmatmul.mubr.bf16.gmra.mrb[0].mxu0 %v1885
      %v2222 = vpop.f32.mrb[0].mxu0
      %v2223 = vadd.f32 0.0, %v2222
      %v2224 = vpop.f32.mrb[0].mxu0
      %v2225 = vpop.f32.mrb[0].mxu0
      %v2226 = vadd.f32 0.0, %v2225
      %v2227 = vpop.f32.mrb[0].mxu0
      %2228 = vmatprep.mubr.bf16.mxu0 %v1889
      %2229 = vmatmul.mubr.bf16.gmra.mrb[0].mxu0 %v1888
      %v2230 = vpop.f32.mrb[0].mxu0
      %v2231 = vadd.f32 0.0, %v2230
      %v2232 = vpop.f32.mrb[0].mxu0
      %v2233 = vpop.f32.mrb[0].mxu0
      %v2234 = vadd.f32 0.0, %v2233
      %v2235 = vpop.f32.mrb[0].mxu0
      %2236 = vmatprep.mubr.bf16.mxu0 %v1892
      %2237 = vmatmul.mubr.bf16.gmra.mrb[0].mxu0 %v1891
      %v2238 = vpop.f32.mrb[0].mxu0
      %v2239 = vadd.f32 0.0, %v2238
      %v2240 = vpop.f32.mrb[0].mxu0
      %v2241 = vpop.f32.mrb[0].mxu0
      %v2242 = vadd.f32 0.0, %v2241
      %v2243 = vpop.f32.mrb[0].mxu0
      %2244 = vmatprep.mubr.bf16.mxu0 %v1895
      %2245 = vmatmul.mubr.bf16.gmra.mrb[0].mxu0 %v1894
      %v2246 = vpop.f32.mrb[0].mxu0
      %v2247 = vadd.f32 0.0, %v2246
      %v2248 = vpop.f32.mrb[0].mxu0
      %v2249 = vpop.f32.mrb[0].mxu0
      %v2250 = vadd.f32 0.0, %v2249
      %v2251 = vpop.f32.mrb[0].mxu0
      %2252 = vmatprep.mubr.bf16.mxu0 %v1898
      %2253 = vmatmul.mubr.bf16.gmra.mrb[0].mxu0 %v1897
      %v2254 = vpop.f32.mrb[0].mxu0
      %v2255 = vadd.f32 0.0, %v2254
      %v2256 = vpop.f32.mrb[0].mxu0
      %v2257 = vpop.f32.mrb[0].mxu0
      %v2258 = vadd.f32 0.0, %v2257
      %v2259 = vpop.f32.mrb[0].mxu0
      %2260 = vmatprep.mubr.bf16.mxu0 %v1901
      %2261 = vmatmul.mubr.bf16.gmra.mrb[0].mxu0 %v1900
      %v2262 = vpop.f32.mrb[0].mxu0
      %v2263 = vadd.f32 0.0, %v2262
      %v2264 = vpop.f32.mrb[0].mxu0
      %v2265 = vpop.f32.mrb[0].mxu0
      %v2266 = vadd.f32 0.0, %v2265
      %v2267 = vpop.f32.mrb[0].mxu0
      %2268 = vmatprep.mubr.bf16.mxu0 %v1904
      %2269 = vmatmul.mubr.bf16.gmra.mrb[0].mxu0 %v1903
      %v2270 = vpop.f32.mrb[0].mxu0
      %v2271 = vadd.f32 0.0, %v2270
      %v2272 = vpop.f32.mrb[0].mxu0
      %v2273 = vpop.f32.mrb[0].mxu0
      %v2274 = vadd.f32 0.0, %v2273
      %v2275 = vpop.f32.mrb[0].mxu0
      %2276 = vmatprep.mubr.bf16.mxu0 %v1907
      %2277 = vmatmul.mubr.bf16.gmra.mrb[0].mxu0 %v1906
      %v2278 = vpop.f32.mrb[0].mxu0
      %v2279 = vadd.f32 0.0, %v2278
      %v2280 = vpop.f32.mrb[0].mxu0
      %v2281 = vpop.f32.mrb[0].mxu0
      %v2282 = vadd.f32 0.0, %v2281
      %v2283 = vpop.f32.mrb[0].mxu0
      %2284 = vmatprep.mubr.bf16.mxu0 %v1910
      %2285 = vmatmul.mubr.bf16.gmra.mrb[0].mxu0 %v1909
      %v2286 = vpop.f32.mrb[0].mxu0
      %v2287 = vadd.f32 0.0, %v2286
      %v2288 = vpop.f32.mrb[0].mxu0
      %v2289 = vpop.f32.mrb[0].mxu0
      %v2290 = vadd.f32 0.0, %v2289
      %v2291 = vpop.f32.mrb[0].mxu0
      %2292 = vmatprep.mubr.bf16.mxu0 %v1913
      %2293 = vmatmul.mubr.bf16.gmra.mrb[0].mxu0 %v1912
      %v2294 = vpop.f32.mrb[0].mxu0
      %v2295 = vadd.f32 0.0, %v2294
      %v2296 = vpop.f32.mrb[0].mxu0
      %v2297 = vpop.f32.mrb[0].mxu0
      %v2298 = vadd.f32 0.0, %v2297
      %v2299 = vpop.f32.mrb[0].mxu0
      %2300 = vmatprep.mubr.bf16.mxu0 %v1916
      %2301 = vmatmul.mubr.bf16.gmra.mrb[0].mxu0 %v1915
      %v2302 = vpop.f32.mrb[0].mxu0
      %v2303 = vadd.f32 0.0, %v2302
      %v2304 = vpop.f32.mrb[0].mxu0
      %v2305 = vpop.f32.mrb[0].mxu0
      %v2306 = vadd.f32 0.0, %v2305
      %v2307 = vpop.f32.mrb[0].mxu0
      %2308 = vmatprep.mubr.bf16.mxu0 %v1919
      %2309 = vmatmul.mubr.bf16.gmra.mrb[0].mxu0 %v1918
      %v2310 = vpop.f32.mrb[0].mxu0
      %v2311 = vadd.f32 0.0, %v2310
      %v2312 = vpop.f32.mrb[0].mxu0
      %v2313 = vpop.f32.mrb[0].mxu0
      %v2314 = vadd.f32 0.0, %v2313
      %v2315 = vpop.f32.mrb[0].mxu0
      %2316 = vmatprep.mubr.bf16.mxu0 %v1970
      %2317 = vmatmul.mubr.bf16.gmra.mrb[0].mxu0 %v1969
      %v2318 = vpop.f32.mrb[0].mxu0
      %v2319 = vadd.f32 0.0, %v2318
      %v2320 = vpop.f32.mrb[0].mxu0
      %v2321 = vpop.f32.mrb[0].mxu0
      %v2322 = vadd.f32 0.0, %v2321
      %v2323 = vpop.f32.mrb[0].mxu0
      %2324 = vdwg.mxu0
      %2325 = vmatprep.subr.bf16.mxu0 0
      %2326 = vmatpush1.bf16.msra.mxu0 %v2132
      %2327 = vmatprep.subr.bf16.mxu0 0
      %2328 = vmatpush1.bf16.msra.mxu0 %v2133
      %2329 = vmatprep.subr.bf16.mxu0 0
      %2330 = vmatpush1.bf16.msra.mxu0 %v2134
      %2331 = vmatprep.subr.bf16.mxu0 0
      %2332 = vmatpush1.bf16.msra.mxu0 %v2135
      %2333 = vmatprep.subr.bf16.mxu0 0
      %2334 = vmatpush1.bf16.msra.mxu0 %v2136
      %2335 = vmatprep.subr.bf16.mxu0 0
      %2336 = vmatpush1.bf16.msra.mxu0 %v2137
      %2337 = vmatprep.subr.bf16.mxu0 0
      %2338 = vmatpush1.bf16.msra.mxu0 %v2138
      %2339 = vmatprep.subr.bf16.mxu0 0
      %2340 = vmatpush1.bf16.msra.mxu0 %v2139
      %2341 = vmatprep.subr.bf16.mxu0 0
      %2342 = vmatpush1.bf16.msra.mxu0 0
      %2343 = vmatprep.subr.bf16.mxu0 0
      %2344 = vmatpush1.bf16.msra.mxu0 0
      %2345 = vmatprep.subr.bf16.mxu0 0
      %2346 = vmatpush1.bf16.msra.mxu0 0
      %2347 = vmatprep.subr.bf16.mxu0 0
      %2348 = vmatpush1.bf16.msra.mxu0 0
      %2349 = vmatprep.subr.bf16.mxu0 0
      %2350 = vmatpush1.bf16.msra.mxu0 0
      %2351 = vmatprep.subr.bf16.mxu0 0
      %2352 = vmatpush1.bf16.msra.mxu0 0
      %2353 = vmatprep.subr.bf16.mxu0 0
      %2354 = vmatpush1.bf16.msra.mxu0 0
      %2355 = vmatprep.subr.bf16.mxu0 0
      %2356 = vmatpush1.bf16.msra.mxu0 0
      %2357 = vmatprep.mubr.bf16.mxu0 0
      %2358 = vmatmul.mubr.bf16.gmra.mrb[0].mxu0 %v1878
      %v2359 = vpop.f32.mrb[0].mxu0
      %v2360 = vadd.f32 %v2199, %v2359
      %v2361 = vpop.f32.mrb[0].mxu0
      %v2362 = vpop.f32.mrb[0].mxu0
      %v2363 = vadd.f32 %v2202, %v2362
      %v2364 = vpop.f32.mrb[0].mxu0
      %2365 = vmatprep.mubr.bf16.mxu0 0
      %2366 = vmatmul.mubr.bf16.gmra.mrb[0].mxu0 %v1881
      %v2367 = vpop.f32.mrb[0].mxu0
      %v2368 = vadd.f32 %v2207, %v2367
      %v2369 = vpop.f32.mrb[0].mxu0
      %v2370 = vpop.f32.mrb[0].mxu0
      %v2371 = vadd.f32 %v2210, %v2370
      %v2372 = vpop.f32.mrb[0].mxu0
      %2373 = vmatprep.mubr.bf16.mxu0 0
      %2374 = vmatmul.mubr.bf16.gmra.mrb[0].mxu0 %v1884
      %v2375 = vpop.f32.mrb[0].mxu0
      %v2376 = vadd.f32 %v2215, %v2375
      %v2377 = vpop.f32.mrb[0].mxu0
      %v2378 = vpop.f32.mrb[0].mxu0
      %v2379 = vadd.f32 %v2218, %v2378
      %v2380 = vpop.f32.mrb[0].mxu0
      %2381 = vmatprep.mubr.bf16.mxu0 0
      %2382 = vmatmul.mubr.bf16.gmra.mrb[0].mxu0 %v1887
      %v2383 = vpop.f32.mrb[0].mxu0
      %v2384 = vadd.f32 %v2223, %v2383
      %v2385 = vpop.f32.mrb[0].mxu0
      %v2386 = vpop.f32.mrb[0].mxu0
      %v2387 = vadd.f32 %v2226, %v2386
      %v2388 = vpop.f32.mrb[0].mxu0
      %2389 = vmatprep.mubr.bf16.mxu0 0
      %2390 = vmatmul.mubr.bf16.gmra.mrb[0].mxu0 %v1890
      %v2391 = vpop.f32.mrb[0].mxu0
      %v2392 = vadd.f32 %v2231, %v2391
      %v2393 = vpop.f32.mrb[0].mxu0
      %v2394 = vpop.f32.mrb[0].mxu0
      %v2395 = vadd.f32 %v2234, %v2394
      %v2396 = vpop.f32.mrb[0].mxu0
      %2397 = vmatprep.mubr.bf16.mxu0 0
      %2398 = vmatmul.mubr.bf16.gmra.mrb[0].mxu0 %v1893
      %v2399 = vpop.f32.mrb[0].mxu0
      %v2400 = vadd.f32 %v2239, %v2399
      %v2401 = vpop.f32.mrb[0].mxu0
      %v2402 = vpop.f32.mrb[0].mxu0
      %v2403 = vadd.f32 %v2242, %v2402
      %v2404 = vpop.f32.mrb[0].mxu0
      %2405 = vmatprep.mubr.bf16.mxu0 0
      %2406 = vmatmul.mubr.bf16.gmra.mrb[0].mxu0 %v1896
      %v2407 = vpop.f32.mrb[0].mxu0
      %v2408 = vadd.f32 %v2247, %v2407
      %v2409 = vpop.f32.mrb[0].mxu0
      %v2410 = vpop.f32.mrb[0].mxu0
      %v2411 = vadd.f32 %v2250, %v2410
      %v2412 = vpop.f32.mrb[0].mxu0
      %2413 = vmatprep.mubr.bf16.mxu0 0
      %2414 = vmatmul.mubr.bf16.gmra.mrb[0].mxu0 %v1899
      %v2415 = vpop.f32.mrb[0].mxu0
      %v2416 = vadd.f32 %v2255, %v2415
      %v2417 = vpop.f32.mrb[0].mxu0
      %v2418 = vpop.f32.mrb[0].mxu0
      %v2419 = vadd.f32 %v2258, %v2418
      %v2420 = vpop.f32.mrb[0].mxu0
      %2421 = vmatprep.mubr.bf16.mxu0 0
      %2422 = vmatmul.mubr.bf16.gmra.mrb[0].mxu0 %v1902
      %v2423 = vpop.f32.mrb[0].mxu0
      %v2424 = vadd.f32 %v2263, %v2423
      %v2425 = vpop.f32.mrb[0].mxu0
      %v2426 = vpop.f32.mrb[0].mxu0
      %v2427 = vadd.f32 %v2266, %v2426
      %v2428 = vpop.f32.mrb[0].mxu0
      %2429 = vmatprep.mubr.bf16.mxu0 0
      %2430 = vmatmul.mubr.bf16.gmra.mrb[0].mxu0 %v1905
      %v2431 = vpop.f32.mrb[0].mxu0
      %v2432 = vadd.f32 %v2271, %v2431
      %v2433 = vpop.f32.mrb[0].mxu0
      %v2434 = vpop.f32.mrb[0].mxu0
      %v2435 = vadd.f32 %v2274, %v2434
      %v2436 = vpop.f32.mrb[0].mxu0
      %2437 = vmatprep.mubr.bf16.mxu0 0
      %2438 = vmatmul.mubr.bf16.gmra.mrb[0].mxu0 %v1908
      %v2439 = vpop.f32.mrb[0].mxu0
      %v2440 = vadd.f32 %v2279, %v2439
      %v2441 = vpop.f32.mrb[0].mxu0
      %v2442 = vpop.f32.mrb[0].mxu0
      %v2443 = vadd.f32 %v2282, %v2442
      %v2444 = vpop.f32.mrb[0].mxu0
      %2445 = vmatprep.mubr.bf16.mxu0 0
      %2446 = vmatmul.mubr.bf16.gmra.mrb[0].mxu0 %v1911
      %v2447 = vpop.f32.mrb[0].mxu0
      %v2448 = vadd.f32 %v2287, %v2447
      %v2449 = vpop.f32.mrb[0].mxu0
      %v2450 = vpop.f32.mrb[0].mxu0
      %v2451 = vadd.f32 %v2290, %v2450
      %v2452 = vpop.f32.mrb[0].mxu0
      %2453 = vmatprep.mubr.bf16.mxu0 0
      %2454 = vmatmul.mubr.bf16.gmra.mrb[0].mxu0 %v1914
      %v2455 = vpop.f32.mrb[0].mxu0
      %v2456 = vadd.f32 %v2295, %v2455
      %v2457 = vpop.f32.mrb[0].mxu0
      %v2458 = vpop.f32.mrb[0].mxu0
      %v2459 = vadd.f32 %v2298, %v2458
      %v2460 = vpop.f32.mrb[0].mxu0
      %2461 = vmatprep.mubr.bf16.mxu0 0
      %2462 = vmatmul.mubr.bf16.gmra.mrb[0].mxu0 %v1917
      %v2463 = vpop.f32.mrb[0].mxu0
      %v2464 = vadd.f32 %v2303, %v2463
      %v2465 = vpop.f32.mrb[0].mxu0
      %v2466 = vpop.f32.mrb[0].mxu0
      %v2467 = vadd.f32 %v2306, %v2466
      %v2468 = vpop.f32.mrb[0].mxu0
      %2469 = vmatprep.mubr.bf16.mxu0 0
      %2470 = vmatmul.mubr.bf16.gmra.mrb[0].mxu0 %v1920
      %v2471 = vpop.f32.mrb[0].mxu0
      %v2472 = vadd.f32 %v2311, %v2471
      %v2473 = vpop.f32.mrb[0].mxu0
      %v2474 = vpop.f32.mrb[0].mxu0
      %v2475 = vadd.f32 %v2314, %v2474
      %v2476 = vpop.f32.mrb[0].mxu0
      %2477 = vmatprep.mubr.bf16.mxu0 0
      %2478 = vmatmul.mubr.bf16.gmra.mrb[0].mxu0 %v1971
      %v2479 = vpop.f32.mrb[0].mxu0
      %v2480 = vadd.f32 %v2319, %v2479
      %v2481 = vpop.f32.mrb[0].mxu0
      %v2482 = vpop.f32.mrb[0].mxu0
      %v2483 = vadd.f32 %v2322, %v2482
      %v2484 = vpop.f32.mrb[0].mxu0
      %2485 = vdwg.mxu0
      %v2534 = vunpack.c.l.b16 %v1921
      %v2535 = vunpack.c.l.b16 %v1922
      %v2536 = vunpack.c.l.b16 %v1923
      %v2537 = vunpack.c.l.b16 %v1924
      %v2538 = vunpack.c.l.b16 %v1925
      %v2539 = vunpack.c.l.b16 %v1926
      %v2540 = vunpack.c.l.b16 %v1927
      %v2541 = vunpack.c.l.b16 %v1928
      %v2542 = vunpack.c.l.b16 %v1929
      %v2543 = vunpack.c.l.b16 %v1930
      %v2544 = vunpack.c.l.b16 %v1931
      %v2545 = vunpack.c.l.b16 %v1932
      %v2546 = vunpack.c.l.b16 %v1933
      %v2547 = vunpack.c.l.b16 %v1934
      %v2548 = vunpack.c.l.b16 %v1935
      %v2549 = vunpack.c.l.b16 %v1936
      %v2550 = vunpack.c.l.b16 %v1937
      %v2551 = vunpack.c.l.b16 %v1938
      %v2552 = vunpack.c.l.b16 %v1939
      %v2553 = vunpack.c.l.b16 %v1940
      %v2554 = vunpack.c.l.b16 %v1941
      %v2555 = vunpack.c.l.b16 %v1942
      %v2556 = vunpack.c.l.b16 %v1943
      %v2557 = vunpack.c.l.b16 %v1944
      %v2558 = vunpack.c.l.b16 %v1945
      %v2559 = vunpack.c.l.b16 %v1946
      %v2560 = vunpack.c.l.b16 %v1947
      %v2561 = vunpack.c.l.b16 %v1948
      %v2562 = vunpack.c.l.b16 %v1949
      %v2563 = vunpack.c.l.b16 %v1950
      %v2564 = vunpack.c.l.b16 %v1951
      %v2565 = vunpack.c.l.b16 %v1952
      %v2566 = vunpack.c.l.b16 %v1953
      %v2567 = vunpack.c.l.b16 %v1954
      %v2568 = vunpack.c.l.b16 %v1955
      %v2569 = vunpack.c.l.b16 %v1956
      %v2570 = vunpack.c.l.b16 %v1957
      %v2571 = vunpack.c.l.b16 %v1958
      %v2572 = vunpack.c.l.b16 %v1959
      %v2573 = vunpack.c.l.b16 %v1960
      %v2574 = vunpack.c.l.b16 %v1961
      %v2575 = vunpack.c.l.b16 %v1962
      %v2576 = vunpack.c.l.b16 %v1963
      %v2577 = vunpack.c.l.b16 %v1964
      %v2578 = vunpack.c.l.b16 %v1965
      %v2579 = vunpack.c.l.b16 %v1966
      %v2580 = vunpack.c.l.b16 %v1967
      %v2581 = vunpack.c.l.b16 %v1968
      %v2582 = vpack.c.b16 %v2535, %v2534
      %v2583 = vpack.c.b16 %v2537, %v2536
      %v2584 = vpack.c.b16 %v2539, %v2538
      %v2585 = vpack.c.b16 %v2541, %v2540
      %v2586 = vpack.c.b16 %v2543, %v2542
      %v2587 = vpack.c.b16 %v2545, %v2544
      %v2588 = vpack.c.b16 %v2547, %v2546
      %v2589 = vpack.c.b16 %v2549, %v2548
      %v2590 = vpack.c.b16 %v2551, %v2550
      %v2591 = vpack.c.b16 %v2553, %v2552
      %v2592 = vpack.c.b16 %v2555, %v2554
      %v2593 = vpack.c.b16 %v2557, %v2556
      %v2594 = vpack.c.b16 %v2559, %v2558
      %v2595 = vpack.c.b16 %v2561, %v2560
      %v2596 = vpack.c.b16 %v2563, %v2562
      %v2597 = vpack.c.b16 %v2565, %v2564
      %v2598 = vpack.c.b16 %v2567, %v2566
      %v2599 = vpack.c.b16 %v2569, %v2568
      %v2600 = vpack.c.b16 %v2571, %v2570
      %v2601 = vpack.c.b16 %v2573, %v2572
      %v2602 = vpack.c.b16 %v2575, %v2574
      %v2603 = vpack.c.b16 %v2577, %v2576
      %v2604 = vpack.c.b16 %v2579, %v2578
      %v2605 = vpack.c.b16 %v2581, %v2580
      %2630 = vmatprep.subr.bf16.mxu0 0
      %2631 = vmatpush1.bf16.msra.mxu0 %v2582
      %2632 = vmatprep.subr.bf16.mxu0 0
      %2633 = vmatpush1.bf16.msra.mxu0 %v2583
      %2634 = vmatprep.subr.bf16.mxu0 0
      %2635 = vmatpush1.bf16.msra.mxu0 %v2584
      %2636 = vmatprep.subr.bf16.mxu0 0
      %2637 = vmatpush1.bf16.msra.mxu0 %v2585
      %2638 = vmatprep.subr.bf16.mxu0 0
      %2639 = vmatpush1.bf16.msra.mxu0 %v2586
      %2640 = vmatprep.subr.bf16.mxu0 0
      %2641 = vmatpush1.bf16.msra.mxu0 %v2587
      %2642 = vmatprep.subr.bf16.mxu0 0
      %2643 = vmatpush1.bf16.msra.mxu0 %v2588
      %2644 = vmatprep.subr.bf16.mxu0 0
      %2645 = vmatpush1.bf16.msra.mxu0 %v2589
      %2646 = vmatprep.subr.bf16.mxu0 0
      %2647 = vmatpush1.bf16.msra.mxu0 %v2590
      %2648 = vmatprep.subr.bf16.mxu0 0
      %2649 = vmatpush1.bf16.msra.mxu0 %v2591
      %2650 = vmatprep.subr.bf16.mxu0 0
      %2651 = vmatpush1.bf16.msra.mxu0 %v2592
      %2652 = vmatprep.subr.bf16.mxu0 0
      %2653 = vmatpush1.bf16.msra.mxu0 %v2593
      %2654 = vmatprep.subr.bf16.mxu0 0
      %2655 = vmatpush1.bf16.msra.mxu0 %v2594
      %2656 = vmatprep.subr.bf16.mxu0 0
      %2657 = vmatpush1.bf16.msra.mxu0 %v2595
      %2658 = vmatprep.subr.bf16.mxu0 0
      %2659 = vmatpush1.bf16.msra.mxu0 %v2596
      %2660 = vmatprep.subr.bf16.mxu0 0
      %2661 = vmatpush1.bf16.msra.mxu0 %v2597
      %2662 = vmatprep.mubr.bf16.mxu0 %v1874
      %2663 = vmatmul.mubr.bf16.gmra.mrb[0].mxu0 %v1873
      %v2664 = vpop.f32.mrb[0].mxu0
      %v2665 = vadd.f32 %v2360, %v2664
      %v2666 = vpop.f32.mrb[0].mxu0
      %v2667 = vpop.f32.mrb[0].mxu0
      %v2668 = vadd.f32 %v2363, %v2667
      %v2669 = vpop.f32.mrb[0].mxu0
      %2670 = vmatprep.mubr.bf16.mxu0 %v1877
      %2671 = vmatmul.mubr.bf16.gmra.mrb[0].mxu0 %v1876
      %v2672 = vpop.f32.mrb[0].mxu0
      %v2673 = vadd.f32 %v2368, %v2672
      %v2674 = vpop.f32.mrb[0].mxu0
      %v2675 = vpop.f32.mrb[0].mxu0
      %v2676 = vadd.f32 %v2371, %v2675
      %v2677 = vpop.f32.mrb[0].mxu0
      %2678 = vmatprep.mubr.bf16.mxu0 %v1880
      %2679 = vmatmul.mubr.bf16.gmra.mrb[0].mxu0 %v1879
      %v2680 = vpop.f32.mrb[0].mxu0
      %v2681 = vadd.f32 %v2376, %v2680
      %v2682 = vpop.f32.mrb[0].mxu0
      %v2683 = vpop.f32.mrb[0].mxu0
      %v2684 = vadd.f32 %v2379, %v2683
      %v2685 = vpop.f32.mrb[0].mxu0
      %2686 = vmatprep.mubr.bf16.mxu0 %v1883
      %2687 = vmatmul.mubr.bf16.gmra.mrb[0].mxu0 %v1882
      %v2688 = vpop.f32.mrb[0].mxu0
      %v2689 = vadd.f32 %v2384, %v2688
      %v2690 = vpop.f32.mrb[0].mxu0
      %v2691 = vpop.f32.mrb[0].mxu0
      %v2692 = vadd.f32 %v2387, %v2691
      %v2693 = vpop.f32.mrb[0].mxu0
      %2694 = vmatprep.mubr.bf16.mxu0 %v1886
      %2695 = vmatmul.mubr.bf16.gmra.mrb[0].mxu0 %v1885
      %v2696 = vpop.f32.mrb[0].mxu0
      %v2697 = vadd.f32 %v2392, %v2696
      %v2698 = vpop.f32.mrb[0].mxu0
      %v2699 = vpop.f32.mrb[0].mxu0
      %v2700 = vadd.f32 %v2395, %v2699
      %v2701 = vpop.f32.mrb[0].mxu0
      %2702 = vmatprep.mubr.bf16.mxu0 %v1889
      %2703 = vmatmul.mubr.bf16.gmra.mrb[0].mxu0 %v1888
      %v2704 = vpop.f32.mrb[0].mxu0
      %v2705 = vadd.f32 %v2400, %v2704
      %v2706 = vpop.f32.mrb[0].mxu0
      %v2707 = vpop.f32.mrb[0].mxu0
      %v2708 = vadd.f32 %v2403, %v2707
      %v2709 = vpop.f32.mrb[0].mxu0
      %2710 = vmatprep.mubr.bf16.mxu0 %v1892
      %2711 = vmatmul.mubr.bf16.gmra.mrb[0].mxu0 %v1891
      %v2712 = vpop.f32.mrb[0].mxu0
      %v2713 = vadd.f32 %v2408, %v2712
      %v2714 = vpop.f32.mrb[0].mxu0
      %v2715 = vpop.f32.mrb[0].mxu0
      %v2716 = vadd.f32 %v2411, %v2715
      %v2717 = vpop.f32.mrb[0].mxu0
      %2718 = vmatprep.mubr.bf16.mxu0 %v1895
      %2719 = vmatmul.mubr.bf16.gmra.mrb[0].mxu0 %v1894
      %v2720 = vpop.f32.mrb[0].mxu0
      %v2721 = vadd.f32 %v2416, %v2720
      %v2722 = vpop.f32.mrb[0].mxu0
      %v2723 = vpop.f32.mrb[0].mxu0
      %v2724 = vadd.f32 %v2419, %v2723
      %v2725 = vpop.f32.mrb[0].mxu0
      %2726 = vmatprep.mubr.bf16.mxu0 %v1898
      %2727 = vmatmul.mubr.bf16.gmra.mrb[0].mxu0 %v1897
      %v2728 = vpop.f32.mrb[0].mxu0
      %v2729 = vadd.f32 %v2424, %v2728
      %v2730 = vpop.f32.mrb[0].mxu0
      %v2731 = vpop.f32.mrb[0].mxu0
      %v2732 = vadd.f32 %v2427, %v2731
      %v2733 = vpop.f32.mrb[0].mxu0
      %2734 = vmatprep.mubr.bf16.mxu0 %v1901
      %2735 = vmatmul.mubr.bf16.gmra.mrb[0].mxu0 %v1900
      %v2736 = vpop.f32.mrb[0].mxu0
      %v2737 = vadd.f32 %v2432, %v2736
      %v2738 = vpop.f32.mrb[0].mxu0
      %v2739 = vpop.f32.mrb[0].mxu0
      %v2740 = vadd.f32 %v2435, %v2739
      %v2741 = vpop.f32.mrb[0].mxu0
      %2742 = vmatprep.mubr.bf16.mxu0 %v1904
      %2743 = vmatmul.mubr.bf16.gmra.mrb[0].mxu0 %v1903
      %v2744 = vpop.f32.mrb[0].mxu0
      %v2745 = vadd.f32 %v2440, %v2744
      %v2746 = vpop.f32.mrb[0].mxu0
      %v2747 = vpop.f32.mrb[0].mxu0
      %v2748 = vadd.f32 %v2443, %v2747
      %v2749 = vpop.f32.mrb[0].mxu0
      %2750 = vmatprep.mubr.bf16.mxu0 %v1907
      %2751 = vmatmul.mubr.bf16.gmra.mrb[0].mxu0 %v1906
      %v2752 = vpop.f32.mrb[0].mxu0
      %v2753 = vadd.f32 %v2448, %v2752
      %v2754 = vpop.f32.mrb[0].mxu0
      %v2755 = vpop.f32.mrb[0].mxu0
      %v2756 = vadd.f32 %v2451, %v2755
      %v2757 = vpop.f32.mrb[0].mxu0
      %2758 = vmatprep.mubr.bf16.mxu0 %v1910
      %2759 = vmatmul.mubr.bf16.gmra.mrb[0].mxu0 %v1909
      %v2760 = vpop.f32.mrb[0].mxu0
      %v2761 = vadd.f32 %v2456, %v2760
      %v2762 = vpop.f32.mrb[0].mxu0
      %v2763 = vpop.f32.mrb[0].mxu0
      %v2764 = vadd.f32 %v2459, %v2763
      %v2765 = vpop.f32.mrb[0].mxu0
      %2766 = vmatprep.mubr.bf16.mxu0 %v1913
      %2767 = vmatmul.mubr.bf16.gmra.mrb[0].mxu0 %v1912
      %v2768 = vpop.f32.mrb[0].mxu0
      %v2769 = vadd.f32 %v2464, %v2768
      %v2770 = vpop.f32.mrb[0].mxu0
      %v2771 = vpop.f32.mrb[0].mxu0
      %v2772 = vadd.f32 %v2467, %v2771
      %v2773 = vpop.f32.mrb[0].mxu0
      %2774 = vmatprep.mubr.bf16.mxu0 %v1916
      %2775 = vmatmul.mubr.bf16.gmra.mrb[0].mxu0 %v1915
      %v2776 = vpop.f32.mrb[0].mxu0
      %v2777 = vadd.f32 %v2472, %v2776
      %v2778 = vpop.f32.mrb[0].mxu0
      %v2779 = vpop.f32.mrb[0].mxu0
      %v2780 = vadd.f32 %v2475, %v2779
      %v2781 = vpop.f32.mrb[0].mxu0
      %2782 = vmatprep.mubr.bf16.mxu0 %v1919
      %2783 = vmatmul.mubr.bf16.gmra.mrb[0].mxu0 %v1918
      %v2784 = vpop.f32.mrb[0].mxu0
      %v2785 = vadd.f32 %v2480, %v2784
      %v2786 = vpop.f32.mrb[0].mxu0
      %v2787 = vpop.f32.mrb[0].mxu0
      %v2788 = vadd.f32 %v2483, %v2787
      %v2789 = vpop.f32.mrb[0].mxu0
      %2790 = vdwg.mxu0
      %2791 = vmatprep.subr.bf16.mxu0 0
      %2792 = vmatpush1.bf16.msra.mxu0 %v2598
      %2793 = vmatprep.subr.bf16.mxu0 0
      %2794 = vmatpush1.bf16.msra.mxu0 %v2599
      %2795 = vmatprep.subr.bf16.mxu0 0
      %2796 = vmatpush1.bf16.msra.mxu0 %v2600
      %2797 = vmatprep.subr.bf16.mxu0 0
      %2798 = vmatpush1.bf16.msra.mxu0 %v2601
      %2799 = vmatprep.subr.bf16.mxu0 0
      %2800 = vmatpush1.bf16.msra.mxu0 %v2602
      %2801 = vmatprep.subr.bf16.mxu0 0
      %2802 = vmatpush1.bf16.msra.mxu0 %v2603
      %2803 = vmatprep.subr.bf16.mxu0 0
      %2804 = vmatpush1.bf16.msra.mxu0 %v2604
      %2805 = vmatprep.subr.bf16.mxu0 0
      %2806 = vmatpush1.bf16.msra.mxu0 %v2605
      %2807 = vmatprep.subr.bf16.mxu0 0
      %2808 = vmatpush1.bf16.msra.mxu0 0
      %2809 = vmatprep.subr.bf16.mxu0 0
      %2810 = vmatpush1.bf16.msra.mxu0 0
      %2811 = vmatprep.subr.bf16.mxu0 0
      %2812 = vmatpush1.bf16.msra.mxu0 0
      %2813 = vmatprep.subr.bf16.mxu0 0
      %2814 = vmatpush1.bf16.msra.mxu0 0
      %2815 = vmatprep.subr.bf16.mxu0 0
      %2816 = vmatpush1.bf16.msra.mxu0 0
      %2817 = vmatprep.subr.bf16.mxu0 0
      %2818 = vmatpush1.bf16.msra.mxu0 0
      %2819 = vmatprep.subr.bf16.mxu0 0
      %2820 = vmatpush1.bf16.msra.mxu0 0
      %2821 = vmatprep.subr.bf16.mxu0 0
      %2822 = vmatpush1.bf16.msra.mxu0 0
      %2823 = vmatprep.mubr.bf16.mxu0 0
      %2824 = vmatmul.mubr.bf16.gmra.mrb[0].mxu0 %v1875
      %v2825 = vpop.f32.mrb[0].mxu0
      %v2826 = vadd.f32 %v2665, %v2825
      %v2827 = vpop.f32.mrb[0].mxu0
      %v2828 = vpop.f32.mrb[0].mxu0
      %v2829 = vadd.f32 %v2668, %v2828
      %v2830 = vpop.f32.mrb[0].mxu0
      %2831 = vmatprep.mubr.bf16.mxu0 0
      %2832 = vmatmul.mubr.bf16.gmra.mrb[0].mxu0 %v1878
      %v2833 = vpop.f32.mrb[0].mxu0
      %v2834 = vadd.f32 %v2673, %v2833
      %v2835 = vpop.f32.mrb[0].mxu0
      %v2836 = vpop.f32.mrb[0].mxu0
      %v2837 = vadd.f32 %v2676, %v2836
      %v2838 = vpop.f32.mrb[0].mxu0
      %2839 = vmatprep.mubr.bf16.mxu0 0
      %2840 = vmatmul.mubr.bf16.gmra.mrb[0].mxu0 %v1881
      %v2841 = vpop.f32.mrb[0].mxu0
      %v2842 = vadd.f32 %v2681, %v2841
      %v2843 = vpop.f32.mrb[0].mxu0
      %v2844 = vpop.f32.mrb[0].mxu0
      %v2845 = vadd.f32 %v2684, %v2844
      %v2846 = vpop.f32.mrb[0].mxu0
      %2847 = vmatprep.mubr.bf16.mxu0 0
      %2848 = vmatmul.mubr.bf16.gmra.mrb[0].mxu0 %v1884
      %v2849 = vpop.f32.mrb[0].mxu0
      %v2850 = vadd.f32 %v2689, %v2849
      %v2851 = vpop.f32.mrb[0].mxu0
      %v2852 = vpop.f32.mrb[0].mxu0
      %v2853 = vadd.f32 %v2692, %v2852
      %v2854 = vpop.f32.mrb[0].mxu0
      %2855 = vmatprep.mubr.bf16.mxu0 0
      %2856 = vmatmul.mubr.bf16.gmra.mrb[0].mxu0 %v1887
      %v2857 = vpop.f32.mrb[0].mxu0
      %v2858 = vadd.f32 %v2697, %v2857
      %v2859 = vpop.f32.mrb[0].mxu0
      %v2860 = vpop.f32.mrb[0].mxu0
      %v2861 = vadd.f32 %v2700, %v2860
      %v2862 = vpop.f32.mrb[0].mxu0
      %2863 = vmatprep.mubr.bf16.mxu0 0
      %2864 = vmatmul.mubr.bf16.gmra.mrb[0].mxu0 %v1890
      %v2865 = vpop.f32.mrb[0].mxu0
      %v2866 = vadd.f32 %v2705, %v2865
      %v2867 = vpop.f32.mrb[0].mxu0
      %v2868 = vpop.f32.mrb[0].mxu0
      %v2869 = vadd.f32 %v2708, %v2868
      %v2870 = vpop.f32.mrb[0].mxu0
      %2871 = vmatprep.mubr.bf16.mxu0 0
      %2872 = vmatmul.mubr.bf16.gmra.mrb[0].mxu0 %v1893
      %v2873 = vpop.f32.mrb[0].mxu0
      %v2874 = vadd.f32 %v2713, %v2873
      %v2875 = vpop.f32.mrb[0].mxu0
      %v2876 = vpop.f32.mrb[0].mxu0
      %v2877 = vadd.f32 %v2716, %v2876
      %v2878 = vpop.f32.mrb[0].mxu0
      %2879 = vmatprep.mubr.bf16.mxu0 0
      %2880 = vmatmul.mubr.bf16.gmra.mrb[0].mxu0 %v1896
      %v2881 = vpop.f32.mrb[0].mxu0
      %v2882 = vadd.f32 %v2721, %v2881
      %v2883 = vpop.f32.mrb[0].mxu0
      %v2884 = vpop.f32.mrb[0].mxu0
      %v2885 = vadd.f32 %v2724, %v2884
      %v2886 = vpop.f32.mrb[0].mxu0
      %2887 = vmatprep.mubr.bf16.mxu0 0
      %2888 = vmatmul.mubr.bf16.gmra.mrb[0].mxu0 %v1899
      %v2889 = vpop.f32.mrb[0].mxu0
      %v2890 = vadd.f32 %v2729, %v2889
      %v2891 = vpop.f32.mrb[0].mxu0
      %v2892 = vpop.f32.mrb[0].mxu0
      %v2893 = vadd.f32 %v2732, %v2892
      %v2894 = vpop.f32.mrb[0].mxu0
      %2895 = vmatprep.mubr.bf16.mxu0 0
      %2896 = vmatmul.mubr.bf16.gmra.mrb[0].mxu0 %v1902
      %v2897 = vpop.f32.mrb[0].mxu0
      %v2898 = vadd.f32 %v2737, %v2897
      %v2899 = vpop.f32.mrb[0].mxu0
      %v2900 = vpop.f32.mrb[0].mxu0
      %v2901 = vadd.f32 %v2740, %v2900
      %v2902 = vpop.f32.mrb[0].mxu0
      %2903 = vmatprep.mubr.bf16.mxu0 0
      %2904 = vmatmul.mubr.bf16.gmra.mrb[0].mxu0 %v1905
      %v2905 = vpop.f32.mrb[0].mxu0
      %v2906 = vadd.f32 %v2745, %v2905
      %v2907 = vpop.f32.mrb[0].mxu0
      %v2908 = vpop.f32.mrb[0].mxu0
      %v2909 = vadd.f32 %v2748, %v2908
      %v2910 = vpop.f32.mrb[0].mxu0
      %2911 = vmatprep.mubr.bf16.mxu0 0
      %2912 = vmatmul.mubr.bf16.gmra.mrb[0].mxu0 %v1908
      %v2913 = vpop.f32.mrb[0].mxu0
      %v2914 = vadd.f32 %v2753, %v2913
      %v2915 = vpop.f32.mrb[0].mxu0
      %v2916 = vpop.f32.mrb[0].mxu0
      %v2917 = vadd.f32 %v2756, %v2916
      %v2918 = vpop.f32.mrb[0].mxu0
      %2919 = vmatprep.mubr.bf16.mxu0 0
      %2920 = vmatmul.mubr.bf16.gmra.mrb[0].mxu0 %v1911
      %v2921 = vpop.f32.mrb[0].mxu0
      %v2922 = vadd.f32 %v2761, %v2921
      %v2923 = vpop.f32.mrb[0].mxu0
      %v2924 = vpop.f32.mrb[0].mxu0
      %v2925 = vadd.f32 %v2764, %v2924
      %v2926 = vpop.f32.mrb[0].mxu0
      %2927 = vmatprep.mubr.bf16.mxu0 0
      %2928 = vmatmul.mubr.bf16.gmra.mrb[0].mxu0 %v1914
      %v2929 = vpop.f32.mrb[0].mxu0
      %v2930 = vadd.f32 %v2769, %v2929
      %v2931 = vpop.f32.mrb[0].mxu0
      %v2932 = vpop.f32.mrb[0].mxu0
      %v2933 = vadd.f32 %v2772, %v2932
      %v2934 = vpop.f32.mrb[0].mxu0
      %2935 = vmatprep.mubr.bf16.mxu0 0
      %2936 = vmatmul.mubr.bf16.gmra.mrb[0].mxu0 %v1917
      %v2937 = vpop.f32.mrb[0].mxu0
      %v2938 = vadd.f32 %v2777, %v2937
      %v2939 = vpop.f32.mrb[0].mxu0
      %v2940 = vpop.f32.mrb[0].mxu0
      %v2941 = vadd.f32 %v2780, %v2940
      %v2942 = vpop.f32.mrb[0].mxu0
      %2943 = vmatprep.mubr.bf16.mxu0 0
      %2944 = vmatmul.mubr.bf16.gmra.mrb[0].mxu0 %v1920
      %v2945 = vpop.f32.mrb[0].mxu0
      %v2946 = vadd.f32 %v2785, %v2945
      %v2947 = vpop.f32.mrb[0].mxu0
      %v2948 = vpop.f32.mrb[0].mxu0
      %v2949 = vadd.f32 %v2788, %v2948
      %v2950 = vpop.f32.mrb[0].mxu0
      %2951 = vdwg.mxu0
      %v2952 = vld [vmem:[#allocation2 + $0x30] sm:$0xff]
      %v2953 = vld [vmem:[#allocation2 + $0x38] sm:$0xff]
      %v2954 = vld [vmem:[#allocation2 + $0x40] sm:$0xff]
      %v2955 = vld [vmem:[#allocation2 + $0x48] sm:$0xff]
      %v2956 = vld [vmem:[#allocation2 + $0x50] sm:$0xff]
      %v2957 = vld [vmem:[#allocation2 + $0x58] sm:$0xff]
      %v2958 = vld [vmem:[#allocation2 + $0x60] sm:$0xff]
      %v2959 = vld [vmem:[#allocation2 + $0x68] sm:$0xff]
      %v2960 = vld [vmem:[#allocation2 + $0x70] sm:$0xff]
      %v2961 = vld [vmem:[#allocation2 + $0x78] sm:$0xff]
      %v2962 = vld [vmem:[#allocation2 + $0x80] sm:$0xff]
      %v2963 = vld [vmem:[#allocation2 + $0x88] sm:$0xff]
      %v2964 = vld [vmem:[#allocation2 + $0x90] sm:$0xff]
      %v2965 = vld [vmem:[#allocation2 + $0x98] sm:$0xff]
      %v2966 = vld [vmem:[#allocation2 + $0xa0] sm:$0xff]
      %v2967 = vld [vmem:[#allocation2 + $0xa8] sm:$0xff]
      %v2968 = vld [vmem:[#allocation2 + $0xb0] sm:$0xff]
      %v2969 = vld [vmem:[#allocation2 + $0xb8] sm:$0xff]
      %v2970 = vld [vmem:[#allocation2 + $0xc0] sm:$0xff]
      %v2971 = vld [vmem:[#allocation2 + $0xc8] sm:$0xff]
      %v2972 = vld [vmem:[#allocation2 + $0xd0] sm:$0xff]
      %v2973 = vld [vmem:[#allocation2 + $0xd8] sm:$0xff]
      %v2974 = vld [vmem:[#allocation2 + $0xe0] sm:$0xff]
      %v2975 = vld [vmem:[#allocation2 + $0xe8] sm:$0xff]
      %v2976 = vld [vmem:[#allocation2 + $0xf0] sm:$0xff]
      %v2977 = vld [vmem:[#allocation2 + $0xf8] sm:$0xff]
      %v2978 = vld [vmem:[#allocation2 + $0x100] sm:$0xff]
      %v2979 = vld [vmem:[#allocation2 + $0x108] sm:$0xff]
      %v2980 = vld [vmem:[#allocation2 + $0x110] sm:$0xff]
      %v2981 = vld [vmem:[#allocation2 + $0x118] sm:$0xff]
      %v2982 = vld [vmem:[#allocation2 + $0x120] sm:$0xff]
      %v2983 = vld [vmem:[#allocation2 + $0x128] sm:$0xff]
      %v2984 = vld [vmem:[#allocation2 + $0x130] sm:$0xff]
      %v2985 = vld [vmem:[#allocation2 + $0x138] sm:$0xff]
      %v2986 = vld [vmem:[#allocation2 + $0x140] sm:$0xff]
      %v2987 = vld [vmem:[#allocation2 + $0x148] sm:$0xff]
      %v2988 = vld [vmem:[#allocation2 + $0x150] sm:$0xff]
      %v2989 = vld [vmem:[#allocation2 + $0x158] sm:$0xff]
      %v2990 = vld [vmem:[#allocation2 + $0x160] sm:$0xff]
      %v2991 = vld [vmem:[#allocation2 + $0x168] sm:$0xff]
      %v2992 = vld [vmem:[#allocation2 + $0x170] sm:$0xff]
      %v2993 = vld [vmem:[#allocation2 + $0x178] sm:$0xff]
      %v2994 = vld [vmem:[#allocation2 + $0x180] sm:$0xff]
      %v2995 = vld [vmem:[#allocation2 + $0x188] sm:$0xff]
      %v2996 = vld [vmem:[#allocation2 + $0x190] sm:$0xff]
      %v2997 = vld [vmem:[#allocation2 + $0x198] sm:$0xff]
      %v2998 = vld [vmem:[#allocation2 + $0x1a0] sm:$0xff]
      %v2999 = vld [vmem:[#allocation2 + $0x1a8] sm:$0xff]
      %v3000 = vld [vmem:[%s1 + $0x180] sm:$0xf]
      %v3001 = vld [vmem:[%s1 + $0x184] sm:$0xf]
      %v3002 = vld [vmem:[%s1 + $0x188] sm:$0xf]
      %v3003 = vld [vmem:[%s1 + $0x18c] sm:$0xf]
      %v3004 = vld [vmem:[%s1 + $0x190] sm:$0xf]
      %v3005 = vld [vmem:[%s1 + $0x194] sm:$0xf]
      %v3006 = vld [vmem:[%s1 + $0x198] sm:$0xf]
      %v3007 = vld [vmem:[%s1 + $0x19c] sm:$0xf]
      %v3008 = vld [vmem:[%s1 + $0x1a0] sm:$0xf]
      %v3009 = vld [vmem:[%s1 + $0x1a4] sm:$0xf]
      %v3010 = vld [vmem:[%s1 + $0x1a8] sm:$0xf]
      %v3011 = vld [vmem:[%s1 + $0x1ac] sm:$0xf]
      %v3012 = vld [vmem:[%s1 + $0x1b0] sm:$0xf]
      %v3013 = vld [vmem:[%s1 + $0x1b4] sm:$0xf]
      %v3014 = vld [vmem:[%s1 + $0x1b8] sm:$0xf]
      %v3015 = vld [vmem:[%s1 + $0x1bc] sm:$0xf]
      %v3016 = vld [vmem:[%s1 + $0x1c0] sm:$0xf]
      %v3017 = vld [vmem:[%s1 + $0x1c4] sm:$0xf]
      %v3018 = vld [vmem:[%s1 + $0x1c8] sm:$0xf]
      %v3019 = vld [vmem:[%s1 + $0x1cc] sm:$0xf]
      %v3020 = vld [vmem:[%s1 + $0x1d0] sm:$0xf]
      %v3021 = vld [vmem:[%s1 + $0x1d4] sm:$0xf]
      %v3022 = vld [vmem:[%s1 + $0x1d8] sm:$0xf]
      %v3023 = vld [vmem:[%s1 + $0x1dc] sm:$0xf]
      %v3024 = vld [vmem:[%s1 + $0x1e0] sm:$0xf]
      %v3025 = vld [vmem:[%s1 + $0x1e4] sm:$0xf]
      %v3026 = vld [vmem:[%s1 + $0x1e8] sm:$0xf]
      %v3027 = vld [vmem:[%s1 + $0x1ec] sm:$0xf]
      %v3028 = vld [vmem:[%s1 + $0x1f0] sm:$0xf]
      %v3029 = vld [vmem:[%s1 + $0x1f4] sm:$0xf]
      %v3030 = vld [vmem:[%s1 + $0x1f8] sm:$0xf]
      %v3031 = vld [vmem:[%s1 + $0x1fc] sm:$0xf]
      %v3032 = vld [vmem:[%s1 + $0x200] sm:$0xf]
      %v3033 = vld [vmem:[%s1 + $0x204] sm:$0xf]
      %v3034 = vld [vmem:[%s1 + $0x208] sm:$0xf]
      %v3035 = vld [vmem:[%s1 + $0x20c] sm:$0xf]
      %v3036 = vld [vmem:[%s1 + $0x210] sm:$0xf]
      %v3037 = vld [vmem:[%s1 + $0x214] sm:$0xf]
      %v3038 = vld [vmem:[%s1 + $0x218] sm:$0xf]
      %v3039 = vld [vmem:[%s1 + $0x21c] sm:$0xf]
      %v3040 = vld [vmem:[%s1 + $0x220] sm:$0xf]
      %v3041 = vld [vmem:[%s1 + $0x224] sm:$0xf]
      %v3042 = vld [vmem:[%s1 + $0x228] sm:$0xf]
      %v3043 = vld [vmem:[%s1 + $0x22c] sm:$0xf]
      %v3044 = vld [vmem:[%s1 + $0x230] sm:$0xf]
      %v3045 = vld [vmem:[%s1 + $0x234] sm:$0xf]
      %v3046 = vld [vmem:[%s1 + $0x238] sm:$0xf]
      %v3047 = vld [vmem:[%s1 + $0x23c] sm:$0xf]
      %v3096 = vunpack.c.l.b16 %v3000
      %v3097 = vunpack.c.l.b16 %v3001
      %v3098 = vunpack.c.l.b16 %v3002
      %v3099 = vunpack.c.l.b16 %v3003
      %v3100 = vunpack.c.l.b16 %v3004
      %v3101 = vunpack.c.l.b16 %v3005
      %v3102 = vunpack.c.l.b16 %v3006
      %v3103 = vunpack.c.l.b16 %v3007
      %v3104 = vunpack.c.l.b16 %v3008
      %v3105 = vunpack.c.l.b16 %v3009
      %v3106 = vunpack.c.l.b16 %v3010
      %v3107 = vunpack.c.l.b16 %v3011
      %v3108 = vunpack.c.l.b16 %v3012
      %v3109 = vunpack.c.l.b16 %v3013
      %v3110 = vunpack.c.l.b16 %v3014
      %v3111 = vunpack.c.l.b16 %v3015
      %v3112 = vunpack.c.l.b16 %v3016
      %v3113 = vunpack.c.l.b16 %v3017
      %v3114 = vunpack.c.l.b16 %v3018
      %v3115 = vunpack.c.l.b16 %v3019
      %v3116 = vunpack.c.l.b16 %v3020
      %v3117 = vunpack.c.l.b16 %v3021
      %v3118 = vunpack.c.l.b16 %v3022
      %v3119 = vunpack.c.l.b16 %v3023
      %v3120 = vunpack.c.l.b16 %v3024
      %v3121 = vunpack.c.l.b16 %v3025
      %v3122 = vunpack.c.l.b16 %v3026
      %v3123 = vunpack.c.l.b16 %v3027
      %v3124 = vunpack.c.l.b16 %v3028
      %v3125 = vunpack.c.l.b16 %v3029
      %v3126 = vunpack.c.l.b16 %v3030
      %v3127 = vunpack.c.l.b16 %v3031
      %v3128 = vunpack.c.l.b16 %v3032
      %v3129 = vunpack.c.l.b16 %v3033
      %v3130 = vunpack.c.l.b16 %v3034
      %v3131 = vunpack.c.l.b16 %v3035
      %v3132 = vunpack.c.l.b16 %v3036
      %v3133 = vunpack.c.l.b16 %v3037
      %v3134 = vunpack.c.l.b16 %v3038
      %v3135 = vunpack.c.l.b16 %v3039
      %v3136 = vunpack.c.l.b16 %v3040
      %v3137 = vunpack.c.l.b16 %v3041
      %v3138 = vunpack.c.l.b16 %v3042
      %v3139 = vunpack.c.l.b16 %v3043
      %v3140 = vunpack.c.l.b16 %v3044
      %v3141 = vunpack.c.l.b16 %v3045
      %v3142 = vunpack.c.l.b16 %v3046
      %v3143 = vunpack.c.l.b16 %v3047
      %v3144 = vpack.c.b16 %v3097, %v3096
      %v3145 = vpack.c.b16 %v3099, %v3098
      %v3146 = vpack.c.b16 %v3101, %v3100
      %v3147 = vpack.c.b16 %v3103, %v3102
      %v3148 = vpack.c.b16 %v3105, %v3104
      %v3149 = vpack.c.b16 %v3107, %v3106
      %v3150 = vpack.c.b16 %v3109, %v3108
      %v3151 = vpack.c.b16 %v3111, %v3110
      %v3152 = vpack.c.b16 %v3113, %v3112
      %v3153 = vpack.c.b16 %v3115, %v3114
      %v3154 = vpack.c.b16 %v3117, %v3116
      %v3155 = vpack.c.b16 %v3119, %v3118
      %v3156 = vpack.c.b16 %v3121, %v3120
      %v3157 = vpack.c.b16 %v3123, %v3122
      %v3158 = vpack.c.b16 %v3125, %v3124
      %v3159 = vpack.c.b16 %v3127, %v3126
      %v3160 = vpack.c.b16 %v3129, %v3128
      %v3161 = vpack.c.b16 %v3131, %v3130
      %v3162 = vpack.c.b16 %v3133, %v3132
      %v3163 = vpack.c.b16 %v3135, %v3134
      %v3164 = vpack.c.b16 %v3137, %v3136
      %v3165 = vpack.c.b16 %v3139, %v3138
      %v3166 = vpack.c.b16 %v3141, %v3140
      %v3167 = vpack.c.b16 %v3143, %v3142
      %3192 = vmatprep.subr.bf16.mxu0 0
      %3193 = vmatpush1.bf16.msra.mxu0 %v3144
      %3194 = vmatprep.subr.bf16.mxu0 0
      %3195 = vmatpush1.bf16.msra.mxu0 %v3145
      %3196 = vmatprep.subr.bf16.mxu0 0
      %3197 = vmatpush1.bf16.msra.mxu0 %v3146
      %3198 = vmatprep.subr.bf16.mxu0 0
      %3199 = vmatpush1.bf16.msra.mxu0 %v3147
      %3200 = vmatprep.subr.bf16.mxu0 0
      %3201 = vmatpush1.bf16.msra.mxu0 %v3148
      %3202 = vmatprep.subr.bf16.mxu0 0
      %3203 = vmatpush1.bf16.msra.mxu0 %v3149
      %3204 = vmatprep.subr.bf16.mxu0 0
      %3205 = vmatpush1.bf16.msra.mxu0 %v3150
      %3206 = vmatprep.subr.bf16.mxu0 0
      %3207 = vmatpush1.bf16.msra.mxu0 %v3151
      %3208 = vmatprep.subr.bf16.mxu0 0
      %3209 = vmatpush1.bf16.msra.mxu0 %v3152
      %3210 = vmatprep.subr.bf16.mxu0 0
      %3211 = vmatpush1.bf16.msra.mxu0 %v3153
      %3212 = vmatprep.subr.bf16.mxu0 0
      %3213 = vmatpush1.bf16.msra.mxu0 %v3154
      %3214 = vmatprep.subr.bf16.mxu0 0
      %3215 = vmatpush1.bf16.msra.mxu0 %v3155
      %3216 = vmatprep.subr.bf16.mxu0 0
      %3217 = vmatpush1.bf16.msra.mxu0 %v3156
      %3218 = vmatprep.subr.bf16.mxu0 0
      %3219 = vmatpush1.bf16.msra.mxu0 %v3157
      %3220 = vmatprep.subr.bf16.mxu0 0
      %3221 = vmatpush1.bf16.msra.mxu0 %v3158
      %3222 = vmatprep.subr.bf16.mxu0 0
      %3223 = vmatpush1.bf16.msra.mxu0 %v3159
      %3224 = vmatprep.mubr.bf16.mxu0 %v2953
      %3225 = vmatmul.mubr.bf16.gmra.mrb[0].mxu0 %v2952
      %v3226 = vpop.f32.mrb[0].mxu0
      %v3227 = vadd.f32 0.0, %v3226
      %v3228 = vpop.f32.mrb[0].mxu0
      %v3229 = vpop.f32.mrb[0].mxu0
      %v3230 = vadd.f32 0.0, %v3229
      %v3231 = vpop.f32.mrb[0].mxu0
      %3232 = vmatprep.mubr.bf16.mxu0 %v2956
      %3233 = vmatmul.mubr.bf16.gmra.mrb[0].mxu0 %v2955
      %v3234 = vpop.f32.mrb[0].mxu0
      %v3235 = vadd.f32 0.0, %v3234
      %v3236 = vpop.f32.mrb[0].mxu0
      %v3237 = vpop.f32.mrb[0].mxu0
      %v3238 = vadd.f32 0.0, %v3237
      %v3239 = vpop.f32.mrb[0].mxu0
      %3240 = vmatprep.mubr.bf16.mxu0 %v2959
      %3241 = vmatmul.mubr.bf16.gmra.mrb[0].mxu0 %v2958
      %v3242 = vpop.f32.mrb[0].mxu0
      %v3243 = vadd.f32 0.0, %v3242
      %v3244 = vpop.f32.mrb[0].mxu0
      %v3245 = vpop.f32.mrb[0].mxu0
      %v3246 = vadd.f32 0.0, %v3245
      %v3247 = vpop.f32.mrb[0].mxu0
      %3248 = vmatprep.mubr.bf16.mxu0 %v2962
      %3249 = vmatmul.mubr.bf16.gmra.mrb[0].mxu0 %v2961
      %v3250 = vpop.f32.mrb[0].mxu0
      %v3251 = vadd.f32 0.0, %v3250
      %v3252 = vpop.f32.mrb[0].mxu0
      %v3253 = vpop.f32.mrb[0].mxu0
      %v3254 = vadd.f32 0.0, %v3253
      %v3255 = vpop.f32.mrb[0].mxu0
      %3256 = vmatprep.mubr.bf16.mxu0 %v2965
      %3257 = vmatmul.mubr.bf16.gmra.mrb[0].mxu0 %v2964
      %v3258 = vpop.f32.mrb[0].mxu0
      %v3259 = vadd.f32 0.0, %v3258
      %v3260 = vpop.f32.mrb[0].mxu0
      %v3261 = vpop.f32.mrb[0].mxu0
      %v3262 = vadd.f32 0.0, %v3261
      %v3263 = vpop.f32.mrb[0].mxu0
      %3264 = vmatprep.mubr.bf16.mxu0 %v2968
      %3265 = vmatmul.mubr.bf16.gmra.mrb[0].mxu0 %v2967
      %v3266 = vpop.f32.mrb[0].mxu0
      %v3267 = vadd.f32 0.0, %v3266
      %v3268 = vpop.f32.mrb[0].mxu0
      %v3269 = vpop.f32.mrb[0].mxu0
      %v3270 = vadd.f32 0.0, %v3269
      %v3271 = vpop.f32.mrb[0].mxu0
      %3272 = vmatprep.mubr.bf16.mxu0 %v2971
      %3273 = vmatmul.mubr.bf16.gmra.mrb[0].mxu0 %v2970
      %v3274 = vpop.f32.mrb[0].mxu0
      %v3275 = vadd.f32 0.0, %v3274
      %v3276 = vpop.f32.mrb[0].mxu0
      %v3277 = vpop.f32.mrb[0].mxu0
      %v3278 = vadd.f32 0.0, %v3277
      %v3279 = vpop.f32.mrb[0].mxu0
      %3280 = vmatprep.mubr.bf16.mxu0 %v2974
      %3281 = vmatmul.mubr.bf16.gmra.mrb[0].mxu0 %v2973
      %v3282 = vpop.f32.mrb[0].mxu0
      %v3283 = vadd.f32 0.0, %v3282
      %v3284 = vpop.f32.mrb[0].mxu0
      %v3285 = vpop.f32.mrb[0].mxu0
      %v3286 = vadd.f32 0.0, %v3285
      %v3287 = vpop.f32.mrb[0].mxu0
      %3288 = vmatprep.mubr.bf16.mxu0 %v2977
      %3289 = vmatmul.mubr.bf16.gmra.mrb[0].mxu0 %v2976
      %v3290 = vpop.f32.mrb[0].mxu0
      %v3291 = vadd.f32 0.0, %v3290
      %v3292 = vpop.f32.mrb[0].mxu0
      %v3293 = vpop.f32.mrb[0].mxu0
      %v3294 = vadd.f32 0.0, %v3293
      %v3295 = vpop.f32.mrb[0].mxu0
      %3296 = vmatprep.mubr.bf16.mxu0 %v2980
      %3297 = vmatmul.mubr.bf16.gmra.mrb[0].mxu0 %v2979
      %v3298 = vpop.f32.mrb[0].mxu0
      %v3299 = vadd.f32 0.0, %v3298
      %v3300 = vpop.f32.mrb[0].mxu0
      %v3301 = vpop.f32.mrb[0].mxu0
      %v3302 = vadd.f32 0.0, %v3301
      %v3303 = vpop.f32.mrb[0].mxu0
      %3304 = vmatprep.mubr.bf16.mxu0 %v2983
      %3305 = vmatmul.mubr.bf16.gmra.mrb[0].mxu0 %v2982
      %v3306 = vpop.f32.mrb[0].mxu0
      %v3307 = vadd.f32 0.0, %v3306
      %v3308 = vpop.f32.mrb[0].mxu0
      %v3309 = vpop.f32.mrb[0].mxu0
      %v3310 = vadd.f32 0.0, %v3309
      %v3311 = vpop.f32.mrb[0].mxu0
      %3312 = vmatprep.mubr.bf16.mxu0 %v2986
      %3313 = vmatmul.mubr.bf16.gmra.mrb[0].mxu0 %v2985
      %v3314 = vpop.f32.mrb[0].mxu0
      %v3315 = vadd.f32 0.0, %v3314
      %v3316 = vpop.f32.mrb[0].mxu0
      %v3317 = vpop.f32.mrb[0].mxu0
      %v3318 = vadd.f32 0.0, %v3317
      %v3319 = vpop.f32.mrb[0].mxu0
      %3320 = vmatprep.mubr.bf16.mxu0 %v2989
      %3321 = vmatmul.mubr.bf16.gmra.mrb[0].mxu0 %v2988
      %v3322 = vpop.f32.mrb[0].mxu0
      %v3323 = vadd.f32 0.0, %v3322
      %v3324 = vpop.f32.mrb[0].mxu0
      %v3325 = vpop.f32.mrb[0].mxu0
      %v3326 = vadd.f32 0.0, %v3325
      %v3327 = vpop.f32.mrb[0].mxu0
      %3328 = vmatprep.mubr.bf16.mxu0 %v2992
      %3329 = vmatmul.mubr.bf16.gmra.mrb[0].mxu0 %v2991
      %v3330 = vpop.f32.mrb[0].mxu0
      %v3331 = vadd.f32 0.0, %v3330
      %v3332 = vpop.f32.mrb[0].mxu0
      %v3333 = vpop.f32.mrb[0].mxu0
      %v3334 = vadd.f32 0.0, %v3333
      %v3335 = vpop.f32.mrb[0].mxu0
      %3336 = vmatprep.mubr.bf16.mxu0 %v2995
      %3337 = vmatmul.mubr.bf16.gmra.mrb[0].mxu0 %v2994
      %v3338 = vpop.f32.mrb[0].mxu0
      %v3339 = vadd.f32 0.0, %v3338
      %v3340 = vpop.f32.mrb[0].mxu0
      %v3341 = vpop.f32.mrb[0].mxu0
      %v3342 = vadd.f32 0.0, %v3341
      %v3343 = vpop.f32.mrb[0].mxu0
      %3344 = vmatprep.mubr.bf16.mxu0 %v2998
      %3345 = vmatmul.mubr.bf16.gmra.mrb[0].mxu0 %v2997
      %v3346 = vpop.f32.mrb[0].mxu0
      %v3347 = vadd.f32 0.0, %v3346
      %v3348 = vpop.f32.mrb[0].mxu0
      %v3349 = vpop.f32.mrb[0].mxu0
      %v3350 = vadd.f32 0.0, %v3349
      %v3351 = vpop.f32.mrb[0].mxu0
      %3352 = vdwg.mxu0
      %3353 = vmatprep.subr.bf16.mxu0 0
      %3354 = vmatpush1.bf16.msra.mxu0 %v3160
      %3355 = vmatprep.subr.bf16.mxu0 0
      %3356 = vmatpush1.bf16.msra.mxu0 %v3161
      %3357 = vmatprep.subr.bf16.mxu0 0
      %3358 = vmatpush1.bf16.msra.mxu0 %v3162
      %3359 = vmatprep.subr.bf16.mxu0 0
      %3360 = vmatpush1.bf16.msra.mxu0 %v3163
      %3361 = vmatprep.subr.bf16.mxu0 0
      %3362 = vmatpush1.bf16.msra.mxu0 %v3164
      %3363 = vmatprep.subr.bf16.mxu0 0
      %3364 = vmatpush1.bf16.msra.mxu0 %v3165
      %3365 = vmatprep.subr.bf16.mxu0 0
      %3366 = vmatpush1.bf16.msra.mxu0 %v3166
      %3367 = vmatprep.subr.bf16.mxu0 0
      %3368 = vmatpush1.bf16.msra.mxu0 %v3167
      %3369 = vmatprep.subr.bf16.mxu0 0
      %3370 = vmatpush1.bf16.msra.mxu0 0
      %3371 = vmatprep.subr.bf16.mxu0 0
      %3372 = vmatpush1.bf16.msra.mxu0 0
      %3373 = vmatprep.subr.bf16.mxu0 0
      %3374 = vmatpush1.bf16.msra.mxu0 0
      %3375 = vmatprep.subr.bf16.mxu0 0
      %3376 = vmatpush1.bf16.msra.mxu0 0
      %3377 = vmatprep.subr.bf16.mxu0 0
      %3378 = vmatpush1.bf16.msra.mxu0 0
      %3379 = vmatprep.subr.bf16.mxu0 0
      %3380 = vmatpush1.bf16.msra.mxu0 0
      %3381 = vmatprep.subr.bf16.mxu0 0
      %3382 = vmatpush1.bf16.msra.mxu0 0
      %3383 = vmatprep.subr.bf16.mxu0 0
      %3384 = vmatpush1.bf16.msra.mxu0 0
      %3385 = vmatprep.mubr.bf16.mxu0 0
      %3386 = vmatmul.mubr.bf16.gmra.mrb[0].mxu0 %v2954
      %v3387 = vpop.f32.mrb[0].mxu0
      %v3388 = vadd.f32 %v3227, %v3387
      %v3389 = vpop.f32.mrb[0].mxu0
      %v3390 = vpop.f32.mrb[0].mxu0
      %v3391 = vadd.f32 %v3230, %v3390
      %v3392 = vpop.f32.mrb[0].mxu0
      %3393 = vmatprep.mubr.bf16.mxu0 0
      %3394 = vmatmul.mubr.bf16.gmra.mrb[0].mxu0 %v2957
      %v3395 = vpop.f32.mrb[0].mxu0
      %v3396 = vadd.f32 %v3235, %v3395
      %v3397 = vpop.f32.mrb[0].mxu0
      %v3398 = vpop.f32.mrb[0].mxu0
      %v3399 = vadd.f32 %v3238, %v3398
      %v3400 = vpop.f32.mrb[0].mxu0
      %3401 = vmatprep.mubr.bf16.mxu0 0
      %3402 = vmatmul.mubr.bf16.gmra.mrb[0].mxu0 %v2960
      %v3403 = vpop.f32.mrb[0].mxu0
      %v3404 = vadd.f32 %v3243, %v3403
      %v3405 = vpop.f32.mrb[0].mxu0
      %v3406 = vpop.f32.mrb[0].mxu0
      %v3407 = vadd.f32 %v3246, %v3406
      %v3408 = vpop.f32.mrb[0].mxu0
      %3409 = vmatprep.mubr.bf16.mxu0 0
      %3410 = vmatmul.mubr.bf16.gmra.mrb[0].mxu0 %v2963
      %v3411 = vpop.f32.mrb[0].mxu0
      %v3412 = vadd.f32 %v3251, %v3411
      %v3413 = vpop.f32.mrb[0].mxu0
      %v3414 = vpop.f32.mrb[0].mxu0
      %v3415 = vadd.f32 %v3254, %v3414
      %v3416 = vpop.f32.mrb[0].mxu0
      %3417 = vmatprep.mubr.bf16.mxu0 0
      %3418 = vmatmul.mubr.bf16.gmra.mrb[0].mxu0 %v2966
      %v3419 = vpop.f32.mrb[0].mxu0
      %v3420 = vadd.f32 %v3259, %v3419
      %v3421 = vpop.f32.mrb[0].mxu0
      %v3422 = vpop.f32.mrb[0].mxu0
      %v3423 = vadd.f32 %v3262, %v3422
      %v3424 = vpop.f32.mrb[0].mxu0
      %3425 = vmatprep.mubr.bf16.mxu0 0
      %3426 = vmatmul.mubr.bf16.gmra.mrb[0].mxu0 %v2969
      %v3427 = vpop.f32.mrb[0].mxu0
      %v3428 = vadd.f32 %v3267, %v3427
      %v3429 = vpop.f32.mrb[0].mxu0
      %v3430 = vpop.f32.mrb[0].mxu0
      %v3431 = vadd.f32 %v3270, %v3430
      %v3432 = vpop.f32.mrb[0].mxu0
      %3433 = vmatprep.mubr.bf16.mxu0 0
      %3434 = vmatmul.mubr.bf16.gmra.mrb[0].mxu0 %v2972
      %v3435 = vpop.f32.mrb[0].mxu0
      %v3436 = vadd.f32 %v3275, %v3435
      %v3437 = vpop.f32.mrb[0].mxu0
      %v3438 = vpop.f32.mrb[0].mxu0
      %v3439 = vadd.f32 %v3278, %v3438
      %v3440 = vpop.f32.mrb[0].mxu0
      %3441 = vmatprep.mubr.bf16.mxu0 0
      %3442 = vmatmul.mubr.bf16.gmra.mrb[0].mxu0 %v2975
      %v3443 = vpop.f32.mrb[0].mxu0
      %v3444 = vadd.f32 %v3283, %v3443
      %v3445 = vpop.f32.mrb[0].mxu0
      %v3446 = vpop.f32.mrb[0].mxu0
      %v3447 = vadd.f32 %v3286, %v3446
      %v3448 = vpop.f32.mrb[0].mxu0
      %3449 = vmatprep.mubr.bf16.mxu0 0
      %3450 = vmatmul.mubr.bf16.gmra.mrb[0].mxu0 %v2978
      %v3451 = vpop.f32.mrb[0].mxu0
      %v3452 = vadd.f32 %v3291, %v3451
      %v3453 = vpop.f32.mrb[0].mxu0
      %v3454 = vpop.f32.mrb[0].mxu0
      %v3455 = vadd.f32 %v3294, %v3454
      %v3456 = vpop.f32.mrb[0].mxu0
      %3457 = vmatprep.mubr.bf16.mxu0 0
      %3458 = vmatmul.mubr.bf16.gmra.mrb[0].mxu0 %v2981
      %v3459 = vpop.f32.mrb[0].mxu0
      %v3460 = vadd.f32 %v3299, %v3459
      %v3461 = vpop.f32.mrb[0].mxu0
      %v3462 = vpop.f32.mrb[0].mxu0
      %v3463 = vadd.f32 %v3302, %v3462
      %v3464 = vpop.f32.mrb[0].mxu0
      %3465 = vmatprep.mubr.bf16.mxu0 0
      %3466 = vmatmul.mubr.bf16.gmra.mrb[0].mxu0 %v2984
      %v3467 = vpop.f32.mrb[0].mxu0
      %v3468 = vadd.f32 %v3307, %v3467
      %v3469 = vpop.f32.mrb[0].mxu0
      %v3470 = vpop.f32.mrb[0].mxu0
      %v3471 = vadd.f32 %v3310, %v3470
      %v3472 = vpop.f32.mrb[0].mxu0
      %3473 = vmatprep.mubr.bf16.mxu0 0
      %3474 = vmatmul.mubr.bf16.gmra.mrb[0].mxu0 %v2987
      %v3475 = vpop.f32.mrb[0].mxu0
      %v3476 = vadd.f32 %v3315, %v3475
      %v3477 = vpop.f32.mrb[0].mxu0
      %v3478 = vpop.f32.mrb[0].mxu0
      %v3479 = vadd.f32 %v3318, %v3478
      %v3480 = vpop.f32.mrb[0].mxu0
      %3481 = vmatprep.mubr.bf16.mxu0 0
      %3482 = vmatmul.mubr.bf16.gmra.mrb[0].mxu0 %v2990
      %v3483 = vpop.f32.mrb[0].mxu0
      %v3484 = vadd.f32 %v3323, %v3483
      %v3485 = vpop.f32.mrb[0].mxu0
      %v3486 = vpop.f32.mrb[0].mxu0
      %v3487 = vadd.f32 %v3326, %v3486
      %v3488 = vpop.f32.mrb[0].mxu0
      %3489 = vmatprep.mubr.bf16.mxu0 0
      %3490 = vmatmul.mubr.bf16.gmra.mrb[0].mxu0 %v2993
      %v3491 = vpop.f32.mrb[0].mxu0
      %v3492 = vadd.f32 %v3331, %v3491
      %v3493 = vpop.f32.mrb[0].mxu0
      %v3494 = vpop.f32.mrb[0].mxu0
      %v3495 = vadd.f32 %v3334, %v3494
      %v3496 = vpop.f32.mrb[0].mxu0
      %3497 = vmatprep.mubr.bf16.mxu0 0
      %3498 = vmatmul.mubr.bf16.gmra.mrb[0].mxu0 %v2996
      %v3499 = vpop.f32.mrb[0].mxu0
      %v3500 = vadd.f32 %v3339, %v3499
      %v3501 = vpop.f32.mrb[0].mxu0
      %v3502 = vpop.f32.mrb[0].mxu0
      %v3503 = vadd.f32 %v3342, %v3502
      %v3504 = vpop.f32.mrb[0].mxu0
      %3505 = vmatprep.mubr.bf16.mxu0 0
      %3506 = vmatmul.mubr.bf16.gmra.mrb[0].mxu0 %v2999
      %v3507 = vpop.f32.mrb[0].mxu0
      %v3508 = vadd.f32 %v3347, %v3507
      %v3509 = vpop.f32.mrb[0].mxu0
      %v3510 = vpop.f32.mrb[0].mxu0
      %v3511 = vadd.f32 %v3350, %v3510
      %v3512 = vpop.f32.mrb[0].mxu0
      %3513 = vdwg.mxu0
      %v3514 = vadd.f32 %v2826, %v3388
      %v3515 = vadd.f32 %v2829, %v3391
      %v3516 = vadd.f32 %v2834, %v3396
      %v3517 = vadd.f32 %v2837, %v3399
      %v3518 = vadd.f32 %v2842, %v3404
      %v3519 = vadd.f32 %v2845, %v3407
      %v3520 = vadd.f32 %v2850, %v3412
      %v3521 = vadd.f32 %v2853, %v3415
      %v3522 = vadd.f32 %v2858, %v3420
      %v3523 = vadd.f32 %v2861, %v3423
      %v3524 = vadd.f32 %v2866, %v3428
      %v3525 = vadd.f32 %v2869, %v3431
      %v3526 = vadd.f32 %v2874, %v3436
      %v3527 = vadd.f32 %v2877, %v3439
      %v3528 = vadd.f32 %v2882, %v3444
      %v3529 = vadd.f32 %v2885, %v3447
      %v3530 = vadd.f32 %v2890, %v3452
      %v3531 = vadd.f32 %v2893, %v3455
      %v3532 = vadd.f32 %v2898, %v3460
      %v3533 = vadd.f32 %v2901, %v3463
      %v3534 = vadd.f32 %v2906, %v3468
      %v3535 = vadd.f32 %v2909, %v3471
      %v3536 = vadd.f32 %v2914, %v3476
      %v3537 = vadd.f32 %v2917, %v3479
      %v3538 = vadd.f32 %v2922, %v3484
      %v3539 = vadd.f32 %v2925, %v3487
      %v3540 = vadd.f32 %v2930, %v3492
      %v3541 = vadd.f32 %v2933, %v3495
      %v3542 = vadd.f32 %v2938, %v3500
      %v3543 = vadd.f32 %v2941, %v3503
      %v3544 = vadd.f32 %v2946, %v3508
      %v3545 = vadd.f32 %v2949, %v3511
      %v3546 = vadd.f32 %v3514, %v3515
      %v3547 = vadd.f32 %v3546, %v3516
      %v3548 = vadd.f32 %v3547, %v3517
      %v3549 = vadd.f32 %v3548, %v3518
      %v3550 = vadd.f32 %v3549, %v3519
      %v3551 = vadd.f32 %v3550, %v3520
      %v3552 = vadd.f32 %v3551, %v3521
      %v3553 = vadd.f32 %v3552, %v3522
      %v3554 = vadd.f32 %v3553, %v3523
      %v3555 = vadd.f32 %v3554, %v3524
      %v3556 = vadd.f32 %v3555, %v3525
      %v3557 = vadd.f32 %v3556, %v3526
      %v3558 = vadd.f32 %v3557, %v3527
      %v3559 = vadd.f32 %v3558, %v3528
      %v3560 = vadd.f32 %v3559, %v3529
      %v3561 = vadd.f32 %v3560, %v3530
      %v3562 = vadd.f32 %v3561, %v3531
      %v3563 = vadd.f32 %v3562, %v3532
      %v3564 = vadd.f32 %v3563, %v3533
      %v3565 = vadd.f32 %v3564, %v3534
      %v3566 = vadd.f32 %v3565, %v3535
      %v3567 = vadd.f32 %v3566, %v3536
      %v3568 = vadd.f32 %v3567, %v3537
      %v3569 = vadd.f32 %v3568, %v3538
      %v3570 = vadd.f32 %v3569, %v3539
      %v3571 = vadd.f32 %v3570, %v3540
      %v3572 = vadd.f32 %v3571, %v3541
      %v3573 = vadd.f32 %v3572, %v3542
      %v3574 = vadd.f32 %v3573, %v3543
      %v3575 = vadd.f32 %v3574, %v3544
      %v3576 = vadd.f32 %v3575, %v3545
      %v3577 = vrot.slane %v3576, 4
      %v3578 = vadd.f32 %v3576, %v3577
      %v3579 = vrot.slane %v3578, 2
      %v3580 = vadd.f32 %v3578, %v3579
      %v3581 = vrot.slane %v3580, 1
      %v3582 = vadd.f32 %v3580, %v3581
      %v3583 = vmul.f32 %v3582, 0.00390625
      %v3584 = vsub.f32 %v3514, %v3583
      %v3585 = vsub.f32 %v3515, %v3583
      %v3586 = vsub.f32 %v3516, %v3583
      %v3587 = vsub.f32 %v3517, %v3583
      %v3588 = vsub.f32 %v3518, %v3583
      %v3589 = vsub.f32 %v3519, %v3583
      %v3590 = vsub.f32 %v3520, %v3583
      %v3591 = vsub.f32 %v3521, %v3583
      %v3592 = vsub.f32 %v3522, %v3583
      %v3593 = vsub.f32 %v3523, %v3583
      %v3594 = vsub.f32 %v3524, %v3583
      %v3595 = vsub.f32 %v3525, %v3583
      %v3596 = vsub.f32 %v3526, %v3583
      %v3597 = vsub.f32 %v3527, %v3583
      %v3598 = vsub.f32 %v3528, %v3583
      %v3599 = vsub.f32 %v3529, %v3583
      %v3600 = vsub.f32 %v3530, %v3583
      %v3601 = vsub.f32 %v3531, %v3583
      %v3602 = vsub.f32 %v3532, %v3583
      %v3603 = vsub.f32 %v3533, %v3583
      %v3604 = vsub.f32 %v3534, %v3583
      %v3605 = vsub.f32 %v3535, %v3583
      %v3606 = vsub.f32 %v3536, %v3583
      %v3607 = vsub.f32 %v3537, %v3583
      %v3608 = vsub.f32 %v3538, %v3583
      %v3609 = vsub.f32 %v3539, %v3583
      %v3610 = vsub.f32 %v3540, %v3583
      %v3611 = vsub.f32 %v3541, %v3583
      %v3612 = vsub.f32 %v3542, %v3583
      %v3613 = vsub.f32 %v3543, %v3583
      %v3614 = vsub.f32 %v3544, %v3583
      %v3615 = vsub.f32 %v3545, %v3583
      %v3616 = vmul.f32 %v3584, %v3584
      %v3617 = vmul.f32 %v3585, %v3585
      %v3618 = vmul.f32 %v3586, %v3586
      %v3619 = vmul.f32 %v3587, %v3587
      %v3620 = vmul.f32 %v3588, %v3588
      %v3621 = vmul.f32 %v3589, %v3589
      %v3622 = vmul.f32 %v3590, %v3590
      %v3623 = vmul.f32 %v3591, %v3591
      %v3624 = vmul.f32 %v3592, %v3592
      %v3625 = vmul.f32 %v3593, %v3593
      %v3626 = vmul.f32 %v3594, %v3594
      %v3627 = vmul.f32 %v3595, %v3595
      %v3628 = vmul.f32 %v3596, %v3596
      %v3629 = vmul.f32 %v3597, %v3597
      %v3630 = vmul.f32 %v3598, %v3598
      %v3631 = vmul.f32 %v3599, %v3599
      %v3632 = vmul.f32 %v3600, %v3600
      %v3633 = vmul.f32 %v3601, %v3601
      %v3634 = vmul.f32 %v3602, %v3602
      %v3635 = vmul.f32 %v3603, %v3603
      %v3636 = vmul.f32 %v3604, %v3604
      %v3637 = vmul.f32 %v3605, %v3605
      %v3638 = vmul.f32 %v3606, %v3606
      %v3639 = vmul.f32 %v3607, %v3607
      %v3640 = vmul.f32 %v3608, %v3608
      %v3641 = vmul.f32 %v3609, %v3609
      %v3642 = vmul.f32 %v3610, %v3610
      %v3643 = vmul.f32 %v3611, %v3611
      %v3644 = vmul.f32 %v3612, %v3612
      %v3645 = vmul.f32 %v3613, %v3613
      %v3646 = vmul.f32 %v3614, %v3614
      %v3647 = vmul.f32 %v3615, %v3615
      %v3648 = vadd.f32 %v3616, %v3617
      %v3649 = vadd.f32 %v3648, %v3618
      %v3650 = vadd.f32 %v3649, %v3619
      %v3651 = vadd.f32 %v3650, %v3620
      %v3652 = vadd.f32 %v3651, %v3621
      %v3653 = vadd.f32 %v3652, %v3622
      %v3654 = vadd.f32 %v3653, %v3623
      %v3655 = vadd.f32 %v3654, %v3624
      %v3656 = vadd.f32 %v3655, %v3625
      %v3657 = vadd.f32 %v3656, %v3626
      %v3658 = vadd.f32 %v3657, %v3627
      %v3659 = vadd.f32 %v3658, %v3628
      %v3660 = vadd.f32 %v3659, %v3629
      %v3661 = vadd.f32 %v3660, %v3630
      %v3662 = vadd.f32 %v3661, %v3631
      %v3663 = vadd.f32 %v3662, %v3632
      %v3664 = vadd.f32 %v3663, %v3633
      %v3665 = vadd.f32 %v3664, %v3634
      %v3666 = vadd.f32 %v3665, %v3635
      %v3667 = vadd.f32 %v3666, %v3636
      %v3668 = vadd.f32 %v3667, %v3637
      %v3669 = vadd.f32 %v3668, %v3638
      %v3670 = vadd.f32 %v3669, %v3639
      %v3671 = vadd.f32 %v3670, %v3640
      %v3672 = vadd.f32 %v3671, %v3641
      %v3673 = vadd.f32 %v3672, %v3642
      %v3674 = vadd.f32 %v3673, %v3643
      %v3675 = vadd.f32 %v3674, %v3644
      %v3676 = vadd.f32 %v3675, %v3645
      %v3677 = vadd.f32 %v3676, %v3646
      %v3678 = vadd.f32 %v3677, %v3647
      %v3679 = vrot.slane %v3678, 4
      %v3680 = vadd.f32 %v3678, %v3679
      %v3681 = vrot.slane %v3680, 2
      %v3682 = vadd.f32 %v3680, %v3681
      %v3683 = vrot.slane %v3682, 1
      %v3684 = vadd.f32 %v3682, %v3683
      %v3685 = vmul.f32 %v3684, 0.00390625
      %v3686 = vadd.f32 %v3685, 1e-05
      %v3687 = vrsqrt.pop %v3686
      %v3688 = vmul.f32 %v3584, %v3687
      %v3689 = vmul.f32 %v3585, %v3687
      %v3690 = vmul.f32 %v3586, %v3687
      %v3691 = vmul.f32 %v3587, %v3687
      %v3692 = vmul.f32 %v3588, %v3687
      %v3693 = vmul.f32 %v3589, %v3687
      %v3694 = vmul.f32 %v3590, %v3687
      %v3695 = vmul.f32 %v3591, %v3687
      %v3696 = vmul.f32 %v3592, %v3687
      %v3697 = vmul.f32 %v3593, %v3687
      %v3698 = vmul.f32 %v3594, %v3687
      %v3699 = vmul.f32 %v3595, %v3687
      %v3700 = vmul.f32 %v3596, %v3687
      %v3701 = vmul.f32 %v3597, %v3687
      %v3702 = vmul.f32 %v3598, %v3687
      %v3703 = vmul.f32 %v3599, %v3687
      %v3704 = vmul.f32 %v3600, %v3687
      %v3705 = vmul.f32 %v3601, %v3687
      %v3706 = vmul.f32 %v3602, %v3687
      %v3707 = vmul.f32 %v3603, %v3687
      %v3708 = vmul.f32 %v3604, %v3687
      %v3709 = vmul.f32 %v3605, %v3687
      %v3710 = vmul.f32 %v3606, %v3687
      %v3711 = vmul.f32 %v3607, %v3687
      %v3712 = vmul.f32 %v3608, %v3687
      %v3713 = vmul.f32 %v3609, %v3687
      %v3714 = vmul.f32 %v3610, %v3687
      %v3715 = vmul.f32 %v3611, %v3687
      %v3716 = vmul.f32 %v3612, %v3687
      %v3717 = vmul.f32 %v3613, %v3687
      %v3718 = vmul.f32 %v3614, %v3687
      %v3719 = vmul.f32 %v3615, %v3687
      %v3720 = vmax.f32 %v3688, 0.0
      %v3721 = vmax.f32 %v3689, 0.0
      %v3722 = vmax.f32 %v3690, 0.0
      %v3723 = vmax.f32 %v3691, 0.0
      %v3724 = vmax.f32 %v3692, 0.0
      %v3725 = vmax.f32 %v3693, 0.0
      %v3726 = vmax.f32 %v3694, 0.0
      %v3727 = vmax.f32 %v3695, 0.0
      %v3728 = vmax.f32 %v3696, 0.0
      %v3729 = vmax.f32 %v3697, 0.0
      %v3730 = vmax.f32 %v3698, 0.0
      %v3731 = vmax.f32 %v3699, 0.0
      %v3732 = vmax.f32 %v3700, 0.0
      %v3733 = vmax.f32 %v3701, 0.0
      %v3734 = vmax.f32 %v3702, 0.0
      %v3735 = vmax.f32 %v3703, 0.0
      %v3736 = vmax.f32 %v3704, 0.0
      %v3737 = vmax.f32 %v3705, 0.0
      %v3738 = vmax.f32 %v3706, 0.0
      %v3739 = vmax.f32 %v3707, 0.0
      %v3740 = vmax.f32 %v3708, 0.0
      %v3741 = vmax.f32 %v3709, 0.0
      %v3742 = vmax.f32 %v3710, 0.0
      %v3743 = vmax.f32 %v3711, 0.0
      %v3744 = vmax.f32 %v3712, 0.0
      %v3745 = vmax.f32 %v3713, 0.0
      %v3746 = vmax.f32 %v3714, 0.0
      %v3747 = vmax.f32 %v3715, 0.0
      %v3748 = vmax.f32 %v3716, 0.0
      %v3749 = vmax.f32 %v3717, 0.0
      %v3750 = vmax.f32 %v3718, 0.0
      %v3751 = vmax.f32 %v3719, 0.0
      %v3752 = vpack.c.bf16 %v3721, %v3720
      %v3753 = vpack.c.bf16 %v3723, %v3722
      %v3754 = vpack.c.bf16 %v3725, %v3724
      %v3755 = vpack.c.bf16 %v3727, %v3726
      %v3756 = vpack.c.bf16 %v3729, %v3728
      %v3757 = vpack.c.bf16 %v3731, %v3730
      %v3758 = vpack.c.bf16 %v3733, %v3732
      %v3759 = vpack.c.bf16 %v3735, %v3734
      %v3760 = vpack.c.bf16 %v3737, %v3736
      %v3761 = vpack.c.bf16 %v3739, %v3738
      %v3762 = vpack.c.bf16 %v3741, %v3740
      %v3763 = vpack.c.bf16 %v3743, %v3742
      %v3764 = vpack.c.bf16 %v3745, %v3744
      %v3765 = vpack.c.bf16 %v3747, %v3746
      %v3766 = vpack.c.bf16 %v3749, %v3748
      %v3767 = vpack.c.bf16 %v3751, %v3750
      %3768 = vst [vmem:[#allocation2 + $0x20] sm:$0xff] %v3752
      %3769 = vst [vmem:[#allocation2 + $0x38] sm:$0xff] %v3753
      %3770 = vst [vmem:[#allocation2 + $0x50] sm:$0xff] %v3754
      %3771 = vst [vmem:[#allocation2 + $0x68] sm:$0xff] %v3755
      %3772 = vst [vmem:[#allocation2 + $0x80] sm:$0xff] %v3756
      %3773 = vst [vmem:[#allocation2 + $0x98] sm:$0xff] %v3757
      %3774 = vst [vmem:[#allocation2 + $0xb0] sm:$0xff] %v3758
      %3775 = vst [vmem:[#allocation2 + $0xc8] sm:$0xff] %v3759
      %3776 = vst [vmem:[#allocation2 + $0xe0] sm:$0xff] %v3760
      %3777 = vst [vmem:[#allocation2 + $0xf8] sm:$0xff] %v3761
      %3778 = vst [vmem:[#allocation2 + $0x110] sm:$0xff] %v3762
      %3779 = vst [vmem:[#allocation2 + $0x128] sm:$0xff] %v3763
      %3780 = vst [vmem:[#allocation2 + $0x140] sm:$0xff] %v3764
      %3781 = vst [vmem:[#allocation2 + $0x158] sm:$0xff] %v3765
      %3782 = vst [vmem:[#allocation2 + $0x170] sm:$0xff] %v3766
      %3783 = vst [vmem:[#allocation2 + $0x188] sm:$0xff] %v3767
      %v3784 = vld [vmem:[#allocation2 + $0x8] sm:$0x80]
      %v3785 = vld [vmem:[#allocation2 + $0x20] sm:$0xff]
      %v3786 = vld [vmem:[#allocation2 + $0x38] sm:$0xff]
      %v3787 = vld [vmem:[#allocation2 + $0x50] sm:$0xff]
      %v3788 = vld [vmem:[#allocation2 + $0x68] sm:$0xff]
      %v3789 = vld [vmem:[#allocation2 + $0x80] sm:$0xff]
      %v3790 = vld [vmem:[#allocation2 + $0x98] sm:$0xff]
      %v3791 = vld [vmem:[#allocation2 + $0xb0] sm:$0xff]
      %v3792 = vld [vmem:[#allocation2 + $0xc8] sm:$0xff]
      %v3793 = vld [vmem:[#allocation2 + $0xe0] sm:$0xff]
      %v3794 = vld [vmem:[#allocation2 + $0xf8] sm:$0xff]
      %v3795 = vld [vmem:[#allocation2 + $0x110] sm:$0xff]
      %v3796 = vld [vmem:[#allocation2 + $0x128] sm:$0xff]
      %v3797 = vld [vmem:[#allocation2 + $0x140] sm:$0xff]
      %v3798 = vld [vmem:[#allocation2 + $0x158] sm:$0xff]
      %v3799 = vld [vmem:[#allocation2 + $0x170] sm:$0xff]
      %v3800 = vld [vmem:[#allocation2 + $0x188] sm:$0xff]
      %v3801 = vld [vmem:[#allocation2 + $0x1a0] sm:$0x1]
      %v3819 = vrot.slane %v3784, 7
      %v3820 = vrot.slane %v3785, 7
      %v3821 = vsel %vm1043, %v3819, %v3820
      %v3822 = vrot.slane %v3786, 7
      %v3823 = vsel %vm1043, %v3820, %v3822
      %v3824 = vrot.slane %v3787, 7
      %v3825 = vsel %vm1043, %v3822, %v3824
      %v3826 = vrot.slane %v3788, 7
      %v3827 = vsel %vm1043, %v3824, %v3826
      %v3828 = vrot.slane %v3789, 7
      %v3829 = vsel %vm1043, %v3826, %v3828
      %v3830 = vrot.slane %v3790, 7
      %v3831 = vsel %vm1043, %v3828, %v3830
      %v3832 = vrot.slane %v3791, 7
      %v3833 = vsel %vm1043, %v3830, %v3832
      %v3834 = vrot.slane %v3792, 7
      %v3835 = vsel %vm1043, %v3832, %v3834
      %v3836 = vrot.slane %v3793, 7
      %v3837 = vsel %vm1043, %v3834, %v3836
      %v3838 = vrot.slane %v3794, 7
      %v3839 = vsel %vm1043, %v3836, %v3838
      %v3840 = vrot.slane %v3795, 7
      %v3841 = vsel %vm1043, %v3838, %v3840
      %v3842 = vrot.slane %v3796, 7
      %v3843 = vsel %vm1043, %v3840, %v3842
      %v3844 = vrot.slane %v3797, 7
      %v3845 = vsel %vm1043, %v3842, %v3844
      %v3846 = vrot.slane %v3798, 7
      %v3847 = vsel %vm1043, %v3844, %v3846
      %v3848 = vrot.slane %v3799, 7
      %v3849 = vsel %vm1043, %v3846, %v3848
      %v3850 = vrot.slane %v3800, 7
      %v3851 = vsel %vm1043, %v3848, %v3850
      %v3869 = vsel %vm1009, %v3785, %v3821
      %v3870 = vsel %vm1010, %v3786, %v3823
      %v3871 = vsel %vm1011, %v3787, %v3825
      %v3872 = vsel %vm1012, %v3788, %v3827
      %v3873 = vsel %vm1013, %v3789, %v3829
      %v3874 = vsel %vm1014, %v3790, %v3831
      %v3875 = vsel %vm1015, %v3791, %v3833
      %v3876 = vsel %vm1016, %v3792, %v3835
      %v3877 = vsel %vm1017, %v3793, %v3837
      %v3878 = vsel %vm1018, %v3794, %v3839
      %v3879 = vsel %vm1019, %v3795, %v3841
      %v3880 = vsel %vm1020, %v3796, %v3843
      %v3881 = vsel %vm1021, %v3797, %v3845
      %v3882 = vsel %vm1022, %v3798, %v3847
      %v3883 = vsel %vm1023, %v3799, %v3849
      %v3884 = vsel %vm1024, %v3800, %v3851
      %v3885 = vsel %vm1025, %v3801, %v3850
      %v3887 = vshrl.u32 %v3869, 16
      %v3889 = vshll.u32 %v3869, 16
      %v3891 = vrot.slane %v3889, 1
      %v3892 = vor.u32 %v3887, %v3891
      %v3894 = vshll.u32 %v3870, 16
      %v3896 = vrot.slane %v3894, 1
      %v3897 = vsel %vm1111, %v3892, %v3896
      %v3898 = vshrl.u32 %v3870, 16
      %v3900 = vor.u32 %v3898, %v3896
      %v3902 = vshll.u32 %v3871, 16
      %v3904 = vrot.slane %v3902, 1
      %v3905 = vsel %vm1111, %v3900, %v3904
      %v3906 = vshrl.u32 %v3871, 16
      %v3908 = vor.u32 %v3906, %v3904
      %v3910 = vshll.u32 %v3872, 16
      %v3912 = vrot.slane %v3910, 1
      %v3913 = vsel %vm1111, %v3908, %v3912
      %v3914 = vshrl.u32 %v3872, 16
      %v3916 = vor.u32 %v3914, %v3912
      %v3918 = vshll.u32 %v3873, 16
      %v3920 = vrot.slane %v3918, 1
      %v3921 = vsel %vm1111, %v3916, %v3920
      %v3922 = vshrl.u32 %v3873, 16
      %v3924 = vor.u32 %v3922, %v3920
      %v3926 = vshll.u32 %v3874, 16
      %v3928 = vrot.slane %v3926, 1
      %v3929 = vsel %vm1111, %v3924, %v3928
      %v3930 = vshrl.u32 %v3874, 16
      %v3932 = vor.u32 %v3930, %v3928
      %v3934 = vshll.u32 %v3875, 16
      %v3936 = vrot.slane %v3934, 1
      %v3937 = vsel %vm1111, %v3932, %v3936
      %v3938 = vshrl.u32 %v3875, 16
      %v3940 = vor.u32 %v3938, %v3936
      %v3942 = vshll.u32 %v3876, 16
      %v3944 = vrot.slane %v3942, 1
      %v3945 = vsel %vm1111, %v3940, %v3944
      %v3946 = vshrl.u32 %v3876, 16
      %v3948 = vor.u32 %v3946, %v3944
      %v3950 = vshll.u32 %v3877, 16
      %v3952 = vrot.slane %v3950, 1
      %v3953 = vsel %vm1111, %v3948, %v3952
      %v3954 = vshrl.u32 %v3877, 16
      %v3956 = vor.u32 %v3954, %v3952
      %v3958 = vshll.u32 %v3878, 16
      %v3960 = vrot.slane %v3958, 1
      %v3961 = vsel %vm1111, %v3956, %v3960
      %v3962 = vshrl.u32 %v3878, 16
      %v3964 = vor.u32 %v3962, %v3960
      %v3966 = vshll.u32 %v3879, 16
      %v3968 = vrot.slane %v3966, 1
      %v3969 = vsel %vm1111, %v3964, %v3968
      %v3970 = vshrl.u32 %v3879, 16
      %v3972 = vor.u32 %v3970, %v3968
      %v3974 = vshll.u32 %v3880, 16
      %v3976 = vrot.slane %v3974, 1
      %v3977 = vsel %vm1111, %v3972, %v3976
      %v3978 = vshrl.u32 %v3880, 16
      %v3980 = vor.u32 %v3978, %v3976
      %v3982 = vshll.u32 %v3881, 16
      %v3984 = vrot.slane %v3982, 1
      %v3985 = vsel %vm1111, %v3980, %v3984
      %v3986 = vshrl.u32 %v3881, 16
      %v3988 = vor.u32 %v3986, %v3984
      %v3990 = vshll.u32 %v3882, 16
      %v3992 = vrot.slane %v3990, 1
      %v3993 = vsel %vm1111, %v3988, %v3992
      %v3994 = vshrl.u32 %v3882, 16
      %v3996 = vor.u32 %v3994, %v3992
      %v3998 = vshll.u32 %v3883, 16
      %v4000 = vrot.slane %v3998, 1
      %v4001 = vsel %vm1111, %v3996, %v4000
      %v4002 = vshrl.u32 %v3883, 16
      %v4004 = vor.u32 %v4002, %v4000
      %v4006 = vshll.u32 %v3884, 16
      %v4008 = vrot.slane %v4006, 1
      %v4009 = vsel %vm1111, %v4004, %v4008
      %v4010 = vshrl.u32 %v3884, 16
      %v4012 = vor.u32 %v4010, %v4008
      %v4014 = vshll.u32 %v3885, 16
      %v4016 = vrot.slane %v4014, 1
      %v4017 = vsel %vm1111, %v4012, %v4016
      %4034 = vst [vmem:[#allocation2 + $0x18] sm:$0xff] %v3897
      %4035 = vst [vmem:[#allocation2 + $0x30] sm:$0xff] %v3905
      %4036 = vst [vmem:[#allocation2 + $0x48] sm:$0xff] %v3913
      %4037 = vst [vmem:[#allocation2 + $0x60] sm:$0xff] %v3921
      %4038 = vst [vmem:[#allocation2 + $0x78] sm:$0xff] %v3929
      %4039 = vst [vmem:[#allocation2 + $0x90] sm:$0xff] %v3937
      %4040 = vst [vmem:[#allocation2 + $0xa8] sm:$0xff] %v3945
      %4041 = vst [vmem:[#allocation2 + $0xc0] sm:$0xff] %v3953
      %4042 = vst [vmem:[#allocation2 + $0xd8] sm:$0xff] %v3961
      %4043 = vst [vmem:[#allocation2 + $0xf0] sm:$0xff] %v3969
      %4044 = vst [vmem:[#allocation2 + $0x108] sm:$0xff] %v3977
      %4045 = vst [vmem:[#allocation2 + $0x120] sm:$0xff] %v3985
      %4046 = vst [vmem:[#allocation2 + $0x138] sm:$0xff] %v3993
      %4047 = vst [vmem:[#allocation2 + $0x150] sm:$0xff] %v4001
      %4048 = vst [vmem:[#allocation2 + $0x168] sm:$0xff] %v4009
      %4049 = vst [vmem:[#allocation2 + $0x180] sm:$0xff] %v4017
      %v4051 = vrot.slane %v3785, 1
      %v4052 = vrot.slane %v3786, 1
      %v4053 = vsel %vm1629, %v4051, %v4052
      %v4054 = vrot.slane %v3787, 1
      %v4055 = vsel %vm1629, %v4052, %v4054
      %v4056 = vrot.slane %v3788, 1
      %v4057 = vsel %vm1629, %v4054, %v4056
      %v4058 = vrot.slane %v3789, 1
      %v4059 = vsel %vm1629, %v4056, %v4058
      %v4060 = vrot.slane %v3790, 1
      %v4061 = vsel %vm1629, %v4058, %v4060
      %v4062 = vrot.slane %v3791, 1
      %v4063 = vsel %vm1629, %v4060, %v4062
      %v4064 = vrot.slane %v3792, 1
      %v4065 = vsel %vm1629, %v4062, %v4064
      %v4066 = vrot.slane %v3793, 1
      %v4067 = vsel %vm1629, %v4064, %v4066
      %v4068 = vrot.slane %v3794, 1
      %v4069 = vsel %vm1629, %v4066, %v4068
      %v4070 = vrot.slane %v3795, 1
      %v4071 = vsel %vm1629, %v4068, %v4070
      %v4072 = vrot.slane %v3796, 1
      %v4073 = vsel %vm1629, %v4070, %v4072
      %v4074 = vrot.slane %v3797, 1
      %v4075 = vsel %vm1629, %v4072, %v4074
      %v4076 = vrot.slane %v3798, 1
      %v4077 = vsel %vm1629, %v4074, %v4076
      %v4078 = vrot.slane %v3799, 1
      %v4079 = vsel %vm1629, %v4076, %v4078
      %v4080 = vrot.slane %v3800, 1
      %v4081 = vsel %vm1629, %v4078, %v4080
      %v4082 = vrot.slane %v3801, 1
      %v4083 = vsel %vm1629, %v4080, %v4082
      %v4101 = vsel %vm1611, %v3784, %v4051
      %v4102 = vsel %vm1612, %v3785, %v4053
      %v4103 = vsel %vm1613, %v3786, %v4055
      %v4104 = vsel %vm1614, %v3787, %v4057
      %v4105 = vsel %vm1615, %v3788, %v4059
      %v4106 = vsel %vm1616, %v3789, %v4061
      %v4107 = vsel %vm1617, %v3790, %v4063
      %v4108 = vsel %vm1618, %v3791, %v4065
      %v4109 = vsel %vm1619, %v3792, %v4067
      %v4110 = vsel %vm1620, %v3793, %v4069
      %v4111 = vsel %vm1621, %v3794, %v4071
      %v4112 = vsel %vm1622, %v3795, %v4073
      %v4113 = vsel %vm1623, %v3796, %v4075
      %v4114 = vsel %vm1624, %v3797, %v4077
      %v4115 = vsel %vm1625, %v3798, %v4079
      %v4116 = vsel %vm1626, %v3799, %v4081
      %v4117 = vsel %vm1627, %v3800, %v4083
      %v4119 = vshrl.u32 %v4101, 16
      %v4121 = vrot.slane %v4119, 7
      %v4123 = vshrl.u32 %v4102, 16
      %v4125 = vrot.slane %v4123, 7
      %v4126 = vshll.u32 %v4102, 16
      %v4128 = vor.u32 %v4125, %v4126
      %v4129 = vsel %vm881, %v4121, %v4128
      %v4131 = vshrl.u32 %v4103, 16
      %v4133 = vrot.slane %v4131, 7
      %v4134 = vshll.u32 %v4103, 16
      %v4136 = vor.u32 %v4133, %v4134
      %v4137 = vsel %vm881, %v4125, %v4136
      %v4139 = vshrl.u32 %v4104, 16
      %v4141 = vrot.slane %v4139, 7
      %v4142 = vshll.u32 %v4104, 16
      %v4144 = vor.u32 %v4141, %v4142
      %v4145 = vsel %vm881, %v4133, %v4144
      %v4147 = vshrl.u32 %v4105, 16
      %v4149 = vrot.slane %v4147, 7
      %v4150 = vshll.u32 %v4105, 16
      %v4152 = vor.u32 %v4149, %v4150
      %v4153 = vsel %vm881, %v4141, %v4152
      %v4155 = vshrl.u32 %v4106, 16
      %v4157 = vrot.slane %v4155, 7
      %v4158 = vshll.u32 %v4106, 16
      %v4160 = vor.u32 %v4157, %v4158
      %v4161 = vsel %vm881, %v4149, %v4160
      %v4163 = vshrl.u32 %v4107, 16
      %v4165 = vrot.slane %v4163, 7
      %v4166 = vshll.u32 %v4107, 16
      %v4168 = vor.u32 %v4165, %v4166
      %v4169 = vsel %vm881, %v4157, %v4168
      %v4171 = vshrl.u32 %v4108, 16
      %v4173 = vrot.slane %v4171, 7
      %v4174 = vshll.u32 %v4108, 16
      %v4176 = vor.u32 %v4173, %v4174
      %v4177 = vsel %vm881, %v4165, %v4176
      %v4179 = vshrl.u32 %v4109, 16
      %v4181 = vrot.slane %v4179, 7
      %v4182 = vshll.u32 %v4109, 16
      %v4184 = vor.u32 %v4181, %v4182
      %v4185 = vsel %vm881, %v4173, %v4184
      %v4187 = vshrl.u32 %v4110, 16
      %v4189 = vrot.slane %v4187, 7
      %v4190 = vshll.u32 %v4110, 16
      %v4192 = vor.u32 %v4189, %v4190
      %v4193 = vsel %vm881, %v4181, %v4192
      %v4195 = vshrl.u32 %v4111, 16
      %v4197 = vrot.slane %v4195, 7
      %v4198 = vshll.u32 %v4111, 16
      %v4200 = vor.u32 %v4197, %v4198
      %v4201 = vsel %vm881, %v4189, %v4200
      %v4203 = vshrl.u32 %v4112, 16
      %v4205 = vrot.slane %v4203, 7
      %v4206 = vshll.u32 %v4112, 16
      %v4208 = vor.u32 %v4205, %v4206
      %v4209 = vsel %vm881, %v4197, %v4208
      %v4211 = vshrl.u32 %v4113, 16
      %v4213 = vrot.slane %v4211, 7
      %v4214 = vshll.u32 %v4113, 16
      %v4216 = vor.u32 %v4213, %v4214
      %v4217 = vsel %vm881, %v4205, %v4216
      %v4219 = vshrl.u32 %v4114, 16
      %v4221 = vrot.slane %v4219, 7
      %v4222 = vshll.u32 %v4114, 16
      %v4224 = vor.u32 %v4221, %v4222
      %v4225 = vsel %vm881, %v4213, %v4224
      %v4227 = vshrl.u32 %v4115, 16
      %v4229 = vrot.slane %v4227, 7
      %v4230 = vshll.u32 %v4115, 16
      %v4232 = vor.u32 %v4229, %v4230
      %v4233 = vsel %vm881, %v4221, %v4232
      %v4235 = vshrl.u32 %v4116, 16
      %v4237 = vrot.slane %v4235, 7
      %v4238 = vshll.u32 %v4116, 16
      %v4240 = vor.u32 %v4237, %v4238
      %v4241 = vsel %vm881, %v4229, %v4240
      %v4243 = vshrl.u32 %v4117, 16
      %v4245 = vrot.slane %v4243, 7
      %v4246 = vshll.u32 %v4117, 16
      %v4248 = vor.u32 %v4245, %v4246
      %v4249 = vsel %vm881, %v4237, %v4248
      %4266 = vst [vmem:[#allocation2 + $0x28] sm:$0xff] %v4129
      %4267 = vst [vmem:[#allocation2 + $0x40] sm:$0xff] %v4137
      %4268 = vst [vmem:[#allocation2 + $0x58] sm:$0xff] %v4145
      %4269 = vst [vmem:[#allocation2 + $0x70] sm:$0xff] %v4153
      %4270 = vst [vmem:[#allocation2 + $0x88] sm:$0xff] %v4161
      %4271 = vst [vmem:[#allocation2 + $0xa0] sm:$0xff] %v4169
      %4272 = vst [vmem:[#allocation2 + $0xb8] sm:$0xff] %v4177
      %4273 = vst [vmem:[#allocation2 + $0xd0] sm:$0xff] %v4185
      %4274 = vst [vmem:[#allocation2 + $0xe8] sm:$0xff] %v4193
      %4275 = vst [vmem:[#allocation2 + $0x100] sm:$0xff] %v4201
      %4276 = vst [vmem:[#allocation2 + $0x118] sm:$0xff] %v4209
      %4277 = vst [vmem:[#allocation2 + $0x130] sm:$0xff] %v4217
      %4278 = vst [vmem:[#allocation2 + $0x148] sm:$0xff] %v4225
      %4279 = vst [vmem:[#allocation2 + $0x160] sm:$0xff] %v4233
      %4280 = vst [vmem:[#allocation2 + $0x178] sm:$0xff] %v4241
      %4281 = vst [vmem:[#allocation2 + $0x190] sm:$0xff] %v4249
      %v4282 = vld [vmem:[#allocation2 + $0x30] sm:$0xff]
      %v4283 = vld [vmem:[#allocation2 + $0x38] sm:$0xff]
      %v4284 = vld [vmem:[#allocation2 + $0x40] sm:$0xff]
      %4285 = vst [vmem:[#allocation2] sm:$0xff] %v4282
      %4286 = vst [vmem:[#allocation2 + $0x8] sm:$0xff] %v4283
      %4287 = vst [vmem:[#allocation2 + $0x10] sm:$0xff] %v4284
      %v4288 = vld [vmem:[#allocation2 + $0x168] sm:$0xff]
      %v4289 = vld [vmem:[#allocation2 + $0x170] sm:$0xff]
      %v4290 = vld [vmem:[#allocation2 + $0x178] sm:$0xff]
      %4291 = vst [vmem:[#allocation2 + $0x198] sm:$0xff] %v4288
      %4292 = vst [vmem:[#allocation2 + $0x1a0] sm:$0xff] %v4289
      %4293 = vst [vmem:[#allocation2 + $0x1a8] sm:$0xff] %v4290
      %v4294 = vld [vmem:[%s165] sm:$0xff]
      %v4295 = vld [vmem:[%s165 + $0x8] sm:$0xff]
      %v4296 = vld [vmem:[%s165 + $0x10] sm:$0xff]
      %v4297 = vld [vmem:[%s165 + $0x18] sm:$0xff]
      %v4298 = vld [vmem:[%s165 + $0x20] sm:$0xff]
      %v4299 = vld [vmem:[%s165 + $0x28] sm:$0xff]
      %v4300 = vld [vmem:[%s165 + $0x30] sm:$0xff]
      %v4301 = vld [vmem:[%s165 + $0x38] sm:$0xff]
      %v4302 = vld [vmem:[%s165 + $0x40] sm:$0xff]
      %v4303 = vld [vmem:[%s165 + $0x48] sm:$0xff]
      %v4304 = vld [vmem:[%s165 + $0x50] sm:$0xff]
      %v4305 = vld [vmem:[%s165 + $0x58] sm:$0xff]
      %v4306 = vld [vmem:[%s165 + $0x60] sm:$0xff]
      %v4307 = vld [vmem:[%s165 + $0x68] sm:$0xff]
      %v4308 = vld [vmem:[%s165 + $0x70] sm:$0xff]
      %v4309 = vld [vmem:[%s165 + $0x78] sm:$0xff]
      %v4310 = vld [vmem:[%s165 + $0x80] sm:$0xff]
      %v4311 = vld [vmem:[%s165 + $0x88] sm:$0xff]
      %v4312 = vld [vmem:[%s165 + $0x90] sm:$0xff]
      %v4313 = vld [vmem:[%s165 + $0x98] sm:$0xff]
      %v4314 = vld [vmem:[%s165 + $0xa0] sm:$0xff]
      %v4315 = vld [vmem:[%s165 + $0xa8] sm:$0xff]
      %v4316 = vld [vmem:[%s165 + $0xb0] sm:$0xff]
      %v4317 = vld [vmem:[%s165 + $0xb8] sm:$0xff]
      %v4318 = vld [vmem:[%s165 + $0xc0] sm:$0xff]
      %v4319 = vld [vmem:[%s165 + $0xc8] sm:$0xff]
      %v4320 = vld [vmem:[%s165 + $0xd0] sm:$0xff]
      %v4321 = vld [vmem:[%s165 + $0xd8] sm:$0xff]
      %v4322 = vld [vmem:[%s165 + $0xe0] sm:$0xff]
      %v4323 = vld [vmem:[%s165 + $0xe8] sm:$0xff]
      %v4324 = vld [vmem:[%s165 + $0xf0] sm:$0xff]
      %v4325 = vld [vmem:[%s165 + $0xf8] sm:$0xff]
      %v4326 = vld [vmem:[#allocation2] sm:$0xff]
      %v4327 = vld [vmem:[#allocation2 + $0x8] sm:$0xff]
      %v4328 = vld [vmem:[#allocation2 + $0x10] sm:$0xff]
      %v4329 = vld [vmem:[#allocation2 + $0x18] sm:$0xff]
      %v4330 = vld [vmem:[#allocation2 + $0x20] sm:$0xff]
      %v4331 = vld [vmem:[#allocation2 + $0x28] sm:$0xff]
      %v4332 = vld [vmem:[#allocation2 + $0x30] sm:$0xff]
      %v4333 = vld [vmem:[#allocation2 + $0x38] sm:$0xff]
      %v4334 = vld [vmem:[#allocation2 + $0x40] sm:$0xff]
      %v4335 = vld [vmem:[#allocation2 + $0x48] sm:$0xff]
      %v4336 = vld [vmem:[#allocation2 + $0x50] sm:$0xff]
      %v4337 = vld [vmem:[#allocation2 + $0x58] sm:$0xff]
      %v4338 = vld [vmem:[#allocation2 + $0x60] sm:$0xff]
      %v4339 = vld [vmem:[#allocation2 + $0x68] sm:$0xff]
      %v4340 = vld [vmem:[#allocation2 + $0x70] sm:$0xff]
      %v4341 = vld [vmem:[#allocation2 + $0x78] sm:$0xff]
      %v4342 = vld [vmem:[#allocation2 + $0x80] sm:$0xff]
      %v4343 = vld [vmem:[#allocation2 + $0x88] sm:$0xff]
      %v4344 = vld [vmem:[#allocation2 + $0x90] sm:$0xff]
      %v4345 = vld [vmem:[#allocation2 + $0x98] sm:$0xff]
      %v4346 = vld [vmem:[#allocation2 + $0xa0] sm:$0xff]
      %v4347 = vld [vmem:[#allocation2 + $0xa8] sm:$0xff]
      %v4348 = vld [vmem:[#allocation2 + $0xb0] sm:$0xff]
      %v4349 = vld [vmem:[#allocation2 + $0xb8] sm:$0xff]
      %v4350 = vld [vmem:[#allocation2 + $0xc0] sm:$0xff]
      %v4351 = vld [vmem:[#allocation2 + $0xc8] sm:$0xff]
      %v4352 = vld [vmem:[#allocation2 + $0xd0] sm:$0xff]
      %v4353 = vld [vmem:[#allocation2 + $0xd8] sm:$0xff]
      %v4354 = vld [vmem:[#allocation2 + $0xe0] sm:$0xff]
      %v4355 = vld [vmem:[#allocation2 + $0xe8] sm:$0xff]
      %v4356 = vld [vmem:[#allocation2 + $0xf0] sm:$0xff]
      %v4357 = vld [vmem:[#allocation2 + $0xf8] sm:$0xff]
      %v4358 = vld [vmem:[#allocation2 + $0x100] sm:$0xff]
      %v4359 = vld [vmem:[#allocation2 + $0x108] sm:$0xff]
      %v4360 = vld [vmem:[#allocation2 + $0x110] sm:$0xff]
      %v4361 = vld [vmem:[#allocation2 + $0x118] sm:$0xff]
      %v4362 = vld [vmem:[#allocation2 + $0x120] sm:$0xff]
      %v4363 = vld [vmem:[#allocation2 + $0x128] sm:$0xff]
      %v4364 = vld [vmem:[#allocation2 + $0x130] sm:$0xff]
      %v4365 = vld [vmem:[#allocation2 + $0x138] sm:$0xff]
      %v4366 = vld [vmem:[#allocation2 + $0x140] sm:$0xff]
      %v4367 = vld [vmem:[#allocation2 + $0x148] sm:$0xff]
      %v4368 = vld [vmem:[#allocation2 + $0x150] sm:$0xff]
      %v4369 = vld [vmem:[#allocation2 + $0x158] sm:$0xff]
      %v4370 = vld [vmem:[#allocation2 + $0x160] sm:$0xff]
      %v4371 = vld [vmem:[#allocation2 + $0x168] sm:$0xff]
      %v4372 = vld [vmem:[#allocation2 + $0x170] sm:$0xff]
      %v4373 = vld [vmem:[#allocation2 + $0x178] sm:$0xff]
      %v4374 = vld [vmem:[%s2] sm:$0xf]
      %v4375 = vld [vmem:[%s2 + $0x4] sm:$0xf]
      %v4376 = vld [vmem:[%s2 + $0x8] sm:$0xf]
      %v4377 = vld [vmem:[%s2 + $0xc] sm:$0xf]
      %v4378 = vld [vmem:[%s2 + $0x10] sm:$0xf]
      %v4379 = vld [vmem:[%s2 + $0x14] sm:$0xf]
      %v4380 = vld [vmem:[%s2 + $0x18] sm:$0xf]
      %v4381 = vld [vmem:[%s2 + $0x1c] sm:$0xf]
      %v4382 = vld [vmem:[%s2 + $0x20] sm:$0xf]
      %v4383 = vld [vmem:[%s2 + $0x24] sm:$0xf]
      %v4384 = vld [vmem:[%s2 + $0x28] sm:$0xf]
      %v4385 = vld [vmem:[%s2 + $0x2c] sm:$0xf]
      %v4386 = vld [vmem:[%s2 + $0x30] sm:$0xf]
      %v4387 = vld [vmem:[%s2 + $0x34] sm:$0xf]
      %v4388 = vld [vmem:[%s2 + $0x38] sm:$0xf]
      %v4389 = vld [vmem:[%s2 + $0x3c] sm:$0xf]
      %v4390 = vld [vmem:[%s2 + $0x40] sm:$0xf]
      %v4391 = vld [vmem:[%s2 + $0x44] sm:$0xf]
      %v4392 = vld [vmem:[%s2 + $0x48] sm:$0xf]
      %v4393 = vld [vmem:[%s2 + $0x4c] sm:$0xf]
      %v4394 = vld [vmem:[%s2 + $0x50] sm:$0xf]
      %v4395 = vld [vmem:[%s2 + $0x54] sm:$0xf]
      %v4396 = vld [vmem:[%s2 + $0x58] sm:$0xf]
      %v4397 = vld [vmem:[%s2 + $0x5c] sm:$0xf]
      %v4398 = vld [vmem:[%s2 + $0x60] sm:$0xf]
      %v4399 = vld [vmem:[%s2 + $0x64] sm:$0xf]
      %v4400 = vld [vmem:[%s2 + $0x68] sm:$0xf]
      %v4401 = vld [vmem:[%s2 + $0x6c] sm:$0xf]
      %v4402 = vld [vmem:[%s2 + $0x70] sm:$0xf]
      %v4403 = vld [vmem:[%s2 + $0x74] sm:$0xf]
      %v4404 = vld [vmem:[%s2 + $0x78] sm:$0xf]
      %v4405 = vld [vmem:[%s2 + $0x7c] sm:$0xf]
      %v4406 = vld [vmem:[%s2 + $0x80] sm:$0xf]
      %v4407 = vld [vmem:[%s2 + $0x84] sm:$0xf]
      %v4408 = vld [vmem:[%s2 + $0x88] sm:$0xf]
      %v4409 = vld [vmem:[%s2 + $0x8c] sm:$0xf]
      %v4410 = vld [vmem:[%s2 + $0x90] sm:$0xf]
      %v4411 = vld [vmem:[%s2 + $0x94] sm:$0xf]
      %v4412 = vld [vmem:[%s2 + $0x98] sm:$0xf]
      %v4413 = vld [vmem:[%s2 + $0x9c] sm:$0xf]
      %v4414 = vld [vmem:[%s2 + $0xa0] sm:$0xf]
      %v4415 = vld [vmem:[%s2 + $0xa4] sm:$0xf]
      %v4416 = vld [vmem:[%s2 + $0xa8] sm:$0xf]
      %v4417 = vld [vmem:[%s2 + $0xac] sm:$0xf]
      %v4418 = vld [vmem:[%s2 + $0xb0] sm:$0xf]
      %v4419 = vld [vmem:[%s2 + $0xb4] sm:$0xf]
      %v4420 = vld [vmem:[%s2 + $0xb8] sm:$0xf]
      %v4421 = vld [vmem:[%s2 + $0xbc] sm:$0xf]
      %v4422 = vld [vmem:[#allocation2 + $0x180] sm:$0xff]
      %v4423 = vld [vmem:[#allocation2 + $0x188] sm:$0xff]
      %v4424 = vld [vmem:[#allocation2 + $0x190] sm:$0xff]
      %v4425 = vld [vmem:[%s2 + $0xc0] sm:$0xf]
      %v4426 = vld [vmem:[%s2 + $0xc4] sm:$0xf]
      %v4427 = vld [vmem:[%s2 + $0xc8] sm:$0xf]
      %v4428 = vld [vmem:[%s2 + $0xcc] sm:$0xf]
      %v4429 = vld [vmem:[%s2 + $0xd0] sm:$0xf]
      %v4430 = vld [vmem:[%s2 + $0xd4] sm:$0xf]
      %v4431 = vld [vmem:[%s2 + $0xd8] sm:$0xf]
      %v4432 = vld [vmem:[%s2 + $0xdc] sm:$0xf]
      %v4433 = vld [vmem:[%s2 + $0xe0] sm:$0xf]
      %v4434 = vld [vmem:[%s2 + $0xe4] sm:$0xf]
      %v4435 = vld [vmem:[%s2 + $0xe8] sm:$0xf]
      %v4436 = vld [vmem:[%s2 + $0xec] sm:$0xf]
      %v4437 = vld [vmem:[%s2 + $0xf0] sm:$0xf]
      %v4438 = vld [vmem:[%s2 + $0xf4] sm:$0xf]
      %v4439 = vld [vmem:[%s2 + $0xf8] sm:$0xf]
      %v4440 = vld [vmem:[%s2 + $0xfc] sm:$0xf]
      %v4441 = vld [vmem:[%s2 + $0x100] sm:$0xf]
      %v4442 = vld [vmem:[%s2 + $0x104] sm:$0xf]
      %v4443 = vld [vmem:[%s2 + $0x108] sm:$0xf]
      %v4444 = vld [vmem:[%s2 + $0x10c] sm:$0xf]
      %v4445 = vld [vmem:[%s2 + $0x110] sm:$0xf]
      %v4446 = vld [vmem:[%s2 + $0x114] sm:$0xf]
      %v4447 = vld [vmem:[%s2 + $0x118] sm:$0xf]
      %v4448 = vld [vmem:[%s2 + $0x11c] sm:$0xf]
      %v4449 = vld [vmem:[%s2 + $0x120] sm:$0xf]
      %v4450 = vld [vmem:[%s2 + $0x124] sm:$0xf]
      %v4451 = vld [vmem:[%s2 + $0x128] sm:$0xf]
      %v4452 = vld [vmem:[%s2 + $0x12c] sm:$0xf]
      %v4453 = vld [vmem:[%s2 + $0x130] sm:$0xf]
      %v4454 = vld [vmem:[%s2 + $0x134] sm:$0xf]
      %v4455 = vld [vmem:[%s2 + $0x138] sm:$0xf]
      %v4456 = vld [vmem:[%s2 + $0x13c] sm:$0xf]
      %v4457 = vld [vmem:[%s2 + $0x140] sm:$0xf]
      %v4458 = vld [vmem:[%s2 + $0x144] sm:$0xf]
      %v4459 = vld [vmem:[%s2 + $0x148] sm:$0xf]
      %v4460 = vld [vmem:[%s2 + $0x14c] sm:$0xf]
      %v4461 = vld [vmem:[%s2 + $0x150] sm:$0xf]
      %v4462 = vld [vmem:[%s2 + $0x154] sm:$0xf]
      %v4463 = vld [vmem:[%s2 + $0x158] sm:$0xf]
      %v4464 = vld [vmem:[%s2 + $0x15c] sm:$0xf]
      %v4465 = vld [vmem:[%s2 + $0x160] sm:$0xf]
      %v4466 = vld [vmem:[%s2 + $0x164] sm:$0xf]
      %v4467 = vld [vmem:[%s2 + $0x168] sm:$0xf]
      %v4468 = vld [vmem:[%s2 + $0x16c] sm:$0xf]
      %v4469 = vld [vmem:[%s2 + $0x170] sm:$0xf]
      %v4470 = vld [vmem:[%s2 + $0x174] sm:$0xf]
      %v4471 = vld [vmem:[%s2 + $0x178] sm:$0xf]
      %v4472 = vld [vmem:[%s2 + $0x17c] sm:$0xf]
      %v4521 = vunpack.c.l.b16 %v4425
      %v4522 = vunpack.c.l.b16 %v4426
      %v4523 = vunpack.c.l.b16 %v4427
      %v4524 = vunpack.c.l.b16 %v4428
      %v4525 = vunpack.c.l.b16 %v4429
      %v4526 = vunpack.c.l.b16 %v4430
      %v4527 = vunpack.c.l.b16 %v4431
      %v4528 = vunpack.c.l.b16 %v4432
      %v4529 = vunpack.c.l.b16 %v4433
      %v4530 = vunpack.c.l.b16 %v4434
      %v4531 = vunpack.c.l.b16 %v4435
      %v4532 = vunpack.c.l.b16 %v4436
      %v4533 = vunpack.c.l.b16 %v4437
      %v4534 = vunpack.c.l.b16 %v4438
      %v4535 = vunpack.c.l.b16 %v4439
      %v4536 = vunpack.c.l.b16 %v4440
      %v4537 = vunpack.c.l.b16 %v4441
      %v4538 = vunpack.c.l.b16 %v4442
      %v4539 = vunpack.c.l.b16 %v4443
      %v4540 = vunpack.c.l.b16 %v4444
      %v4541 = vunpack.c.l.b16 %v4445
      %v4542 = vunpack.c.l.b16 %v4446
      %v4543 = vunpack.c.l.b16 %v4447
      %v4544 = vunpack.c.l.b16 %v4448
      %v4545 = vunpack.c.l.b16 %v4449
      %v4546 = vunpack.c.l.b16 %v4450
      %v4547 = vunpack.c.l.b16 %v4451
      %v4548 = vunpack.c.l.b16 %v4452
      %v4549 = vunpack.c.l.b16 %v4453
      %v4550 = vunpack.c.l.b16 %v4454
      %v4551 = vunpack.c.l.b16 %v4455
      %v4552 = vunpack.c.l.b16 %v4456
      %v4553 = vunpack.c.l.b16 %v4457
      %v4554 = vunpack.c.l.b16 %v4458
      %v4555 = vunpack.c.l.b16 %v4459
      %v4556 = vunpack.c.l.b16 %v4460
      %v4557 = vunpack.c.l.b16 %v4461
      %v4558 = vunpack.c.l.b16 %v4462
      %v4559 = vunpack.c.l.b16 %v4463
      %v4560 = vunpack.c.l.b16 %v4464
      %v4561 = vunpack.c.l.b16 %v4465
      %v4562 = vunpack.c.l.b16 %v4466
      %v4563 = vunpack.c.l.b16 %v4467
      %v4564 = vunpack.c.l.b16 %v4468
      %v4565 = vunpack.c.l.b16 %v4469
      %v4566 = vunpack.c.l.b16 %v4470
      %v4567 = vunpack.c.l.b16 %v4471
      %v4568 = vunpack.c.l.b16 %v4472
      %v4569 = vpack.c.b16 %v4522, %v4521
      %v4570 = vpack.c.b16 %v4524, %v4523
      %v4571 = vpack.c.b16 %v4526, %v4525
      %v4572 = vpack.c.b16 %v4528, %v4527
      %v4573 = vpack.c.b16 %v4530, %v4529
      %v4574 = vpack.c.b16 %v4532, %v4531
      %v4575 = vpack.c.b16 %v4534, %v4533
      %v4576 = vpack.c.b16 %v4536, %v4535
      %v4577 = vpack.c.b16 %v4538, %v4537
      %v4578 = vpack.c.b16 %v4540, %v4539
      %v4579 = vpack.c.b16 %v4542, %v4541
      %v4580 = vpack.c.b16 %v4544, %v4543
      %v4581 = vpack.c.b16 %v4546, %v4545
      %v4582 = vpack.c.b16 %v4548, %v4547
      %v4583 = vpack.c.b16 %v4550, %v4549
      %v4584 = vpack.c.b16 %v4552, %v4551
      %v4585 = vpack.c.b16 %v4554, %v4553
      %v4586 = vpack.c.b16 %v4556, %v4555
      %v4587 = vpack.c.b16 %v4558, %v4557
      %v4588 = vpack.c.b16 %v4560, %v4559
      %v4589 = vpack.c.b16 %v4562, %v4561
      %v4590 = vpack.c.b16 %v4564, %v4563
      %v4591 = vpack.c.b16 %v4566, %v4565
      %v4592 = vpack.c.b16 %v4568, %v4567
      %4617 = vmatprep.subr.bf16.mxu0 0
      %4618 = vmatpush1.bf16.msra.mxu0 %v4569
      %4619 = vmatprep.subr.bf16.mxu0 0
      %4620 = vmatpush1.bf16.msra.mxu0 %v4570
      %4621 = vmatprep.subr.bf16.mxu0 0
      %4622 = vmatpush1.bf16.msra.mxu0 %v4571
      %4623 = vmatprep.subr.bf16.mxu0 0
      %4624 = vmatpush1.bf16.msra.mxu0 %v4572
      %4625 = vmatprep.subr.bf16.mxu0 0
      %4626 = vmatpush1.bf16.msra.mxu0 %v4573
      %4627 = vmatprep.subr.bf16.mxu0 0
      %4628 = vmatpush1.bf16.msra.mxu0 %v4574
      %4629 = vmatprep.subr.bf16.mxu0 0
      %4630 = vmatpush1.bf16.msra.mxu0 %v4575
      %4631 = vmatprep.subr.bf16.mxu0 0
      %4632 = vmatpush1.bf16.msra.mxu0 %v4576
      %4633 = vmatprep.subr.bf16.mxu0 0
      %4634 = vmatpush1.bf16.msra.mxu0 %v4577
      %4635 = vmatprep.subr.bf16.mxu0 0
      %4636 = vmatpush1.bf16.msra.mxu0 %v4578
      %4637 = vmatprep.subr.bf16.mxu0 0
      %4638 = vmatpush1.bf16.msra.mxu0 %v4579
      %4639 = vmatprep.subr.bf16.mxu0 0
      %4640 = vmatpush1.bf16.msra.mxu0 %v4580
      %4641 = vmatprep.subr.bf16.mxu0 0
      %4642 = vmatpush1.bf16.msra.mxu0 %v4581
      %4643 = vmatprep.subr.bf16.mxu0 0
      %4644 = vmatpush1.bf16.msra.mxu0 %v4582
      %4645 = vmatprep.subr.bf16.mxu0 0
      %4646 = vmatpush1.bf16.msra.mxu0 %v4583
      %4647 = vmatprep.subr.bf16.mxu0 0
      %4648 = vmatpush1.bf16.msra.mxu0 %v4584
      %4649 = vmatprep.mubr.bf16.mxu0 %v4330
      %4650 = vmatmul.mubr.bf16.gmra.mrb[0].mxu0 %v4329
      %v4651 = vpop.f32.mrb[0].mxu0
      %v4652 = vadd.f32 0.0, %v4651
      %v4653 = vpop.f32.mrb[0].mxu0
      %v4654 = vpop.f32.mrb[0].mxu0
      %v4655 = vadd.f32 0.0, %v4654
      %v4656 = vpop.f32.mrb[0].mxu0
      %4657 = vmatprep.mubr.bf16.mxu0 %v4333
      %4658 = vmatmul.mubr.bf16.gmra.mrb[0].mxu0 %v4332
      %v4659 = vpop.f32.mrb[0].mxu0
      %v4660 = vadd.f32 0.0, %v4659
      %v4661 = vpop.f32.mrb[0].mxu0
      %v4662 = vpop.f32.mrb[0].mxu0
      %v4663 = vadd.f32 0.0, %v4662
      %v4664 = vpop.f32.mrb[0].mxu0
      %4665 = vmatprep.mubr.bf16.mxu0 %v4336
      %4666 = vmatmul.mubr.bf16.gmra.mrb[0].mxu0 %v4335
      %v4667 = vpop.f32.mrb[0].mxu0
      %v4668 = vadd.f32 0.0, %v4667
      %v4669 = vpop.f32.mrb[0].mxu0
      %v4670 = vpop.f32.mrb[0].mxu0
      %v4671 = vadd.f32 0.0, %v4670
      %v4672 = vpop.f32.mrb[0].mxu0
      %4673 = vmatprep.mubr.bf16.mxu0 %v4339
      %4674 = vmatmul.mubr.bf16.gmra.mrb[0].mxu0 %v4338
      %v4675 = vpop.f32.mrb[0].mxu0
      %v4676 = vadd.f32 0.0, %v4675
      %v4677 = vpop.f32.mrb[0].mxu0
      %v4678 = vpop.f32.mrb[0].mxu0
      %v4679 = vadd.f32 0.0, %v4678
      %v4680 = vpop.f32.mrb[0].mxu0
      %4681 = vmatprep.mubr.bf16.mxu0 %v4342
      %4682 = vmatmul.mubr.bf16.gmra.mrb[0].mxu0 %v4341
      %v4683 = vpop.f32.mrb[0].mxu0
      %v4684 = vadd.f32 0.0, %v4683
      %v4685 = vpop.f32.mrb[0].mxu0
      %v4686 = vpop.f32.mrb[0].mxu0
      %v4687 = vadd.f32 0.0, %v4686
      %v4688 = vpop.f32.mrb[0].mxu0
      %4689 = vmatprep.mubr.bf16.mxu0 %v4345
      %4690 = vmatmul.mubr.bf16.gmra.mrb[0].mxu0 %v4344
      %v4691 = vpop.f32.mrb[0].mxu0
      %v4692 = vadd.f32 0.0, %v4691
      %v4693 = vpop.f32.mrb[0].mxu0
      %v4694 = vpop.f32.mrb[0].mxu0
      %v4695 = vadd.f32 0.0, %v4694
      %v4696 = vpop.f32.mrb[0].mxu0
      %4697 = vmatprep.mubr.bf16.mxu0 %v4348
      %4698 = vmatmul.mubr.bf16.gmra.mrb[0].mxu0 %v4347
      %v4699 = vpop.f32.mrb[0].mxu0
      %v4700 = vadd.f32 0.0, %v4699
      %v4701 = vpop.f32.mrb[0].mxu0
      %v4702 = vpop.f32.mrb[0].mxu0
      %v4703 = vadd.f32 0.0, %v4702
      %v4704 = vpop.f32.mrb[0].mxu0
      %4705 = vmatprep.mubr.bf16.mxu0 %v4351
      %4706 = vmatmul.mubr.bf16.gmra.mrb[0].mxu0 %v4350
      %v4707 = vpop.f32.mrb[0].mxu0
      %v4708 = vadd.f32 0.0, %v4707
      %v4709 = vpop.f32.mrb[0].mxu0
      %v4710 = vpop.f32.mrb[0].mxu0
      %v4711 = vadd.f32 0.0, %v4710
      %v4712 = vpop.f32.mrb[0].mxu0
      %4713 = vmatprep.mubr.bf16.mxu0 %v4354
      %4714 = vmatmul.mubr.bf16.gmra.mrb[0].mxu0 %v4353
      %v4715 = vpop.f32.mrb[0].mxu0
      %v4716 = vadd.f32 0.0, %v4715
      %v4717 = vpop.f32.mrb[0].mxu0
      %v4718 = vpop.f32.mrb[0].mxu0
      %v4719 = vadd.f32 0.0, %v4718
      %v4720 = vpop.f32.mrb[0].mxu0
      %4721 = vmatprep.mubr.bf16.mxu0 %v4357
      %4722 = vmatmul.mubr.bf16.gmra.mrb[0].mxu0 %v4356
      %v4723 = vpop.f32.mrb[0].mxu0
      %v4724 = vadd.f32 0.0, %v4723
      %v4725 = vpop.f32.mrb[0].mxu0
      %v4726 = vpop.f32.mrb[0].mxu0
      %v4727 = vadd.f32 0.0, %v4726
      %v4728 = vpop.f32.mrb[0].mxu0
      %4729 = vmatprep.mubr.bf16.mxu0 %v4360
      %4730 = vmatmul.mubr.bf16.gmra.mrb[0].mxu0 %v4359
      %v4731 = vpop.f32.mrb[0].mxu0
      %v4732 = vadd.f32 0.0, %v4731
      %v4733 = vpop.f32.mrb[0].mxu0
      %v4734 = vpop.f32.mrb[0].mxu0
      %v4735 = vadd.f32 0.0, %v4734
      %v4736 = vpop.f32.mrb[0].mxu0
      %4737 = vmatprep.mubr.bf16.mxu0 %v4363
      %4738 = vmatmul.mubr.bf16.gmra.mrb[0].mxu0 %v4362
      %v4739 = vpop.f32.mrb[0].mxu0
      %v4740 = vadd.f32 0.0, %v4739
      %v4741 = vpop.f32.mrb[0].mxu0
      %v4742 = vpop.f32.mrb[0].mxu0
      %v4743 = vadd.f32 0.0, %v4742
      %v4744 = vpop.f32.mrb[0].mxu0
      %4745 = vmatprep.mubr.bf16.mxu0 %v4366
      %4746 = vmatmul.mubr.bf16.gmra.mrb[0].mxu0 %v4365
      %v4747 = vpop.f32.mrb[0].mxu0
      %v4748 = vadd.f32 0.0, %v4747
      %v4749 = vpop.f32.mrb[0].mxu0
      %v4750 = vpop.f32.mrb[0].mxu0
      %v4751 = vadd.f32 0.0, %v4750
      %v4752 = vpop.f32.mrb[0].mxu0
      %4753 = vmatprep.mubr.bf16.mxu0 %v4369
      %4754 = vmatmul.mubr.bf16.gmra.mrb[0].mxu0 %v4368
      %v4755 = vpop.f32.mrb[0].mxu0
      %v4756 = vadd.f32 0.0, %v4755
      %v4757 = vpop.f32.mrb[0].mxu0
      %v4758 = vpop.f32.mrb[0].mxu0
      %v4759 = vadd.f32 0.0, %v4758
      %v4760 = vpop.f32.mrb[0].mxu0
      %4761 = vmatprep.mubr.bf16.mxu0 %v4372
      %4762 = vmatmul.mubr.bf16.gmra.mrb[0].mxu0 %v4371
      %v4763 = vpop.f32.mrb[0].mxu0
      %v4764 = vadd.f32 0.0, %v4763
      %v4765 = vpop.f32.mrb[0].mxu0
      %v4766 = vpop.f32.mrb[0].mxu0
      %v4767 = vadd.f32 0.0, %v4766
      %v4768 = vpop.f32.mrb[0].mxu0
      %4769 = vmatprep.mubr.bf16.mxu0 %v4423
      %4770 = vmatmul.mubr.bf16.gmra.mrb[0].mxu0 %v4422
      %v4771 = vpop.f32.mrb[0].mxu0
      %v4772 = vadd.f32 0.0, %v4771
      %v4773 = vpop.f32.mrb[0].mxu0
      %v4774 = vpop.f32.mrb[0].mxu0
      %v4775 = vadd.f32 0.0, %v4774
      %v4776 = vpop.f32.mrb[0].mxu0
      %4777 = vdwg.mxu0
      %4778 = vmatprep.subr.bf16.mxu0 0
      %4779 = vmatpush1.bf16.msra.mxu0 %v4585
      %4780 = vmatprep.subr.bf16.mxu0 0
      %4781 = vmatpush1.bf16.msra.mxu0 %v4586
      %4782 = vmatprep.subr.bf16.mxu0 0
      %4783 = vmatpush1.bf16.msra.mxu0 %v4587
      %4784 = vmatprep.subr.bf16.mxu0 0
      %4785 = vmatpush1.bf16.msra.mxu0 %v4588
      %4786 = vmatprep.subr.bf16.mxu0 0
      %4787 = vmatpush1.bf16.msra.mxu0 %v4589
      %4788 = vmatprep.subr.bf16.mxu0 0
      %4789 = vmatpush1.bf16.msra.mxu0 %v4590
      %4790 = vmatprep.subr.bf16.mxu0 0
      %4791 = vmatpush1.bf16.msra.mxu0 %v4591
      %4792 = vmatprep.subr.bf16.mxu0 0
      %4793 = vmatpush1.bf16.msra.mxu0 %v4592
      %4794 = vmatprep.subr.bf16.mxu0 0
      %4795 = vmatpush1.bf16.msra.mxu0 0
      %4796 = vmatprep.subr.bf16.mxu0 0
      %4797 = vmatpush1.bf16.msra.mxu0 0
      %4798 = vmatprep.subr.bf16.mxu0 0
      %4799 = vmatpush1.bf16.msra.mxu0 0
      %4800 = vmatprep.subr.bf16.mxu0 0
      %4801 = vmatpush1.bf16.msra.mxu0 0
      %4802 = vmatprep.subr.bf16.mxu0 0
      %4803 = vmatpush1.bf16.msra.mxu0 0
      %4804 = vmatprep.subr.bf16.mxu0 0
      %4805 = vmatpush1.bf16.msra.mxu0 0
      %4806 = vmatprep.subr.bf16.mxu0 0
      %4807 = vmatpush1.bf16.msra.mxu0 0
      %4808 = vmatprep.subr.bf16.mxu0 0
      %4809 = vmatpush1.bf16.msra.mxu0 0
      %4810 = vmatprep.mubr.bf16.mxu0 0
      %4811 = vmatmul.mubr.bf16.gmra.mrb[0].mxu0 %v4331
      %v4812 = vpop.f32.mrb[0].mxu0
      %v4813 = vadd.f32 %v4652, %v4812
      %v4814 = vpop.f32.mrb[0].mxu0
      %v4815 = vpop.f32.mrb[0].mxu0
      %v4816 = vadd.f32 %v4655, %v4815
      %v4817 = vpop.f32.mrb[0].mxu0
      %4818 = vmatprep.mubr.bf16.mxu0 0
      %4819 = vmatmul.mubr.bf16.gmra.mrb[0].mxu0 %v4334
      %v4820 = vpop.f32.mrb[0].mxu0
      %v4821 = vadd.f32 %v4660, %v4820
      %v4822 = vpop.f32.mrb[0].mxu0
      %v4823 = vpop.f32.mrb[0].mxu0
      %v4824 = vadd.f32 %v4663, %v4823
      %v4825 = vpop.f32.mrb[0].mxu0
      %4826 = vmatprep.mubr.bf16.mxu0 0
      %4827 = vmatmul.mubr.bf16.gmra.mrb[0].mxu0 %v4337
      %v4828 = vpop.f32.mrb[0].mxu0
      %v4829 = vadd.f32 %v4668, %v4828
      %v4830 = vpop.f32.mrb[0].mxu0
      %v4831 = vpop.f32.mrb[0].mxu0
      %v4832 = vadd.f32 %v4671, %v4831
      %v4833 = vpop.f32.mrb[0].mxu0
      %4834 = vmatprep.mubr.bf16.mxu0 0
      %4835 = vmatmul.mubr.bf16.gmra.mrb[0].mxu0 %v4340
      %v4836 = vpop.f32.mrb[0].mxu0
      %v4837 = vadd.f32 %v4676, %v4836
      %v4838 = vpop.f32.mrb[0].mxu0
      %v4839 = vpop.f32.mrb[0].mxu0
      %v4840 = vadd.f32 %v4679, %v4839
      %v4841 = vpop.f32.mrb[0].mxu0
      %4842 = vmatprep.mubr.bf16.mxu0 0
      %4843 = vmatmul.mubr.bf16.gmra.mrb[0].mxu0 %v4343
      %v4844 = vpop.f32.mrb[0].mxu0
      %v4845 = vadd.f32 %v4684, %v4844
      %v4846 = vpop.f32.mrb[0].mxu0
      %v4847 = vpop.f32.mrb[0].mxu0
      %v4848 = vadd.f32 %v4687, %v4847
      %v4849 = vpop.f32.mrb[0].mxu0
      %4850 = vmatprep.mubr.bf16.mxu0 0
      %4851 = vmatmul.mubr.bf16.gmra.mrb[0].mxu0 %v4346
      %v4852 = vpop.f32.mrb[0].mxu0
      %v4853 = vadd.f32 %v4692, %v4852
      %v4854 = vpop.f32.mrb[0].mxu0
      %v4855 = vpop.f32.mrb[0].mxu0
      %v4856 = vadd.f32 %v4695, %v4855
      %v4857 = vpop.f32.mrb[0].mxu0
      %4858 = vmatprep.mubr.bf16.mxu0 0
      %4859 = vmatmul.mubr.bf16.gmra.mrb[0].mxu0 %v4349
      %v4860 = vpop.f32.mrb[0].mxu0
      %v4861 = vadd.f32 %v4700, %v4860
      %v4862 = vpop.f32.mrb[0].mxu0
      %v4863 = vpop.f32.mrb[0].mxu0
      %v4864 = vadd.f32 %v4703, %v4863
      %v4865 = vpop.f32.mrb[0].mxu0
      %4866 = vmatprep.mubr.bf16.mxu0 0
      %4867 = vmatmul.mubr.bf16.gmra.mrb[0].mxu0 %v4352
      %v4868 = vpop.f32.mrb[0].mxu0
      %v4869 = vadd.f32 %v4708, %v4868
      %v4870 = vpop.f32.mrb[0].mxu0
      %v4871 = vpop.f32.mrb[0].mxu0
      %v4872 = vadd.f32 %v4711, %v4871
      %v4873 = vpop.f32.mrb[0].mxu0
      %4874 = vmatprep.mubr.bf16.mxu0 0
      %4875 = vmatmul.mubr.bf16.gmra.mrb[0].mxu0 %v4355
      %v4876 = vpop.f32.mrb[0].mxu0
      %v4877 = vadd.f32 %v4716, %v4876
      %v4878 = vpop.f32.mrb[0].mxu0
      %v4879 = vpop.f32.mrb[0].mxu0
      %v4880 = vadd.f32 %v4719, %v4879
      %v4881 = vpop.f32.mrb[0].mxu0
      %4882 = vmatprep.mubr.bf16.mxu0 0
      %4883 = vmatmul.mubr.bf16.gmra.mrb[0].mxu0 %v4358
      %v4884 = vpop.f32.mrb[0].mxu0
      %v4885 = vadd.f32 %v4724, %v4884
      %v4886 = vpop.f32.mrb[0].mxu0
      %v4887 = vpop.f32.mrb[0].mxu0
      %v4888 = vadd.f32 %v4727, %v4887
      %v4889 = vpop.f32.mrb[0].mxu0
      %4890 = vmatprep.mubr.bf16.mxu0 0
      %4891 = vmatmul.mubr.bf16.gmra.mrb[0].mxu0 %v4361
      %v4892 = vpop.f32.mrb[0].mxu0
      %v4893 = vadd.f32 %v4732, %v4892
      %v4894 = vpop.f32.mrb[0].mxu0
      %v4895 = vpop.f32.mrb[0].mxu0
      %v4896 = vadd.f32 %v4735, %v4895
      %v4897 = vpop.f32.mrb[0].mxu0
      %4898 = vmatprep.mubr.bf16.mxu0 0
      %4899 = vmatmul.mubr.bf16.gmra.mrb[0].mxu0 %v4364
      %v4900 = vpop.f32.mrb[0].mxu0
      %v4901 = vadd.f32 %v4740, %v4900
      %v4902 = vpop.f32.mrb[0].mxu0
      %v4903 = vpop.f32.mrb[0].mxu0
      %v4904 = vadd.f32 %v4743, %v4903
      %v4905 = vpop.f32.mrb[0].mxu0
      %4906 = vmatprep.mubr.bf16.mxu0 0
      %4907 = vmatmul.mubr.bf16.gmra.mrb[0].mxu0 %v4367
      %v4908 = vpop.f32.mrb[0].mxu0
      %v4909 = vadd.f32 %v4748, %v4908
      %v4910 = vpop.f32.mrb[0].mxu0
      %v4911 = vpop.f32.mrb[0].mxu0
      %v4912 = vadd.f32 %v4751, %v4911
      %v4913 = vpop.f32.mrb[0].mxu0
      %4914 = vmatprep.mubr.bf16.mxu0 0
      %4915 = vmatmul.mubr.bf16.gmra.mrb[0].mxu0 %v4370
      %v4916 = vpop.f32.mrb[0].mxu0
      %v4917 = vadd.f32 %v4756, %v4916
      %v4918 = vpop.f32.mrb[0].mxu0
      %v4919 = vpop.f32.mrb[0].mxu0
      %v4920 = vadd.f32 %v4759, %v4919
      %v4921 = vpop.f32.mrb[0].mxu0
      %4922 = vmatprep.mubr.bf16.mxu0 0
      %4923 = vmatmul.mubr.bf16.gmra.mrb[0].mxu0 %v4373
      %v4924 = vpop.f32.mrb[0].mxu0
      %v4925 = vadd.f32 %v4764, %v4924
      %v4926 = vpop.f32.mrb[0].mxu0
      %v4927 = vpop.f32.mrb[0].mxu0
      %v4928 = vadd.f32 %v4767, %v4927
      %v4929 = vpop.f32.mrb[0].mxu0
      %4930 = vmatprep.mubr.bf16.mxu0 0
      %4931 = vmatmul.mubr.bf16.gmra.mrb[0].mxu0 %v4424
      %v4932 = vpop.f32.mrb[0].mxu0
      %v4933 = vadd.f32 %v4772, %v4932
      %v4934 = vpop.f32.mrb[0].mxu0
      %v4935 = vpop.f32.mrb[0].mxu0
      %v4936 = vadd.f32 %v4775, %v4935
      %v4937 = vpop.f32.mrb[0].mxu0
      %4938 = vdwg.mxu0
      %v4987 = vunpack.c.l.b16 %v4374
      %v4988 = vunpack.c.l.b16 %v4375
      %v4989 = vunpack.c.l.b16 %v4376
      %v4990 = vunpack.c.l.b16 %v4377
      %v4991 = vunpack.c.l.b16 %v4378
      %v4992 = vunpack.c.l.b16 %v4379
      %v4993 = vunpack.c.l.b16 %v4380
      %v4994 = vunpack.c.l.b16 %v4381
      %v4995 = vunpack.c.l.b16 %v4382
      %v4996 = vunpack.c.l.b16 %v4383
      %v4997 = vunpack.c.l.b16 %v4384
      %v4998 = vunpack.c.l.b16 %v4385
      %v4999 = vunpack.c.l.b16 %v4386
      %v5000 = vunpack.c.l.b16 %v4387
      %v5001 = vunpack.c.l.b16 %v4388
      %v5002 = vunpack.c.l.b16 %v4389
      %v5003 = vunpack.c.l.b16 %v4390
      %v5004 = vunpack.c.l.b16 %v4391
      %v5005 = vunpack.c.l.b16 %v4392
      %v5006 = vunpack.c.l.b16 %v4393
      %v5007 = vunpack.c.l.b16 %v4394
      %v5008 = vunpack.c.l.b16 %v4395
      %v5009 = vunpack.c.l.b16 %v4396
      %v5010 = vunpack.c.l.b16 %v4397
      %v5011 = vunpack.c.l.b16 %v4398
      %v5012 = vunpack.c.l.b16 %v4399
      %v5013 = vunpack.c.l.b16 %v4400
      %v5014 = vunpack.c.l.b16 %v4401
      %v5015 = vunpack.c.l.b16 %v4402
      %v5016 = vunpack.c.l.b16 %v4403
      %v5017 = vunpack.c.l.b16 %v4404
      %v5018 = vunpack.c.l.b16 %v4405
      %v5019 = vunpack.c.l.b16 %v4406
      %v5020 = vunpack.c.l.b16 %v4407
      %v5021 = vunpack.c.l.b16 %v4408
      %v5022 = vunpack.c.l.b16 %v4409
      %v5023 = vunpack.c.l.b16 %v4410
      %v5024 = vunpack.c.l.b16 %v4411
      %v5025 = vunpack.c.l.b16 %v4412
      %v5026 = vunpack.c.l.b16 %v4413
      %v5027 = vunpack.c.l.b16 %v4414
      %v5028 = vunpack.c.l.b16 %v4415
      %v5029 = vunpack.c.l.b16 %v4416
      %v5030 = vunpack.c.l.b16 %v4417
      %v5031 = vunpack.c.l.b16 %v4418
      %v5032 = vunpack.c.l.b16 %v4419
      %v5033 = vunpack.c.l.b16 %v4420
      %v5034 = vunpack.c.l.b16 %v4421
      %v5035 = vpack.c.b16 %v4988, %v4987
      %v5036 = vpack.c.b16 %v4990, %v4989
      %v5037 = vpack.c.b16 %v4992, %v4991
      %v5038 = vpack.c.b16 %v4994, %v4993
      %v5039 = vpack.c.b16 %v4996, %v4995
      %v5040 = vpack.c.b16 %v4998, %v4997
      %v5041 = vpack.c.b16 %v5000, %v4999
      %v5042 = vpack.c.b16 %v5002, %v5001
      %v5043 = vpack.c.b16 %v5004, %v5003
      %v5044 = vpack.c.b16 %v5006, %v5005
      %v5045 = vpack.c.b16 %v5008, %v5007
      %v5046 = vpack.c.b16 %v5010, %v5009
      %v5047 = vpack.c.b16 %v5012, %v5011
      %v5048 = vpack.c.b16 %v5014, %v5013
      %v5049 = vpack.c.b16 %v5016, %v5015
      %v5050 = vpack.c.b16 %v5018, %v5017
      %v5051 = vpack.c.b16 %v5020, %v5019
      %v5052 = vpack.c.b16 %v5022, %v5021
      %v5053 = vpack.c.b16 %v5024, %v5023
      %v5054 = vpack.c.b16 %v5026, %v5025
      %v5055 = vpack.c.b16 %v5028, %v5027
      %v5056 = vpack.c.b16 %v5030, %v5029
      %v5057 = vpack.c.b16 %v5032, %v5031
      %v5058 = vpack.c.b16 %v5034, %v5033
      %5083 = vmatprep.subr.bf16.mxu0 0
      %5084 = vmatpush1.bf16.msra.mxu0 %v5035
      %5085 = vmatprep.subr.bf16.mxu0 0
      %5086 = vmatpush1.bf16.msra.mxu0 %v5036
      %5087 = vmatprep.subr.bf16.mxu0 0
      %5088 = vmatpush1.bf16.msra.mxu0 %v5037
      %5089 = vmatprep.subr.bf16.mxu0 0
      %5090 = vmatpush1.bf16.msra.mxu0 %v5038
      %5091 = vmatprep.subr.bf16.mxu0 0
      %5092 = vmatpush1.bf16.msra.mxu0 %v5039
      %5093 = vmatprep.subr.bf16.mxu0 0
      %5094 = vmatpush1.bf16.msra.mxu0 %v5040
      %5095 = vmatprep.subr.bf16.mxu0 0
      %5096 = vmatpush1.bf16.msra.mxu0 %v5041
      %5097 = vmatprep.subr.bf16.mxu0 0
      %5098 = vmatpush1.bf16.msra.mxu0 %v5042
      %5099 = vmatprep.subr.bf16.mxu0 0
      %5100 = vmatpush1.bf16.msra.mxu0 %v5043
      %5101 = vmatprep.subr.bf16.mxu0 0
      %5102 = vmatpush1.bf16.msra.mxu0 %v5044
      %5103 = vmatprep.subr.bf16.mxu0 0
      %5104 = vmatpush1.bf16.msra.mxu0 %v5045
      %5105 = vmatprep.subr.bf16.mxu0 0
      %5106 = vmatpush1.bf16.msra.mxu0 %v5046
      %5107 = vmatprep.subr.bf16.mxu0 0
      %5108 = vmatpush1.bf16.msra.mxu0 %v5047
      %5109 = vmatprep.subr.bf16.mxu0 0
      %5110 = vmatpush1.bf16.msra.mxu0 %v5048
      %5111 = vmatprep.subr.bf16.mxu0 0
      %5112 = vmatpush1.bf16.msra.mxu0 %v5049
      %5113 = vmatprep.subr.bf16.mxu0 0
      %5114 = vmatpush1.bf16.msra.mxu0 %v5050
      %5115 = vmatprep.mubr.bf16.mxu0 %v4327
      %5116 = vmatmul.mubr.bf16.gmra.mrb[0].mxu0 %v4326
      %v5117 = vpop.f32.mrb[0].mxu0
      %v5118 = vadd.f32 %v4813, %v5117
      %v5119 = vpop.f32.mrb[0].mxu0
      %v5120 = vpop.f32.mrb[0].mxu0
      %v5121 = vadd.f32 %v4816, %v5120
      %v5122 = vpop.f32.mrb[0].mxu0
      %5123 = vmatprep.mubr.bf16.mxu0 %v4330
      %5124 = vmatmul.mubr.bf16.gmra.mrb[0].mxu0 %v4329
      %v5125 = vpop.f32.mrb[0].mxu0
      %v5126 = vadd.f32 %v4821, %v5125
      %v5127 = vpop.f32.mrb[0].mxu0
      %v5128 = vpop.f32.mrb[0].mxu0
      %v5129 = vadd.f32 %v4824, %v5128
      %v5130 = vpop.f32.mrb[0].mxu0
      %5131 = vmatprep.mubr.bf16.mxu0 %v4333
      %5132 = vmatmul.mubr.bf16.gmra.mrb[0].mxu0 %v4332
      %v5133 = vpop.f32.mrb[0].mxu0
      %v5134 = vadd.f32 %v4829, %v5133
      %v5135 = vpop.f32.mrb[0].mxu0
      %v5136 = vpop.f32.mrb[0].mxu0
      %v5137 = vadd.f32 %v4832, %v5136
      %v5138 = vpop.f32.mrb[0].mxu0
      %5139 = vmatprep.mubr.bf16.mxu0 %v4336
      %5140 = vmatmul.mubr.bf16.gmra.mrb[0].mxu0 %v4335
      %v5141 = vpop.f32.mrb[0].mxu0
      %v5142 = vadd.f32 %v4837, %v5141
      %v5143 = vpop.f32.mrb[0].mxu0
      %v5144 = vpop.f32.mrb[0].mxu0
      %v5145 = vadd.f32 %v4840, %v5144
      %v5146 = vpop.f32.mrb[0].mxu0
      %5147 = vmatprep.mubr.bf16.mxu0 %v4339
      %5148 = vmatmul.mubr.bf16.gmra.mrb[0].mxu0 %v4338
      %v5149 = vpop.f32.mrb[0].mxu0
      %v5150 = vadd.f32 %v4845, %v5149
      %v5151 = vpop.f32.mrb[0].mxu0
      %v5152 = vpop.f32.mrb[0].mxu0
      %v5153 = vadd.f32 %v4848, %v5152
      %v5154 = vpop.f32.mrb[0].mxu0
      %5155 = vmatprep.mubr.bf16.mxu0 %v4342
      %5156 = vmatmul.mubr.bf16.gmra.mrb[0].mxu0 %v4341
      %v5157 = vpop.f32.mrb[0].mxu0
      %v5158 = vadd.f32 %v4853, %v5157
      %v5159 = vpop.f32.mrb[0].mxu0
      %v5160 = vpop.f32.mrb[0].mxu0
      %v5161 = vadd.f32 %v4856, %v5160
      %v5162 = vpop.f32.mrb[0].mxu0
      %5163 = vmatprep.mubr.bf16.mxu0 %v4345
      %5164 = vmatmul.mubr.bf16.gmra.mrb[0].mxu0 %v4344
      %v5165 = vpop.f32.mrb[0].mxu0
      %v5166 = vadd.f32 %v4861, %v5165
      %v5167 = vpop.f32.mrb[0].mxu0
      %v5168 = vpop.f32.mrb[0].mxu0
      %v5169 = vadd.f32 %v4864, %v5168
      %v5170 = vpop.f32.mrb[0].mxu0
      %5171 = vmatprep.mubr.bf16.mxu0 %v4348
      %5172 = vmatmul.mubr.bf16.gmra.mrb[0].mxu0 %v4347
      %v5173 = vpop.f32.mrb[0].mxu0
      %v5174 = vadd.f32 %v4869, %v5173
      %v5175 = vpop.f32.mrb[0].mxu0
      %v5176 = vpop.f32.mrb[0].mxu0
      %v5177 = vadd.f32 %v4872, %v5176
      %v5178 = vpop.f32.mrb[0].mxu0
      %5179 = vmatprep.mubr.bf16.mxu0 %v4351
      %5180 = vmatmul.mubr.bf16.gmra.mrb[0].mxu0 %v4350
      %v5181 = vpop.f32.mrb[0].mxu0
      %v5182 = vadd.f32 %v4877, %v5181
      %v5183 = vpop.f32.mrb[0].mxu0
      %v5184 = vpop.f32.mrb[0].mxu0
      %v5185 = vadd.f32 %v4880, %v5184
      %v5186 = vpop.f32.mrb[0].mxu0
      %5187 = vmatprep.mubr.bf16.mxu0 %v4354
      %5188 = vmatmul.mubr.bf16.gmra.mrb[0].mxu0 %v4353
      %v5189 = vpop.f32.mrb[0].mxu0
      %v5190 = vadd.f32 %v4885, %v5189
      %v5191 = vpop.f32.mrb[0].mxu0
      %v5192 = vpop.f32.mrb[0].mxu0
      %v5193 = vadd.f32 %v4888, %v5192
      %v5194 = vpop.f32.mrb[0].mxu0
      %5195 = vmatprep.mubr.bf16.mxu0 %v4357
      %5196 = vmatmul.mubr.bf16.gmra.mrb[0].mxu0 %v4356
      %v5197 = vpop.f32.mrb[0].mxu0
      %v5198 = vadd.f32 %v4893, %v5197
      %v5199 = vpop.f32.mrb[0].mxu0
      %v5200 = vpop.f32.mrb[0].mxu0
      %v5201 = vadd.f32 %v4896, %v5200
      %v5202 = vpop.f32.mrb[0].mxu0
      %5203 = vmatprep.mubr.bf16.mxu0 %v4360
      %5204 = vmatmul.mubr.bf16.gmra.mrb[0].mxu0 %v4359
      %v5205 = vpop.f32.mrb[0].mxu0
      %v5206 = vadd.f32 %v4901, %v5205
      %v5207 = vpop.f32.mrb[0].mxu0
      %v5208 = vpop.f32.mrb[0].mxu0
      %v5209 = vadd.f32 %v4904, %v5208
      %v5210 = vpop.f32.mrb[0].mxu0
      %5211 = vmatprep.mubr.bf16.mxu0 %v4363
      %5212 = vmatmul.mubr.bf16.gmra.mrb[0].mxu0 %v4362
      %v5213 = vpop.f32.mrb[0].mxu0
      %v5214 = vadd.f32 %v4909, %v5213
      %v5215 = vpop.f32.mrb[0].mxu0
      %v5216 = vpop.f32.mrb[0].mxu0
      %v5217 = vadd.f32 %v4912, %v5216
      %v5218 = vpop.f32.mrb[0].mxu0
      %5219 = vmatprep.mubr.bf16.mxu0 %v4366
      %5220 = vmatmul.mubr.bf16.gmra.mrb[0].mxu0 %v4365
      %v5221 = vpop.f32.mrb[0].mxu0
      %v5222 = vadd.f32 %v4917, %v5221
      %v5223 = vpop.f32.mrb[0].mxu0
      %v5224 = vpop.f32.mrb[0].mxu0
      %v5225 = vadd.f32 %v4920, %v5224
      %v5226 = vpop.f32.mrb[0].mxu0
      %5227 = vmatprep.mubr.bf16.mxu0 %v4369
      %5228 = vmatmul.mubr.bf16.gmra.mrb[0].mxu0 %v4368
      %v5229 = vpop.f32.mrb[0].mxu0
      %v5230 = vadd.f32 %v4925, %v5229
      %v5231 = vpop.f32.mrb[0].mxu0
      %v5232 = vpop.f32.mrb[0].mxu0
      %v5233 = vadd.f32 %v4928, %v5232
      %v5234 = vpop.f32.mrb[0].mxu0
      %5235 = vmatprep.mubr.bf16.mxu0 %v4372
      %5236 = vmatmul.mubr.bf16.gmra.mrb[0].mxu0 %v4371
      %v5237 = vpop.f32.mrb[0].mxu0
      %v5238 = vadd.f32 %v4933, %v5237
      %v5239 = vpop.f32.mrb[0].mxu0
      %v5240 = vpop.f32.mrb[0].mxu0
      %v5241 = vadd.f32 %v4936, %v5240
      %v5242 = vpop.f32.mrb[0].mxu0
      %5243 = vdwg.mxu0
      %5244 = vmatprep.subr.bf16.mxu0 0
      %5245 = vmatpush1.bf16.msra.mxu0 %v5051
      %5246 = vmatprep.subr.bf16.mxu0 0
      %5247 = vmatpush1.bf16.msra.mxu0 %v5052
      %5248 = vmatprep.subr.bf16.mxu0 0
      %5249 = vmatpush1.bf16.msra.mxu0 %v5053
      %5250 = vmatprep.subr.bf16.mxu0 0
      %5251 = vmatpush1.bf16.msra.mxu0 %v5054
      %5252 = vmatprep.subr.bf16.mxu0 0
      %5253 = vmatpush1.bf16.msra.mxu0 %v5055
      %5254 = vmatprep.subr.bf16.mxu0 0
      %5255 = vmatpush1.bf16.msra.mxu0 %v5056
      %5256 = vmatprep.subr.bf16.mxu0 0
      %5257 = vmatpush1.bf16.msra.mxu0 %v5057
      %5258 = vmatprep.subr.bf16.mxu0 0
      %5259 = vmatpush1.bf16.msra.mxu0 %v5058
      %5260 = vmatprep.subr.bf16.mxu0 0
      %5261 = vmatpush1.bf16.msra.mxu0 0
      %5262 = vmatprep.subr.bf16.mxu0 0
      %5263 = vmatpush1.bf16.msra.mxu0 0
      %5264 = vmatprep.subr.bf16.mxu0 0
      %5265 = vmatpush1.bf16.msra.mxu0 0
      %5266 = vmatprep.subr.bf16.mxu0 0
      %5267 = vmatpush1.bf16.msra.mxu0 0
      %5268 = vmatprep.subr.bf16.mxu0 0
      %5269 = vmatpush1.bf16.msra.mxu0 0
      %5270 = vmatprep.subr.bf16.mxu0 0
      %5271 = vmatpush1.bf16.msra.mxu0 0
      %5272 = vmatprep.subr.bf16.mxu0 0
      %5273 = vmatpush1.bf16.msra.mxu0 0
      %5274 = vmatprep.subr.bf16.mxu0 0
      %5275 = vmatpush1.bf16.msra.mxu0 0
      %5276 = vmatprep.mubr.bf16.mxu0 0
      %5277 = vmatmul.mubr.bf16.gmra.mrb[0].mxu0 %v4328
      %v5278 = vpop.f32.mrb[0].mxu0
      %v5279 = vadd.f32 %v5118, %v5278
      %v5280 = vpop.f32.mrb[0].mxu0
      %v5281 = vpop.f32.mrb[0].mxu0
      %v5282 = vadd.f32 %v5121, %v5281
      %v5283 = vpop.f32.mrb[0].mxu0
      %5284 = vmatprep.mubr.bf16.mxu0 0
      %5285 = vmatmul.mubr.bf16.gmra.mrb[0].mxu0 %v4331
      %v5286 = vpop.f32.mrb[0].mxu0
      %v5287 = vadd.f32 %v5126, %v5286
      %v5288 = vpop.f32.mrb[0].mxu0
      %v5289 = vpop.f32.mrb[0].mxu0
      %v5290 = vadd.f32 %v5129, %v5289
      %v5291 = vpop.f32.mrb[0].mxu0
      %5292 = vmatprep.mubr.bf16.mxu0 0
      %5293 = vmatmul.mubr.bf16.gmra.mrb[0].mxu0 %v4334
      %v5294 = vpop.f32.mrb[0].mxu0
      %v5295 = vadd.f32 %v5134, %v5294
      %v5296 = vpop.f32.mrb[0].mxu0
      %v5297 = vpop.f32.mrb[0].mxu0
      %v5298 = vadd.f32 %v5137, %v5297
      %v5299 = vpop.f32.mrb[0].mxu0
      %5300 = vmatprep.mubr.bf16.mxu0 0
      %5301 = vmatmul.mubr.bf16.gmra.mrb[0].mxu0 %v4337
      %v5302 = vpop.f32.mrb[0].mxu0
      %v5303 = vadd.f32 %v5142, %v5302
      %v5304 = vpop.f32.mrb[0].mxu0
      %v5305 = vpop.f32.mrb[0].mxu0
      %v5306 = vadd.f32 %v5145, %v5305
      %v5307 = vpop.f32.mrb[0].mxu0
      %5308 = vmatprep.mubr.bf16.mxu0 0
      %5309 = vmatmul.mubr.bf16.gmra.mrb[0].mxu0 %v4340
      %v5310 = vpop.f32.mrb[0].mxu0
      %v5311 = vadd.f32 %v5150, %v5310
      %v5312 = vpop.f32.mrb[0].mxu0
      %v5313 = vpop.f32.mrb[0].mxu0
      %v5314 = vadd.f32 %v5153, %v5313
      %v5315 = vpop.f32.mrb[0].mxu0
      %5316 = vmatprep.mubr.bf16.mxu0 0
      %5317 = vmatmul.mubr.bf16.gmra.mrb[0].mxu0 %v4343
      %v5318 = vpop.f32.mrb[0].mxu0
      %v5319 = vadd.f32 %v5158, %v5318
      %v5320 = vpop.f32.mrb[0].mxu0
      %v5321 = vpop.f32.mrb[0].mxu0
      %v5322 = vadd.f32 %v5161, %v5321
      %v5323 = vpop.f32.mrb[0].mxu0
      %5324 = vmatprep.mubr.bf16.mxu0 0
      %5325 = vmatmul.mubr.bf16.gmra.mrb[0].mxu0 %v4346
      %v5326 = vpop.f32.mrb[0].mxu0
      %v5327 = vadd.f32 %v5166, %v5326
      %v5328 = vpop.f32.mrb[0].mxu0
      %v5329 = vpop.f32.mrb[0].mxu0
      %v5330 = vadd.f32 %v5169, %v5329
      %v5331 = vpop.f32.mrb[0].mxu0
      %5332 = vmatprep.mubr.bf16.mxu0 0
      %5333 = vmatmul.mubr.bf16.gmra.mrb[0].mxu0 %v4349
      %v5334 = vpop.f32.mrb[0].mxu0
      %v5335 = vadd.f32 %v5174, %v5334
      %v5336 = vpop.f32.mrb[0].mxu0
      %v5337 = vpop.f32.mrb[0].mxu0
      %v5338 = vadd.f32 %v5177, %v5337
      %v5339 = vpop.f32.mrb[0].mxu0
      %5340 = vmatprep.mubr.bf16.mxu0 0
      %5341 = vmatmul.mubr.bf16.gmra.mrb[0].mxu0 %v4352
      %v5342 = vpop.f32.mrb[0].mxu0
      %v5343 = vadd.f32 %v5182, %v5342
      %v5344 = vpop.f32.mrb[0].mxu0
      %v5345 = vpop.f32.mrb[0].mxu0
      %v5346 = vadd.f32 %v5185, %v5345
      %v5347 = vpop.f32.mrb[0].mxu0
      %5348 = vmatprep.mubr.bf16.mxu0 0
      %5349 = vmatmul.mubr.bf16.gmra.mrb[0].mxu0 %v4355
      %v5350 = vpop.f32.mrb[0].mxu0
      %v5351 = vadd.f32 %v5190, %v5350
      %v5352 = vpop.f32.mrb[0].mxu0
      %v5353 = vpop.f32.mrb[0].mxu0
      %v5354 = vadd.f32 %v5193, %v5353
      %v5355 = vpop.f32.mrb[0].mxu0
      %5356 = vmatprep.mubr.bf16.mxu0 0
      %5357 = vmatmul.mubr.bf16.gmra.mrb[0].mxu0 %v4358
      %v5358 = vpop.f32.mrb[0].mxu0
      %v5359 = vadd.f32 %v5198, %v5358
      %v5360 = vpop.f32.mrb[0].mxu0
      %v5361 = vpop.f32.mrb[0].mxu0
      %v5362 = vadd.f32 %v5201, %v5361
      %v5363 = vpop.f32.mrb[0].mxu0
      %5364 = vmatprep.mubr.bf16.mxu0 0
      %5365 = vmatmul.mubr.bf16.gmra.mrb[0].mxu0 %v4361
      %v5366 = vpop.f32.mrb[0].mxu0
      %v5367 = vadd.f32 %v5206, %v5366
      %v5368 = vpop.f32.mrb[0].mxu0
      %v5369 = vpop.f32.mrb[0].mxu0
      %v5370 = vadd.f32 %v5209, %v5369
      %v5371 = vpop.f32.mrb[0].mxu0
      %5372 = vmatprep.mubr.bf16.mxu0 0
      %5373 = vmatmul.mubr.bf16.gmra.mrb[0].mxu0 %v4364
      %v5374 = vpop.f32.mrb[0].mxu0
      %v5375 = vadd.f32 %v5214, %v5374
      %v5376 = vpop.f32.mrb[0].mxu0
      %v5377 = vpop.f32.mrb[0].mxu0
      %v5378 = vadd.f32 %v5217, %v5377
      %v5379 = vpop.f32.mrb[0].mxu0
      %5380 = vmatprep.mubr.bf16.mxu0 0
      %5381 = vmatmul.mubr.bf16.gmra.mrb[0].mxu0 %v4367
      %v5382 = vpop.f32.mrb[0].mxu0
      %v5383 = vadd.f32 %v5222, %v5382
      %v5384 = vpop.f32.mrb[0].mxu0
      %v5385 = vpop.f32.mrb[0].mxu0
      %v5386 = vadd.f32 %v5225, %v5385
      %v5387 = vpop.f32.mrb[0].mxu0
      %5388 = vmatprep.mubr.bf16.mxu0 0
      %5389 = vmatmul.mubr.bf16.gmra.mrb[0].mxu0 %v4370
      %v5390 = vpop.f32.mrb[0].mxu0
      %v5391 = vadd.f32 %v5230, %v5390
      %v5392 = vpop.f32.mrb[0].mxu0
      %v5393 = vpop.f32.mrb[0].mxu0
      %v5394 = vadd.f32 %v5233, %v5393
      %v5395 = vpop.f32.mrb[0].mxu0
      %5396 = vmatprep.mubr.bf16.mxu0 0
      %5397 = vmatmul.mubr.bf16.gmra.mrb[0].mxu0 %v4373
      %v5398 = vpop.f32.mrb[0].mxu0
      %v5399 = vadd.f32 %v5238, %v5398
      %v5400 = vpop.f32.mrb[0].mxu0
      %v5401 = vpop.f32.mrb[0].mxu0
      %v5402 = vadd.f32 %v5241, %v5401
      %v5403 = vpop.f32.mrb[0].mxu0
      %5404 = vdwg.mxu0
      %v5405 = vld [vmem:[#allocation2 + $0x30] sm:$0xff]
      %v5406 = vld [vmem:[#allocation2 + $0x38] sm:$0xff]
      %v5407 = vld [vmem:[#allocation2 + $0x40] sm:$0xff]
      %v5408 = vld [vmem:[#allocation2 + $0x48] sm:$0xff]
      %v5409 = vld [vmem:[#allocation2 + $0x50] sm:$0xff]
      %v5410 = vld [vmem:[#allocation2 + $0x58] sm:$0xff]
      %v5411 = vld [vmem:[#allocation2 + $0x60] sm:$0xff]
      %v5412 = vld [vmem:[#allocation2 + $0x68] sm:$0xff]
      %v5413 = vld [vmem:[#allocation2 + $0x70] sm:$0xff]
      %v5414 = vld [vmem:[#allocation2 + $0x78] sm:$0xff]
      %v5415 = vld [vmem:[#allocation2 + $0x80] sm:$0xff]
      %v5416 = vld [vmem:[#allocation2 + $0x88] sm:$0xff]
      %v5417 = vld [vmem:[#allocation2 + $0x90] sm:$0xff]
      %v5418 = vld [vmem:[#allocation2 + $0x98] sm:$0xff]
      %v5419 = vld [vmem:[#allocation2 + $0xa0] sm:$0xff]
      %v5420 = vld [vmem:[#allocation2 + $0xa8] sm:$0xff]
      %v5421 = vld [vmem:[#allocation2 + $0xb0] sm:$0xff]
      %v5422 = vld [vmem:[#allocation2 + $0xb8] sm:$0xff]
      %v5423 = vld [vmem:[#allocation2 + $0xc0] sm:$0xff]
      %v5424 = vld [vmem:[#allocation2 + $0xc8] sm:$0xff]
      %v5425 = vld [vmem:[#allocation2 + $0xd0] sm:$0xff]
      %v5426 = vld [vmem:[#allocation2 + $0xd8] sm:$0xff]
      %v5427 = vld [vmem:[#allocation2 + $0xe0] sm:$0xff]
      %v5428 = vld [vmem:[#allocation2 + $0xe8] sm:$0xff]
      %v5429 = vld [vmem:[#allocation2 + $0xf0] sm:$0xff]
      %v5430 = vld [vmem:[#allocation2 + $0xf8] sm:$0xff]
      %v5431 = vld [vmem:[#allocation2 + $0x100] sm:$0xff]
      %v5432 = vld [vmem:[#allocation2 + $0x108] sm:$0xff]
      %v5433 = vld [vmem:[#allocation2 + $0x110] sm:$0xff]
      %v5434 = vld [vmem:[#allocation2 + $0x118] sm:$0xff]
      %v5435 = vld [vmem:[#allocation2 + $0x120] sm:$0xff]
      %v5436 = vld [vmem:[#allocation2 + $0x128] sm:$0xff]
      %v5437 = vld [vmem:[#allocation2 + $0x130] sm:$0xff]
      %v5438 = vld [vmem:[#allocation2 + $0x138] sm:$0xff]
      %v5439 = vld [vmem:[#allocation2 + $0x140] sm:$0xff]
      %v5440 = vld [vmem:[#allocation2 + $0x148] sm:$0xff]
      %v5441 = vld [vmem:[#allocation2 + $0x150] sm:$0xff]
      %v5442 = vld [vmem:[#allocation2 + $0x158] sm:$0xff]
      %v5443 = vld [vmem:[#allocation2 + $0x160] sm:$0xff]
      %v5444 = vld [vmem:[#allocation2 + $0x168] sm:$0xff]
      %v5445 = vld [vmem:[#allocation2 + $0x170] sm:$0xff]
      %v5446 = vld [vmem:[#allocation2 + $0x178] sm:$0xff]
      %v5447 = vld [vmem:[#allocation2 + $0x180] sm:$0xff]
      %v5448 = vld [vmem:[#allocation2 + $0x188] sm:$0xff]
      %v5449 = vld [vmem:[#allocation2 + $0x190] sm:$0xff]
      %v5450 = vld [vmem:[#allocation2 + $0x198] sm:$0xff]
      %v5451 = vld [vmem:[#allocation2 + $0x1a0] sm:$0xff]
      %v5452 = vld [vmem:[#allocation2 + $0x1a8] sm:$0xff]
      %v5453 = vld [vmem:[%s2 + $0x180] sm:$0xf]
      %v5454 = vld [vmem:[%s2 + $0x184] sm:$0xf]
      %v5455 = vld [vmem:[%s2 + $0x188] sm:$0xf]
      %v5456 = vld [vmem:[%s2 + $0x18c] sm:$0xf]
      %v5457 = vld [vmem:[%s2 + $0x190] sm:$0xf]
      %v5458 = vld [vmem:[%s2 + $0x194] sm:$0xf]
      %v5459 = vld [vmem:[%s2 + $0x198] sm:$0xf]
      %v5460 = vld [vmem:[%s2 + $0x19c] sm:$0xf]
      %v5461 = vld [vmem:[%s2 + $0x1a0] sm:$0xf]
      %v5462 = vld [vmem:[%s2 + $0x1a4] sm:$0xf]
      %v5463 = vld [vmem:[%s2 + $0x1a8] sm:$0xf]
      %v5464 = vld [vmem:[%s2 + $0x1ac] sm:$0xf]
      %v5465 = vld [vmem:[%s2 + $0x1b0] sm:$0xf]
      %v5466 = vld [vmem:[%s2 + $0x1b4] sm:$0xf]
      %v5467 = vld [vmem:[%s2 + $0x1b8] sm:$0xf]
      %v5468 = vld [vmem:[%s2 + $0x1bc] sm:$0xf]
      %v5469 = vld [vmem:[%s2 + $0x1c0] sm:$0xf]
      %v5470 = vld [vmem:[%s2 + $0x1c4] sm:$0xf]
      %v5471 = vld [vmem:[%s2 + $0x1c8] sm:$0xf]
      %v5472 = vld [vmem:[%s2 + $0x1cc] sm:$0xf]
      %v5473 = vld [vmem:[%s2 + $0x1d0] sm:$0xf]
      %v5474 = vld [vmem:[%s2 + $0x1d4] sm:$0xf]
      %v5475 = vld [vmem:[%s2 + $0x1d8] sm:$0xf]
      %v5476 = vld [vmem:[%s2 + $0x1dc] sm:$0xf]
      %v5477 = vld [vmem:[%s2 + $0x1e0] sm:$0xf]
      %v5478 = vld [vmem:[%s2 + $0x1e4] sm:$0xf]
      %v5479 = vld [vmem:[%s2 + $0x1e8] sm:$0xf]
      %v5480 = vld [vmem:[%s2 + $0x1ec] sm:$0xf]
      %v5481 = vld [vmem:[%s2 + $0x1f0] sm:$0xf]
      %v5482 = vld [vmem:[%s2 + $0x1f4] sm:$0xf]
      %v5483 = vld [vmem:[%s2 + $0x1f8] sm:$0xf]
      %v5484 = vld [vmem:[%s2 + $0x1fc] sm:$0xf]
      %v5485 = vld [vmem:[%s2 + $0x200] sm:$0xf]
      %v5486 = vld [vmem:[%s2 + $0x204] sm:$0xf]
      %v5487 = vld [vmem:[%s2 + $0x208] sm:$0xf]
      %v5488 = vld [vmem:[%s2 + $0x20c] sm:$0xf]
      %v5489 = vld [vmem:[%s2 + $0x210] sm:$0xf]
      %v5490 = vld [vmem:[%s2 + $0x214] sm:$0xf]
      %v5491 = vld [vmem:[%s2 + $0x218] sm:$0xf]
      %v5492 = vld [vmem:[%s2 + $0x21c] sm:$0xf]
      %v5493 = vld [vmem:[%s2 + $0x220] sm:$0xf]
      %v5494 = vld [vmem:[%s2 + $0x224] sm:$0xf]
      %v5495 = vld [vmem:[%s2 + $0x228] sm:$0xf]
      %v5496 = vld [vmem:[%s2 + $0x22c] sm:$0xf]
      %v5497 = vld [vmem:[%s2 + $0x230] sm:$0xf]
      %v5498 = vld [vmem:[%s2 + $0x234] sm:$0xf]
      %v5499 = vld [vmem:[%s2 + $0x238] sm:$0xf]
      %v5500 = vld [vmem:[%s2 + $0x23c] sm:$0xf]
      %v5549 = vunpack.c.l.b16 %v5453
      %v5550 = vunpack.c.l.b16 %v5454
      %v5551 = vunpack.c.l.b16 %v5455
      %v5552 = vunpack.c.l.b16 %v5456
      %v5553 = vunpack.c.l.b16 %v5457
      %v5554 = vunpack.c.l.b16 %v5458
      %v5555 = vunpack.c.l.b16 %v5459
      %v5556 = vunpack.c.l.b16 %v5460
      %v5557 = vunpack.c.l.b16 %v5461
      %v5558 = vunpack.c.l.b16 %v5462
      %v5559 = vunpack.c.l.b16 %v5463
      %v5560 = vunpack.c.l.b16 %v5464
      %v5561 = vunpack.c.l.b16 %v5465
      %v5562 = vunpack.c.l.b16 %v5466
      %v5563 = vunpack.c.l.b16 %v5467
      %v5564 = vunpack.c.l.b16 %v5468
      %v5565 = vunpack.c.l.b16 %v5469
      %v5566 = vunpack.c.l.b16 %v5470
      %v5567 = vunpack.c.l.b16 %v5471
      %v5568 = vunpack.c.l.b16 %v5472
      %v5569 = vunpack.c.l.b16 %v5473
      %v5570 = vunpack.c.l.b16 %v5474
      %v5571 = vunpack.c.l.b16 %v5475
      %v5572 = vunpack.c.l.b16 %v5476
      %v5573 = vunpack.c.l.b16 %v5477
      %v5574 = vunpack.c.l.b16 %v5478
      %v5575 = vunpack.c.l.b16 %v5479
      %v5576 = vunpack.c.l.b16 %v5480
      %v5577 = vunpack.c.l.b16 %v5481
      %v5578 = vunpack.c.l.b16 %v5482
      %v5579 = vunpack.c.l.b16 %v5483
      %v5580 = vunpack.c.l.b16 %v5484
      %v5581 = vunpack.c.l.b16 %v5485
      %v5582 = vunpack.c.l.b16 %v5486
      %v5583 = vunpack.c.l.b16 %v5487
      %v5584 = vunpack.c.l.b16 %v5488
      %v5585 = vunpack.c.l.b16 %v5489
      %v5586 = vunpack.c.l.b16 %v5490
      %v5587 = vunpack.c.l.b16 %v5491
      %v5588 = vunpack.c.l.b16 %v5492
      %v5589 = vunpack.c.l.b16 %v5493
      %v5590 = vunpack.c.l.b16 %v5494
      %v5591 = vunpack.c.l.b16 %v5495
      %v5592 = vunpack.c.l.b16 %v5496
      %v5593 = vunpack.c.l.b16 %v5497
      %v5594 = vunpack.c.l.b16 %v5498
      %v5595 = vunpack.c.l.b16 %v5499
      %v5596 = vunpack.c.l.b16 %v5500
      %v5597 = vpack.c.b16 %v5550, %v5549
      %v5598 = vpack.c.b16 %v5552, %v5551
      %v5599 = vpack.c.b16 %v5554, %v5553
      %v5600 = vpack.c.b16 %v5556, %v5555
      %v5601 = vpack.c.b16 %v5558, %v5557
      %v5602 = vpack.c.b16 %v5560, %v5559
      %v5603 = vpack.c.b16 %v5562, %v5561
      %v5604 = vpack.c.b16 %v5564, %v5563
      %v5605 = vpack.c.b16 %v5566, %v5565
      %v5606 = vpack.c.b16 %v5568, %v5567
      %v5607 = vpack.c.b16 %v5570, %v5569
      %v5608 = vpack.c.b16 %v5572, %v5571
      %v5609 = vpack.c.b16 %v5574, %v5573
      %v5610 = vpack.c.b16 %v5576, %v5575
      %v5611 = vpack.c.b16 %v5578, %v5577
      %v5612 = vpack.c.b16 %v5580, %v5579
      %v5613 = vpack.c.b16 %v5582, %v5581
      %v5614 = vpack.c.b16 %v5584, %v5583
      %v5615 = vpack.c.b16 %v5586, %v5585
      %v5616 = vpack.c.b16 %v5588, %v5587
      %v5617 = vpack.c.b16 %v5590, %v5589
      %v5618 = vpack.c.b16 %v5592, %v5591
      %v5619 = vpack.c.b16 %v5594, %v5593
      %v5620 = vpack.c.b16 %v5596, %v5595
      %5645 = vmatprep.subr.bf16.mxu0 0
      %5646 = vmatpush1.bf16.msra.mxu0 %v5597
      %5647 = vmatprep.subr.bf16.mxu0 0
      %5648 = vmatpush1.bf16.msra.mxu0 %v5598
      %5649 = vmatprep.subr.bf16.mxu0 0
      %5650 = vmatpush1.bf16.msra.mxu0 %v5599
      %5651 = vmatprep.subr.bf16.mxu0 0
      %5652 = vmatpush1.bf16.msra.mxu0 %v5600
      %5653 = vmatprep.subr.bf16.mxu0 0
      %5654 = vmatpush1.bf16.msra.mxu0 %v5601
      %5655 = vmatprep.subr.bf16.mxu0 0
      %5656 = vmatpush1.bf16.msra.mxu0 %v5602
      %5657 = vmatprep.subr.bf16.mxu0 0
      %5658 = vmatpush1.bf16.msra.mxu0 %v5603
      %5659 = vmatprep.subr.bf16.mxu0 0
      %5660 = vmatpush1.bf16.msra.mxu0 %v5604
      %5661 = vmatprep.subr.bf16.mxu0 0
      %5662 = vmatpush1.bf16.msra.mxu0 %v5605
      %5663 = vmatprep.subr.bf16.mxu0 0
      %5664 = vmatpush1.bf16.msra.mxu0 %v5606
      %5665 = vmatprep.subr.bf16.mxu0 0
      %5666 = vmatpush1.bf16.msra.mxu0 %v5607
      %5667 = vmatprep.subr.bf16.mxu0 0
      %5668 = vmatpush1.bf16.msra.mxu0 %v5608
      %5669 = vmatprep.subr.bf16.mxu0 0
      %5670 = vmatpush1.bf16.msra.mxu0 %v5609
      %5671 = vmatprep.subr.bf16.mxu0 0
      %5672 = vmatpush1.bf16.msra.mxu0 %v5610
      %5673 = vmatprep.subr.bf16.mxu0 0
      %5674 = vmatpush1.bf16.msra.mxu0 %v5611
      %5675 = vmatprep.subr.bf16.mxu0 0
      %5676 = vmatpush1.bf16.msra.mxu0 %v5612
      %5677 = vmatprep.mubr.bf16.mxu0 %v5406
      %5678 = vmatmul.mubr.bf16.gmra.mrb[0].mxu0 %v5405
      %v5679 = vpop.f32.mrb[0].mxu0
      %v5680 = vadd.f32 0.0, %v5679
      %v5681 = vpop.f32.mrb[0].mxu0
      %v5682 = vpop.f32.mrb[0].mxu0
      %v5683 = vadd.f32 0.0, %v5682
      %v5684 = vpop.f32.mrb[0].mxu0
      %5685 = vmatprep.mubr.bf16.mxu0 %v5409
      %5686 = vmatmul.mubr.bf16.gmra.mrb[0].mxu0 %v5408
      %v5687 = vpop.f32.mrb[0].mxu0
      %v5688 = vadd.f32 0.0, %v5687
      %v5689 = vpop.f32.mrb[0].mxu0
      %v5690 = vpop.f32.mrb[0].mxu0
      %v5691 = vadd.f32 0.0, %v5690
      %v5692 = vpop.f32.mrb[0].mxu0
      %5693 = vmatprep.mubr.bf16.mxu0 %v5412
      %5694 = vmatmul.mubr.bf16.gmra.mrb[0].mxu0 %v5411
      %v5695 = vpop.f32.mrb[0].mxu0
      %v5696 = vadd.f32 0.0, %v5695
      %v5697 = vpop.f32.mrb[0].mxu0
      %v5698 = vpop.f32.mrb[0].mxu0
      %v5699 = vadd.f32 0.0, %v5698
      %v5700 = vpop.f32.mrb[0].mxu0
      %5701 = vmatprep.mubr.bf16.mxu0 %v5415
      %5702 = vmatmul.mubr.bf16.gmra.mrb[0].mxu0 %v5414
      %v5703 = vpop.f32.mrb[0].mxu0
      %v5704 = vadd.f32 0.0, %v5703
      %v5705 = vpop.f32.mrb[0].mxu0
      %v5706 = vpop.f32.mrb[0].mxu0
      %v5707 = vadd.f32 0.0, %v5706
      %v5708 = vpop.f32.mrb[0].mxu0
      %5709 = vmatprep.mubr.bf16.mxu0 %v5418
      %5710 = vmatmul.mubr.bf16.gmra.mrb[0].mxu0 %v5417
      %v5711 = vpop.f32.mrb[0].mxu0
      %v5712 = vadd.f32 0.0, %v5711
      %v5713 = vpop.f32.mrb[0].mxu0
      %v5714 = vpop.f32.mrb[0].mxu0
      %v5715 = vadd.f32 0.0, %v5714
      %v5716 = vpop.f32.mrb[0].mxu0
      %5717 = vmatprep.mubr.bf16.mxu0 %v5421
      %5718 = vmatmul.mubr.bf16.gmra.mrb[0].mxu0 %v5420
      %v5719 = vpop.f32.mrb[0].mxu0
      %v5720 = vadd.f32 0.0, %v5719
      %v5721 = vpop.f32.mrb[0].mxu0
      %v5722 = vpop.f32.mrb[0].mxu0
      %v5723 = vadd.f32 0.0, %v5722
      %v5724 = vpop.f32.mrb[0].mxu0
      %5725 = vmatprep.mubr.bf16.mxu0 %v5424
      %5726 = vmatmul.mubr.bf16.gmra.mrb[0].mxu0 %v5423
      %v5727 = vpop.f32.mrb[0].mxu0
      %v5728 = vadd.f32 0.0, %v5727
      %v5729 = vpop.f32.mrb[0].mxu0
      %v5730 = vpop.f32.mrb[0].mxu0
      %v5731 = vadd.f32 0.0, %v5730
      %v5732 = vpop.f32.mrb[0].mxu0
      %5733 = vmatprep.mubr.bf16.mxu0 %v5427
      %5734 = vmatmul.mubr.bf16.gmra.mrb[0].mxu0 %v5426
      %v5735 = vpop.f32.mrb[0].mxu0
      %v5736 = vadd.f32 0.0, %v5735
      %v5737 = vpop.f32.mrb[0].mxu0
      %v5738 = vpop.f32.mrb[0].mxu0
      %v5739 = vadd.f32 0.0, %v5738
      %v5740 = vpop.f32.mrb[0].mxu0
      %5741 = vmatprep.mubr.bf16.mxu0 %v5430
      %5742 = vmatmul.mubr.bf16.gmra.mrb[0].mxu0 %v5429
      %v5743 = vpop.f32.mrb[0].mxu0
      %v5744 = vadd.f32 0.0, %v5743
      %v5745 = vpop.f32.mrb[0].mxu0
      %v5746 = vpop.f32.mrb[0].mxu0
      %v5747 = vadd.f32 0.0, %v5746
      %v5748 = vpop.f32.mrb[0].mxu0
      %5749 = vmatprep.mubr.bf16.mxu0 %v5433
      %5750 = vmatmul.mubr.bf16.gmra.mrb[0].mxu0 %v5432
      %v5751 = vpop.f32.mrb[0].mxu0
      %v5752 = vadd.f32 0.0, %v5751
      %v5753 = vpop.f32.mrb[0].mxu0
      %v5754 = vpop.f32.mrb[0].mxu0
      %v5755 = vadd.f32 0.0, %v5754
      %v5756 = vpop.f32.mrb[0].mxu0
      %5757 = vmatprep.mubr.bf16.mxu0 %v5436
      %5758 = vmatmul.mubr.bf16.gmra.mrb[0].mxu0 %v5435
      %v5759 = vpop.f32.mrb[0].mxu0
      %v5760 = vadd.f32 0.0, %v5759
      %v5761 = vpop.f32.mrb[0].mxu0
      %v5762 = vpop.f32.mrb[0].mxu0
      %v5763 = vadd.f32 0.0, %v5762
      %v5764 = vpop.f32.mrb[0].mxu0
      %5765 = vmatprep.mubr.bf16.mxu0 %v5439
      %5766 = vmatmul.mubr.bf16.gmra.mrb[0].mxu0 %v5438
      %v5767 = vpop.f32.mrb[0].mxu0
      %v5768 = vadd.f32 0.0, %v5767
      %v5769 = vpop.f32.mrb[0].mxu0
      %v5770 = vpop.f32.mrb[0].mxu0
      %v5771 = vadd.f32 0.0, %v5770
      %v5772 = vpop.f32.mrb[0].mxu0
      %5773 = vmatprep.mubr.bf16.mxu0 %v5442
      %5774 = vmatmul.mubr.bf16.gmra.mrb[0].mxu0 %v5441
      %v5775 = vpop.f32.mrb[0].mxu0
      %v5776 = vadd.f32 0.0, %v5775
      %v5777 = vpop.f32.mrb[0].mxu0
      %v5778 = vpop.f32.mrb[0].mxu0
      %v5779 = vadd.f32 0.0, %v5778
      %v5780 = vpop.f32.mrb[0].mxu0
      %5781 = vmatprep.mubr.bf16.mxu0 %v5445
      %5782 = vmatmul.mubr.bf16.gmra.mrb[0].mxu0 %v5444
      %v5783 = vpop.f32.mrb[0].mxu0
      %v5784 = vadd.f32 0.0, %v5783
      %v5785 = vpop.f32.mrb[0].mxu0
      %v5786 = vpop.f32.mrb[0].mxu0
      %v5787 = vadd.f32 0.0, %v5786
      %v5788 = vpop.f32.mrb[0].mxu0
      %5789 = vmatprep.mubr.bf16.mxu0 %v5448
      %5790 = vmatmul.mubr.bf16.gmra.mrb[0].mxu0 %v5447
      %v5791 = vpop.f32.mrb[0].mxu0
      %v5792 = vadd.f32 0.0, %v5791
      %v5793 = vpop.f32.mrb[0].mxu0
      %v5794 = vpop.f32.mrb[0].mxu0
      %v5795 = vadd.f32 0.0, %v5794
      %v5796 = vpop.f32.mrb[0].mxu0
      %5797 = vmatprep.mubr.bf16.mxu0 %v5451
      %5798 = vmatmul.mubr.bf16.gmra.mrb[0].mxu0 %v5450
      %v5799 = vpop.f32.mrb[0].mxu0
      %v5800 = vadd.f32 0.0, %v5799
      %v5801 = vpop.f32.mrb[0].mxu0
      %v5802 = vpop.f32.mrb[0].mxu0
      %v5803 = vadd.f32 0.0, %v5802
      %v5804 = vpop.f32.mrb[0].mxu0
      %5805 = vdwg.mxu0
      %5806 = vmatprep.subr.bf16.mxu0 0
      %5807 = vmatpush1.bf16.msra.mxu0 %v5613
      %5808 = vmatprep.subr.bf16.mxu0 0
      %5809 = vmatpush1.bf16.msra.mxu0 %v5614
      %5810 = vmatprep.subr.bf16.mxu0 0
      %5811 = vmatpush1.bf16.msra.mxu0 %v5615
      %5812 = vmatprep.subr.bf16.mxu0 0
      %5813 = vmatpush1.bf16.msra.mxu0 %v5616
      %5814 = vmatprep.subr.bf16.mxu0 0
      %5815 = vmatpush1.bf16.msra.mxu0 %v5617
      %5816 = vmatprep.subr.bf16.mxu0 0
      %5817 = vmatpush1.bf16.msra.mxu0 %v5618
      %5818 = vmatprep.subr.bf16.mxu0 0
      %5819 = vmatpush1.bf16.msra.mxu0 %v5619
      %5820 = vmatprep.subr.bf16.mxu0 0
      %5821 = vmatpush1.bf16.msra.mxu0 %v5620
      %5822 = vmatprep.subr.bf16.mxu0 0
      %5823 = vmatpush1.bf16.msra.mxu0 0
      %5824 = vmatprep.subr.bf16.mxu0 0
      %5825 = vmatpush1.bf16.msra.mxu0 0
      %5826 = vmatprep.subr.bf16.mxu0 0
      %5827 = vmatpush1.bf16.msra.mxu0 0
      %5828 = vmatprep.subr.bf16.mxu0 0
      %5829 = vmatpush1.bf16.msra.mxu0 0
      %5830 = vmatprep.subr.bf16.mxu0 0
      %5831 = vmatpush1.bf16.msra.mxu0 0
      %5832 = vmatprep.subr.bf16.mxu0 0
      %5833 = vmatpush1.bf16.msra.mxu0 0
      %5834 = vmatprep.subr.bf16.mxu0 0
      %5835 = vmatpush1.bf16.msra.mxu0 0
      %5836 = vmatprep.subr.bf16.mxu0 0
      %5837 = vmatpush1.bf16.msra.mxu0 0
      %5838 = vmatprep.mubr.bf16.mxu0 0
      %5839 = vmatmul.mubr.bf16.gmra.mrb[0].mxu0 %v5407
      %v5840 = vpop.f32.mrb[0].mxu0
      %v5841 = vadd.f32 %v5680, %v5840
      %v5842 = vpop.f32.mrb[0].mxu0
      %v5843 = vpop.f32.mrb[0].mxu0
      %v5844 = vadd.f32 %v5683, %v5843
      %v5845 = vpop.f32.mrb[0].mxu0
      %5846 = vmatprep.mubr.bf16.mxu0 0
      %5847 = vmatmul.mubr.bf16.gmra.mrb[0].mxu0 %v5410
      %v5848 = vpop.f32.mrb[0].mxu0
      %v5849 = vadd.f32 %v5688, %v5848
      %v5850 = vpop.f32.mrb[0].mxu0
      %v5851 = vpop.f32.mrb[0].mxu0
      %v5852 = vadd.f32 %v5691, %v5851
      %v5853 = vpop.f32.mrb[0].mxu0
      %5854 = vmatprep.mubr.bf16.mxu0 0
      %5855 = vmatmul.mubr.bf16.gmra.mrb[0].mxu0 %v5413
      %v5856 = vpop.f32.mrb[0].mxu0
      %v5857 = vadd.f32 %v5696, %v5856
      %v5858 = vpop.f32.mrb[0].mxu0
      %v5859 = vpop.f32.mrb[0].mxu0
      %v5860 = vadd.f32 %v5699, %v5859
      %v5861 = vpop.f32.mrb[0].mxu0
      %5862 = vmatprep.mubr.bf16.mxu0 0
      %5863 = vmatmul.mubr.bf16.gmra.mrb[0].mxu0 %v5416
      %v5864 = vpop.f32.mrb[0].mxu0
      %v5865 = vadd.f32 %v5704, %v5864
      %v5866 = vpop.f32.mrb[0].mxu0
      %v5867 = vpop.f32.mrb[0].mxu0
      %v5868 = vadd.f32 %v5707, %v5867
      %v5869 = vpop.f32.mrb[0].mxu0
      %5870 = vmatprep.mubr.bf16.mxu0 0
      %5871 = vmatmul.mubr.bf16.gmra.mrb[0].mxu0 %v5419
      %v5872 = vpop.f32.mrb[0].mxu0
      %v5873 = vadd.f32 %v5712, %v5872
      %v5874 = vpop.f32.mrb[0].mxu0
      %v5875 = vpop.f32.mrb[0].mxu0
      %v5876 = vadd.f32 %v5715, %v5875
      %v5877 = vpop.f32.mrb[0].mxu0
      %5878 = vmatprep.mubr.bf16.mxu0 0
      %5879 = vmatmul.mubr.bf16.gmra.mrb[0].mxu0 %v5422
      %v5880 = vpop.f32.mrb[0].mxu0
      %v5881 = vadd.f32 %v5720, %v5880
      %v5882 = vpop.f32.mrb[0].mxu0
      %v5883 = vpop.f32.mrb[0].mxu0
      %v5884 = vadd.f32 %v5723, %v5883
      %v5885 = vpop.f32.mrb[0].mxu0
      %5886 = vmatprep.mubr.bf16.mxu0 0
      %5887 = vmatmul.mubr.bf16.gmra.mrb[0].mxu0 %v5425
      %v5888 = vpop.f32.mrb[0].mxu0
      %v5889 = vadd.f32 %v5728, %v5888
      %v5890 = vpop.f32.mrb[0].mxu0
      %v5891 = vpop.f32.mrb[0].mxu0
      %v5892 = vadd.f32 %v5731, %v5891
      %v5893 = vpop.f32.mrb[0].mxu0
      %5894 = vmatprep.mubr.bf16.mxu0 0
      %5895 = vmatmul.mubr.bf16.gmra.mrb[0].mxu0 %v5428
      %v5896 = vpop.f32.mrb[0].mxu0
      %v5897 = vadd.f32 %v5736, %v5896
      %v5898 = vpop.f32.mrb[0].mxu0
      %v5899 = vpop.f32.mrb[0].mxu0
      %v5900 = vadd.f32 %v5739, %v5899
      %v5901 = vpop.f32.mrb[0].mxu0
      %5902 = vmatprep.mubr.bf16.mxu0 0
      %5903 = vmatmul.mubr.bf16.gmra.mrb[0].mxu0 %v5431
      %v5904 = vpop.f32.mrb[0].mxu0
      %v5905 = vadd.f32 %v5744, %v5904
      %v5906 = vpop.f32.mrb[0].mxu0
      %v5907 = vpop.f32.mrb[0].mxu0
      %v5908 = vadd.f32 %v5747, %v5907
      %v5909 = vpop.f32.mrb[0].mxu0
      %5910 = vmatprep.mubr.bf16.mxu0 0
      %5911 = vmatmul.mubr.bf16.gmra.mrb[0].mxu0 %v5434
      %v5912 = vpop.f32.mrb[0].mxu0
      %v5913 = vadd.f32 %v5752, %v5912
      %v5914 = vpop.f32.mrb[0].mxu0
      %v5915 = vpop.f32.mrb[0].mxu0
      %v5916 = vadd.f32 %v5755, %v5915
      %v5917 = vpop.f32.mrb[0].mxu0
      %5918 = vmatprep.mubr.bf16.mxu0 0
      %5919 = vmatmul.mubr.bf16.gmra.mrb[0].mxu0 %v5437
      %v5920 = vpop.f32.mrb[0].mxu0
      %v5921 = vadd.f32 %v5760, %v5920
      %v5922 = vpop.f32.mrb[0].mxu0
      %v5923 = vpop.f32.mrb[0].mxu0
      %v5924 = vadd.f32 %v5763, %v5923
      %v5925 = vpop.f32.mrb[0].mxu0
      %5926 = vmatprep.mubr.bf16.mxu0 0
      %5927 = vmatmul.mubr.bf16.gmra.mrb[0].mxu0 %v5440
      %v5928 = vpop.f32.mrb[0].mxu0
      %v5929 = vadd.f32 %v5768, %v5928
      %v5930 = vpop.f32.mrb[0].mxu0
      %v5931 = vpop.f32.mrb[0].mxu0
      %v5932 = vadd.f32 %v5771, %v5931
      %v5933 = vpop.f32.mrb[0].mxu0
      %5934 = vmatprep.mubr.bf16.mxu0 0
      %5935 = vmatmul.mubr.bf16.gmra.mrb[0].mxu0 %v5443
      %v5936 = vpop.f32.mrb[0].mxu0
      %v5937 = vadd.f32 %v5776, %v5936
      %v5938 = vpop.f32.mrb[0].mxu0
      %v5939 = vpop.f32.mrb[0].mxu0
      %v5940 = vadd.f32 %v5779, %v5939
      %v5941 = vpop.f32.mrb[0].mxu0
      %5942 = vmatprep.mubr.bf16.mxu0 0
      %5943 = vmatmul.mubr.bf16.gmra.mrb[0].mxu0 %v5446
      %v5944 = vpop.f32.mrb[0].mxu0
      %v5945 = vadd.f32 %v5784, %v5944
      %v5946 = vpop.f32.mrb[0].mxu0
      %v5947 = vpop.f32.mrb[0].mxu0
      %v5948 = vadd.f32 %v5787, %v5947
      %v5949 = vpop.f32.mrb[0].mxu0
      %5950 = vmatprep.mubr.bf16.mxu0 0
      %5951 = vmatmul.mubr.bf16.gmra.mrb[0].mxu0 %v5449
      %v5952 = vpop.f32.mrb[0].mxu0
      %v5953 = vadd.f32 %v5792, %v5952
      %v5954 = vpop.f32.mrb[0].mxu0
      %v5955 = vpop.f32.mrb[0].mxu0
      %v5956 = vadd.f32 %v5795, %v5955
      %v5957 = vpop.f32.mrb[0].mxu0
      %5958 = vmatprep.mubr.bf16.mxu0 0
      %5959 = vmatmul.mubr.bf16.gmra.mrb[0].mxu0 %v5452
      %v5960 = vpop.f32.mrb[0].mxu0
      %v5961 = vadd.f32 %v5800, %v5960
      %v5962 = vpop.f32.mrb[0].mxu0
      %v5963 = vpop.f32.mrb[0].mxu0
      %v5964 = vadd.f32 %v5803, %v5963
      %v5965 = vpop.f32.mrb[0].mxu0
      %5966 = vdwg.mxu0
      %v5967 = vadd.f32 %v5279, %v5841
      %v5968 = vadd.f32 %v5282, %v5844
      %v5969 = vadd.f32 %v5287, %v5849
      %v5970 = vadd.f32 %v5290, %v5852
      %v5971 = vadd.f32 %v5295, %v5857
      %v5972 = vadd.f32 %v5298, %v5860
      %v5973 = vadd.f32 %v5303, %v5865
      %v5974 = vadd.f32 %v5306, %v5868
      %v5975 = vadd.f32 %v5311, %v5873
      %v5976 = vadd.f32 %v5314, %v5876
      %v5977 = vadd.f32 %v5319, %v5881
      %v5978 = vadd.f32 %v5322, %v5884
      %v5979 = vadd.f32 %v5327, %v5889
      %v5980 = vadd.f32 %v5330, %v5892
      %v5981 = vadd.f32 %v5335, %v5897
      %v5982 = vadd.f32 %v5338, %v5900
      %v5983 = vadd.f32 %v5343, %v5905
      %v5984 = vadd.f32 %v5346, %v5908
      %v5985 = vadd.f32 %v5351, %v5913
      %v5986 = vadd.f32 %v5354, %v5916
      %v5987 = vadd.f32 %v5359, %v5921
      %v5988 = vadd.f32 %v5362, %v5924
      %v5989 = vadd.f32 %v5367, %v5929
      %v5990 = vadd.f32 %v5370, %v5932
      %v5991 = vadd.f32 %v5375, %v5937
      %v5992 = vadd.f32 %v5378, %v5940
      %v5993 = vadd.f32 %v5383, %v5945
      %v5994 = vadd.f32 %v5386, %v5948
      %v5995 = vadd.f32 %v5391, %v5953
      %v5996 = vadd.f32 %v5394, %v5956
      %v5997 = vadd.f32 %v5399, %v5961
      %v5998 = vadd.f32 %v5402, %v5964
      %v5999 = vadd.f32 %v5967, %v5968
      %v6000 = vadd.f32 %v5999, %v5969
      %v6001 = vadd.f32 %v6000, %v5970
      %v6002 = vadd.f32 %v6001, %v5971
      %v6003 = vadd.f32 %v6002, %v5972
      %v6004 = vadd.f32 %v6003, %v5973
      %v6005 = vadd.f32 %v6004, %v5974
      %v6006 = vadd.f32 %v6005, %v5975
      %v6007 = vadd.f32 %v6006, %v5976
      %v6008 = vadd.f32 %v6007, %v5977
      %v6009 = vadd.f32 %v6008, %v5978
      %v6010 = vadd.f32 %v6009, %v5979
      %v6011 = vadd.f32 %v6010, %v5980
      %v6012 = vadd.f32 %v6011, %v5981
      %v6013 = vadd.f32 %v6012, %v5982
      %v6014 = vadd.f32 %v6013, %v5983
      %v6015 = vadd.f32 %v6014, %v5984
      %v6016 = vadd.f32 %v6015, %v5985
      %v6017 = vadd.f32 %v6016, %v5986
      %v6018 = vadd.f32 %v6017, %v5987
      %v6019 = vadd.f32 %v6018, %v5988
      %v6020 = vadd.f32 %v6019, %v5989
      %v6021 = vadd.f32 %v6020, %v5990
      %v6022 = vadd.f32 %v6021, %v5991
      %v6023 = vadd.f32 %v6022, %v5992
      %v6024 = vadd.f32 %v6023, %v5993
      %v6025 = vadd.f32 %v6024, %v5994
      %v6026 = vadd.f32 %v6025, %v5995
      %v6027 = vadd.f32 %v6026, %v5996
      %v6028 = vadd.f32 %v6027, %v5997
      %v6029 = vadd.f32 %v6028, %v5998
      %v6030 = vrot.slane %v6029, 4
      %v6031 = vadd.f32 %v6029, %v6030
      %v6032 = vrot.slane %v6031, 2
      %v6033 = vadd.f32 %v6031, %v6032
      %v6034 = vrot.slane %v6033, 1
      %v6035 = vadd.f32 %v6033, %v6034
      %v6036 = vmul.f32 %v6035, 0.00390625
      %v6037 = vsub.f32 %v5967, %v6036
      %v6038 = vsub.f32 %v5968, %v6036
      %v6039 = vsub.f32 %v5969, %v6036
      %v6040 = vsub.f32 %v5970, %v6036
      %v6041 = vsub.f32 %v5971, %v6036
      %v6042 = vsub.f32 %v5972, %v6036
      %v6043 = vsub.f32 %v5973, %v6036
      %v6044 = vsub.f32 %v5974, %v6036
      %v6045 = vsub.f32 %v5975, %v6036
      %v6046 = vsub.f32 %v5976, %v6036
      %v6047 = vsub.f32 %v5977, %v6036
      %v6048 = vsub.f32 %v5978, %v6036
      %v6049 = vsub.f32 %v5979, %v6036
      %v6050 = vsub.f32 %v5980, %v6036
      %v6051 = vsub.f32 %v5981, %v6036
      %v6052 = vsub.f32 %v5982, %v6036
      %v6053 = vsub.f32 %v5983, %v6036
      %v6054 = vsub.f32 %v5984, %v6036
      %v6055 = vsub.f32 %v5985, %v6036
      %v6056 = vsub.f32 %v5986, %v6036
      %v6057 = vsub.f32 %v5987, %v6036
      %v6058 = vsub.f32 %v5988, %v6036
      %v6059 = vsub.f32 %v5989, %v6036
      %v6060 = vsub.f32 %v5990, %v6036
      %v6061 = vsub.f32 %v5991, %v6036
      %v6062 = vsub.f32 %v5992, %v6036
      %v6063 = vsub.f32 %v5993, %v6036
      %v6064 = vsub.f32 %v5994, %v6036
      %v6065 = vsub.f32 %v5995, %v6036
      %v6066 = vsub.f32 %v5996, %v6036
      %v6067 = vsub.f32 %v5997, %v6036
      %v6068 = vsub.f32 %v5998, %v6036
      %v6069 = vmul.f32 %v6037, %v6037
      %v6070 = vmul.f32 %v6038, %v6038
      %v6071 = vmul.f32 %v6039, %v6039
      %v6072 = vmul.f32 %v6040, %v6040
      %v6073 = vmul.f32 %v6041, %v6041
      %v6074 = vmul.f32 %v6042, %v6042
      %v6075 = vmul.f32 %v6043, %v6043
      %v6076 = vmul.f32 %v6044, %v6044
      %v6077 = vmul.f32 %v6045, %v6045
      %v6078 = vmul.f32 %v6046, %v6046
      %v6079 = vmul.f32 %v6047, %v6047
      %v6080 = vmul.f32 %v6048, %v6048
      %v6081 = vmul.f32 %v6049, %v6049
      %v6082 = vmul.f32 %v6050, %v6050
      %v6083 = vmul.f32 %v6051, %v6051
      %v6084 = vmul.f32 %v6052, %v6052
      %v6085 = vmul.f32 %v6053, %v6053
      %v6086 = vmul.f32 %v6054, %v6054
      %v6087 = vmul.f32 %v6055, %v6055
      %v6088 = vmul.f32 %v6056, %v6056
      %v6089 = vmul.f32 %v6057, %v6057
      %v6090 = vmul.f32 %v6058, %v6058
      %v6091 = vmul.f32 %v6059, %v6059
      %v6092 = vmul.f32 %v6060, %v6060
      %v6093 = vmul.f32 %v6061, %v6061
      %v6094 = vmul.f32 %v6062, %v6062
      %v6095 = vmul.f32 %v6063, %v6063
      %v6096 = vmul.f32 %v6064, %v6064
      %v6097 = vmul.f32 %v6065, %v6065
      %v6098 = vmul.f32 %v6066, %v6066
      %v6099 = vmul.f32 %v6067, %v6067
      %v6100 = vmul.f32 %v6068, %v6068
      %v6101 = vadd.f32 %v6069, %v6070
      %v6102 = vadd.f32 %v6101, %v6071
      %v6103 = vadd.f32 %v6102, %v6072
      %v6104 = vadd.f32 %v6103, %v6073
      %v6105 = vadd.f32 %v6104, %v6074
      %v6106 = vadd.f32 %v6105, %v6075
      %v6107 = vadd.f32 %v6106, %v6076
      %v6108 = vadd.f32 %v6107, %v6077
      %v6109 = vadd.f32 %v6108, %v6078
      %v6110 = vadd.f32 %v6109, %v6079
      %v6111 = vadd.f32 %v6110, %v6080
      %v6112 = vadd.f32 %v6111, %v6081
      %v6113 = vadd.f32 %v6112, %v6082
      %v6114 = vadd.f32 %v6113, %v6083
      %v6115 = vadd.f32 %v6114, %v6084
      %v6116 = vadd.f32 %v6115, %v6085
      %v6117 = vadd.f32 %v6116, %v6086
      %v6118 = vadd.f32 %v6117, %v6087
      %v6119 = vadd.f32 %v6118, %v6088
      %v6120 = vadd.f32 %v6119, %v6089
      %v6121 = vadd.f32 %v6120, %v6090
      %v6122 = vadd.f32 %v6121, %v6091
      %v6123 = vadd.f32 %v6122, %v6092
      %v6124 = vadd.f32 %v6123, %v6093
      %v6125 = vadd.f32 %v6124, %v6094
      %v6126 = vadd.f32 %v6125, %v6095
      %v6127 = vadd.f32 %v6126, %v6096
      %v6128 = vadd.f32 %v6127, %v6097
      %v6129 = vadd.f32 %v6128, %v6098
      %v6130 = vadd.f32 %v6129, %v6099
      %v6131 = vadd.f32 %v6130, %v6100
      %v6132 = vrot.slane %v6131, 4
      %v6133 = vadd.f32 %v6131, %v6132
      %v6134 = vrot.slane %v6133, 2
      %v6135 = vadd.f32 %v6133, %v6134
      %v6136 = vrot.slane %v6135, 1
      %v6137 = vadd.f32 %v6135, %v6136
      %v6138 = vmul.f32 %v6137, 0.00390625
      %v6139 = vadd.f32 %v6138, 1e-05
      %v6140 = vrsqrt.pop %v6139
      %v6141 = vmul.f32 %v6037, %v6140
      %v6142 = vmul.f32 %v6038, %v6140
      %v6143 = vmul.f32 %v6039, %v6140
      %v6144 = vmul.f32 %v6040, %v6140
      %v6145 = vmul.f32 %v6041, %v6140
      %v6146 = vmul.f32 %v6042, %v6140
      %v6147 = vmul.f32 %v6043, %v6140
      %v6148 = vmul.f32 %v6044, %v6140
      %v6149 = vmul.f32 %v6045, %v6140
      %v6150 = vmul.f32 %v6046, %v6140
      %v6151 = vmul.f32 %v6047, %v6140
      %v6152 = vmul.f32 %v6048, %v6140
      %v6153 = vmul.f32 %v6049, %v6140
      %v6154 = vmul.f32 %v6050, %v6140
      %v6155 = vmul.f32 %v6051, %v6140
      %v6156 = vmul.f32 %v6052, %v6140
      %v6157 = vmul.f32 %v6053, %v6140
      %v6158 = vmul.f32 %v6054, %v6140
      %v6159 = vmul.f32 %v6055, %v6140
      %v6160 = vmul.f32 %v6056, %v6140
      %v6161 = vmul.f32 %v6057, %v6140
      %v6162 = vmul.f32 %v6058, %v6140
      %v6163 = vmul.f32 %v6059, %v6140
      %v6164 = vmul.f32 %v6060, %v6140
      %v6165 = vmul.f32 %v6061, %v6140
      %v6166 = vmul.f32 %v6062, %v6140
      %v6167 = vmul.f32 %v6063, %v6140
      %v6168 = vmul.f32 %v6064, %v6140
      %v6169 = vmul.f32 %v6065, %v6140
      %v6170 = vmul.f32 %v6066, %v6140
      %v6171 = vmul.f32 %v6067, %v6140
      %v6172 = vmul.f32 %v6068, %v6140
      %v6173 = vadd.f32 %v4294, %v6141
      %v6174 = vadd.f32 %v4295, %v6142
      %v6175 = vadd.f32 %v4296, %v6143
      %v6176 = vadd.f32 %v4297, %v6144
      %v6177 = vadd.f32 %v4298, %v6145
      %v6178 = vadd.f32 %v4299, %v6146
      %v6179 = vadd.f32 %v4300, %v6147
      %v6180 = vadd.f32 %v4301, %v6148
      %v6181 = vadd.f32 %v4302, %v6149
      %v6182 = vadd.f32 %v4303, %v6150
      %v6183 = vadd.f32 %v4304, %v6151
      %v6184 = vadd.f32 %v4305, %v6152
      %v6185 = vadd.f32 %v4306, %v6153
      %v6186 = vadd.f32 %v4307, %v6154
      %v6187 = vadd.f32 %v4308, %v6155
      %v6188 = vadd.f32 %v4309, %v6156
      %v6189 = vadd.f32 %v4310, %v6157
      %v6190 = vadd.f32 %v4311, %v6158
      %v6191 = vadd.f32 %v4312, %v6159
      %v6192 = vadd.f32 %v4313, %v6160
      %v6193 = vadd.f32 %v4314, %v6161
      %v6194 = vadd.f32 %v4315, %v6162
      %v6195 = vadd.f32 %v4316, %v6163
      %v6196 = vadd.f32 %v4317, %v6164
      %v6197 = vadd.f32 %v4318, %v6165
      %v6198 = vadd.f32 %v4319, %v6166
      %v6199 = vadd.f32 %v4320, %v6167
      %v6200 = vadd.f32 %v4321, %v6168
      %v6201 = vadd.f32 %v4322, %v6169
      %v6202 = vadd.f32 %v4323, %v6170
      %v6203 = vadd.f32 %v4324, %v6171
      %v6204 = vadd.f32 %v4325, %v6172
      %6205 = vst [vmem:[%s170] sm:$0xff] %v6173
      %6206 = vst [vmem:[%s170 + $0x8] sm:$0xff] %v6174
      %6207 = vst [vmem:[%s170 + $0x10] sm:$0xff] %v6175
      %6208 = vst [vmem:[%s170 + $0x18] sm:$0xff] %v6176
      %6209 = vst [vmem:[%s170 + $0x20] sm:$0xff] %v6177
      %6210 = vst [vmem:[%s170 + $0x28] sm:$0xff] %v6178
      %6211 = vst [vmem:[%s170 + $0x30] sm:$0xff] %v6179
      %6212 = vst [vmem:[%s170 + $0x38] sm:$0xff] %v6180
      %6213 = vst [vmem:[%s170 + $0x40] sm:$0xff] %v6181
      %6214 = vst [vmem:[%s170 + $0x48] sm:$0xff] %v6182
      %6215 = vst [vmem:[%s170 + $0x50] sm:$0xff] %v6183
      %6216 = vst [vmem:[%s170 + $0x58] sm:$0xff] %v6184
      %6217 = vst [vmem:[%s170 + $0x60] sm:$0xff] %v6185
      %6218 = vst [vmem:[%s170 + $0x68] sm:$0xff] %v6186
      %6219 = vst [vmem:[%s170 + $0x70] sm:$0xff] %v6187
      %6220 = vst [vmem:[%s170 + $0x78] sm:$0xff] %v6188
      %6221 = vst [vmem:[%s170 + $0x80] sm:$0xff] %v6189
      %6222 = vst [vmem:[%s170 + $0x88] sm:$0xff] %v6190
      %6223 = vst [vmem:[%s170 + $0x90] sm:$0xff] %v6191
      %6224 = vst [vmem:[%s170 + $0x98] sm:$0xff] %v6192
      %6225 = vst [vmem:[%s170 + $0xa0] sm:$0xff] %v6193
      %6226 = vst [vmem:[%s170 + $0xa8] sm:$0xff] %v6194
      %6227 = vst [vmem:[%s170 + $0xb0] sm:$0xff] %v6195
      %6228 = vst [vmem:[%s170 + $0xb8] sm:$0xff] %v6196
      %6229 = vst [vmem:[%s170 + $0xc0] sm:$0xff] %v6197
      %6230 = vst [vmem:[%s170 + $0xc8] sm:$0xff] %v6198
      %6231 = vst [vmem:[%s170 + $0xd0] sm:$0xff] %v6199
      %6232 = vst [vmem:[%s170 + $0xd8] sm:$0xff] %v6200
      %6233 = vst [vmem:[%s170 + $0xe0] sm:$0xff] %v6201
      %6234 = vst [vmem:[%s170 + $0xe8] sm:$0xff] %v6202
      %6235 = vst [vmem:[%s170 + $0xf0] sm:$0xff] %v6203
      %6236 = vst [vmem:[%s170 + $0xf8] sm:$0xff] %v6204
      %p6237 = scmp.lt.s32.totalorder %s14, 1
      %s6238 = scalar_select %p6237, %s14, 1
      %s6239 = smul.addr %s6238, 32
      %s6240 = smul.addr %s6239, 8
      %s6241 = scalar_lea.vmem %s3, %s6240
      // Predicated region
      $region33: #{resblock_hess_pallas.1} parent=31 // pred_check
        %p6242 = pneg %p100
      $region34: #{resblock_hess_pallas.1} parent=31 // pred_check_branch
        %6244 = sbr.rel (%p6242) target = $region36
      $region35: #{resblock_hess_pallas.1} parent=31 // pred_region
        _
      $region36: #{resblock_hess_pallas.1} parent=31 // pred_fallthru
        _
    $region32: #{resblock_hess_pallas.1} parent=5 // pred_fallthru
      _
    %p6245 = scmp.le.s32.totalorder 2, %s9
    // Predicated region
    $region37: #{resblock_hess_pallas.1} parent=5 // pred_check
      %p6246 = pneg %p6245
    $region38: #{resblock_hess_pallas.1} parent=5 // pred_check_branch
      %6248 = sbr.rel (%p6246) target = $region40
    $region39: #{resblock_hess_pallas.1} parent=5 // pred_region
      %s6249 = ssub.s32 %s9, 2
      // Predicated region
      $region41: #{resblock_hess_pallas.1} parent=39 // pred_check
        %p6250 = pneg %p106
      $region42: #{resblock_hess_pallas.1} parent=39 // pred_check_branch
        %6252 = sbr.rel (%p6250) target = $region44
      $region43: #{resblock_hess_pallas.1} parent=39 // pred_region
        %p6253 = scmp.lt.s32.totalorder %s15, 1
        %s6254 = scalar_select %p6253, %s15, 1
        %s6255 = smul.addr %s6254, 32
        %s6256 = smul.addr %s6255, 8
        %s6257 = scalar_lea.vmem %s3, %s6256
      $region44: #{resblock_hess_pallas.1} parent=39 // pred_fallthru
        _
    $region40: #{resblock_hess_pallas.1} parent=5 // pred_fallthru
      _
  $region6: #{resblock_hess_pallas.1} parent=0 // loop_footer
    %s13 = sadd.s32 1, %s9
  $region7: #{resblock_hess_pallas.1} parent=0 // loop_footer_branch
    %8 = sbr.rel target = $region3
  $region8: #{resblock_hess_pallas.1} parent=0 // loop_exit
    _

</llo_original>
